<compile_context>
chip_gen: v5e
topology: v5e:2x2
jax: 0.10.0
libtpu: 0.0.40
codegen_flags: <defaults>
</compile_context>

<pallas_src>
import jax
import jax.numpy as jnp
from jax import lax
from jax.experimental import pallas as pl
from jax.experimental.pallas import tpu as pltpu

DILATIONS = (1, 2, 4, 8, 16, 32)
EPS = 1e-5


# ----------------------------- Pallas kernel -------------------------------

def _make_kernel(T, bt, C, dilations):
    """Kernel processing `bt` batches folded into the sublane (M) axis: M = bt*T."""
    M = bt * T

    def kernel(x_ref, win_ref, bin_ref,
               w0a_ref, w0b_ref, t0_ref,
               w1a_ref, w1b_ref, t1_ref,
               wo_ref, bo_ref, out_ref):
        x = x_ref[...]                                           # (M, Cin)

        # conv_in: 1x1 conv == channel matmul.
        h = jnp.dot(x, win_ref[...], preferred_element_type=jnp.float32) + bin_ref[...]

        # Time index within each folded batch segment, as a thin (M, 1) column.
        row = lax.broadcasted_iota(jnp.int32, (M, 1), 0)
        if (T & (T - 1)) == 0:
            t_idx = row & (T - 1)
        else:
            t_idx = row % T
        # Per-dilation causal masks, hoisted (each used twice per block).
        masks = {d: (t_idx >= d).astype(jnp.float32) for d in sorted(set(dilations))}

        def causal_shift(v, d):
            # shifted[b*T + t] = v[b*T + t - d] for t >= d else 0 (per segment).
            # pltpu.roll wraps rows across segments / the tile edge; the mask
            # zeros exactly those rows, so no cross-segment bleed.
            return pltpu.roll(v, shift=d, axis=0) * masks[d]

        # Sum of shortcuts over all blocks, dense (M, C).
        acc = jnp.zeros((M, C), jnp.float32)

        for blk, d in enumerate(dilations):
            # conv0 (k=2, dilation d, causal) + bias/BN (folded) + relu:
            # two accumulating (C, C) dots (older tap on shifted rows, current tap).
            hs = causal_shift(h, d)
            a = jnp.maximum(
                jnp.dot(hs, w0a_ref[blk], preferred_element_type=jnp.float32)
                + jnp.dot(h, w0b_ref[blk], preferred_element_type=jnp.float32)
                + t0_ref[blk], 0.0)
            # dropout0: p=0.0 / eval -> identity

            # conv1 + bias/BN (folded) + relu.
            as_ = causal_shift(a, d)
            c = jnp.maximum(
                jnp.dot(as_, w1a_ref[blk], preferred_element_type=jnp.float32)
                + jnp.dot(a, w1b_ref[blk], preferred_element_type=jnp.float32)
                + t1_ref[blk], 0.0)
            # dropout1: p=0.0 / eval -> identity

            # shortcut contribution (dense add; last-timestep selection in wrapper).
            acc = acc + c

            # residual 1x1 conv_out with identity folded in: h = c @ (Wo + I) + bo.
            h = jnp.dot(c, wo_ref[blk], preferred_element_type=jnp.float32) + bo_ref[blk]

        out_ref[...] = acc                                       # (M, C)

    return kernel


def _pick_batch_tile(B, T, target_m=1024):
    """Largest divisor of B with bt*T <= target_m; prefer a >=2-step grid (v7x)."""
    best = 1
    for bt in range(1, B + 1):
        if B % bt == 0 and bt * T <= target_m:
            best = bt
    if B // best < 2:
        for bt in range(best - 1, 0, -1):
            if B % bt == 0 and B // bt >= 2 and bt * T >= 512:
                best = bt
                break
    return best


def temporal_conv_layer(x_nct, kp, *, batch_tile=None):
    """x_nct: (B, Cin, T) float32 (PyTorch NCT layout) -> (B, Cout) float32."""
    B, Cin, T = x_nct.shape
    Cout = kp["win"].shape[1]
    nb = kp["w0a"].shape[0]

    if batch_tile is None:
        bt = _pick_batch_tile(B, T)
        if (bt * T) % 8 != 0 and B // bt != 1:
            bt = B          # fall back to a single full-array block
    else:
        bt = batch_tile
    assert B % bt == 0
    M = bt * T
    assert (M % 8 == 0) or (B // bt == 1), "sublane block dim must be 8-aligned"

    # (B, Cin, T) -> (B*T, Cin): batch folded into the matmul M (sublane) axis.
    # TODO(synk): if the producer can supply NTC layout this transpose is a free reshape.
    x = jnp.transpose(x_nct, (0, 2, 1)).reshape(B * T, Cin)

    def const_spec(shape):
        n = len(shape)
        return pl.BlockSpec(shape, lambda g: (0,) * n)   # weights stay VMEM-resident

    # VMEM budget (explicit so large batch tiles stay legal on v7x's 64 MiB VMEM).
    f32 = 4
    weight_bytes = f32 * (Cin * Cout + Cout + nb * (5 * Cout * Cout + 3 * Cout))
    io_bytes = 2 * f32 * (M * Cin + M * Cout)            # double-buffered x / out blocks
    live_bytes = 8 * f32 * M * Cout                      # h, shifted, a, c, acc, temps
    est = 2 * weight_bytes + io_bytes + live_bytes
    vmem_limit = int(min(max(2 * est, 32 * 1024 * 1024), 48 * 1024 * 1024))

    grid_spec = pltpu.PrefetchScalarGridSpec(
        num_scalar_prefetch=0,
        grid=(B // bt,),
        in_specs=[
            pl.BlockSpec((M, Cin), lambda g: (g, 0)),    # x (batch chunk)
            const_spec((Cin, Cout)),                     # win
            const_spec((1, Cout)),                       # bin
            const_spec((nb, Cout, Cout)),                # w0a (older tap, BN folded)
            const_spec((nb, Cout, Cout)),                # w0b (current tap, BN folded)
            const_spec((nb, 1, Cout)),                   # t0 (conv bias + BN shift)
            const_spec((nb, Cout, Cout)),                # w1a
            const_spec((nb, Cout, Cout)),                # w1b
            const_spec((nb, 1, Cout)),                   # t1
            const_spec((nb, Cout, Cout)),                # wo (+ identity)
            const_spec((nb, 1, Cout)),                   # bo
        ],
        out_specs=pl.BlockSpec((M, Cout), lambda g: (g, 0)),
    )

    out_seq = pl.pallas_call(
        _make_kernel(T, bt, Cout, DILATIONS),
        out_shape=jax.ShapeDtypeStruct((B * T, Cout), jnp.float32),
        grid_spec=grid_spec,
        compiler_params=pltpu.CompilerParams(
            dimension_semantics=("parallel",),
            vmem_limit_bytes=vmem_limit),
    )(x, kp["win"], kp["bin"], kp["w0a"], kp["w0b"], kp["t0"],
      kp["w1a"], kp["w1b"], kp["t1"], kp["wo"], kp["bo"])

    # return_sequences=False: keep only the last time step of each batch.
    return out_seq.reshape(B, T, Cout)[:, -1, :]


# -------------------------- parameter construction -------------------------

def init_raw_params(key, in_channels, out_channels):
    """Deterministic params in PyTorch layouts (O, I, K) etc."""
    nb = len(DILATIONS)
    ks = iter(jax.random.split(key, 64))
    n = lambda shape, s=0.1: s * jax.random.normal(next(ks), shape, jnp.float32)
    raw = {
        "win_w": n((out_channels, in_channels, 1)),
        "win_b": n((out_channels,)),
        "w0": n((nb, out_channels, out_channels, 2)),
        "b0": n((nb, out_channels)),
        "g0": 1.0 + n((nb, out_channels)),
        "be0": n((nb, out_channels)),
        "m0": n((nb, out_channels)),
        "v0": 0.5 + jnp.abs(n((nb, out_channels))),
        "w1": n((nb, out_channels, out_channels, 2)),
        "b1": n((nb, out_channels)),
        "g1": 1.0 + n((nb, out_channels)),
        "be1": n((nb, out_channels)),
        "m1": n((nb, out_channels)),
        "v1": 0.5 + jnp.abs(n((nb, out_channels))),
        "wo": n((nb, out_channels, out_channels, 1)),
        "bo": n((nb, out_channels)),
    }
    return raw


def to_kernel_params(raw):
    """Split the two conv taps into (C,C) halves, fold eval BN + bias + residual I."""
    nb, C = raw["b0"].shape

    s0 = raw["g0"] / jnp.sqrt(raw["v0"] + EPS)          # (nb, C) BN scale
    sh0 = raw["be0"] - raw["m0"] * s0                   # (nb, C) BN shift
    s1 = raw["g1"] / jnp.sqrt(raw["v1"] + EPS)
    sh1 = raw["be1"] - raw["m1"] * s1

    # PyTorch conv weight (nb, O, I, K=2):
    #   tap k=0 multiplies x[t - d]  (shifted / rolled rows)
    #   tap k=1 multiplies x[t]      (current rows)
    # -> per-tap (nb, I, O) operands, BN scale folded into the output channels.
    w0a = jnp.transpose(raw["w0"][:, :, :, 0], (0, 2, 1)) * s0[:, None, :]
    w0b = jnp.transpose(raw["w0"][:, :, :, 1], (0, 2, 1)) * s0[:, None, :]
    w1a = jnp.transpose(raw["w1"][:, :, :, 0], (0, 2, 1)) * s1[:, None, :]
    w1b = jnp.transpose(raw["w1"][:, :, :, 1], (0, 2, 1)) * s1[:, None, :]

    # Conv bias + BN shift as one additive term.
    t0 = raw["b0"] * s0 + sh0
    t1 = raw["b1"] * s1 + sh1

    # Residual 1x1: h_next = c + c @ Wo^T + bo  ==  c @ (Wo^T + I) + bo.
    wo = jnp.transpose(raw["wo"][:, :, :, 0], (0, 2, 1)) + jnp.eye(C, dtype=jnp.float32)[None]

    return {
        "win": raw["win_w"][:, :, 0].T,                 # (Cin, C)
        "bin": raw["win_b"][None, :],                   # (1, C)
        "w0a": w0a, "w0b": w0b, "t0": t0[:, None, :],
        "w1a": w1a, "w1b": w1b, "t1": t1[:, None, :],
        "wo": wo, "bo": raw["bo"][:, None, :],
    }


# ----------------------- independent JAX reference -------------------------

def _conv1d(x, w, b, dilation=1):
    """Causal dilated conv1d. x: (B,C,T), w: (O,I,K)."""
    k = w.shape[-1]
    pad = (k - 1) * dilation
    y = lax.conv_general_dilated(
        x, w, window_strides=(1,), padding=[(pad, 0)],
        rhs_dilation=(dilation,), dimension_numbers=("NCH", "OIH", "NCH"))
    return y + b[None, :, None]


def _bn_eval(x, g, be, m, v):
    return g[None, :, None] * (x - m[None, :, None]) / jnp.sqrt(v[None, :, None] + EPS) \
        + be[None, :, None]


def reference_forward(x, rp):
    h = _conv1d(x, rp["win_w"], rp["win_b"], dilation=1)
    shortcuts = []
    for blk, d in enumerate(DILATIONS):
        a = _conv1d(h, rp["w0"][blk], rp["b0"][blk], dilation=d)
        a = jnp.maximum(_bn_eval(a, rp["g0"][blk], rp["be0"][blk], rp["m0"][blk], rp["v0"][blk]), 0.0)
        c = _conv1d(a, rp["w1"][blk], rp["b1"][blk], dilation=d)
        c = jnp.maximum(_bn_eval(c, rp["g1"][blk], rp["be1"][blk], rp["m1"][blk], rp["v1"][blk]), 0.0)
        h = c + _conv1d(c, rp["wo"][blk], rp["bo"][blk], dilation=1)
        shortcuts.append(c)
    out = sum(shortcuts)
    return out[:, :, -1]


# --------------------------------- main -------------------------------------

if __name__ == "__main__":
    B, Cin, Cout, T = 2, 4, 64, 64   # T=64 so the largest dilation (32) is exercised
    key = jax.random.PRNGKey(0)
    kx, kparams_key = jax.random.split(key)
    x = jax.random.normal(kx, (B, Cin, T), jnp.float32)   # PyTorch NCT layout

    raw = init_raw_params(kparams_key, Cin, Cout)
    kparams = to_kernel_params(raw)

    out = jax.block_until_ready(temporal_conv_layer(x, kparams))
    ref = jax.block_until_ready(reference_forward(x, raw))

    assert out.shape == (B, Cout), out.shape
    assert jnp.allclose(out, ref, atol=1e-3, rtol=1e-3), \
        f"max abs err {jnp.max(jnp.abs(out - ref))}"
    print("KERNEL_OK")
</pallas_src>

<mosaic_0001>
module attributes {stable_mosaic.version = 11 : i64} {
  func.func @kernel(%arg0: i32, %arg1: memref<128x4xf32, #tpu.memory_space<vmem>>, %arg2: memref<4x64xf32, #tpu.memory_space<vmem>>, %arg3: memref<1x64xf32, #tpu.memory_space<vmem>>, %arg4: memref<6x64x64xf32, #tpu.memory_space<vmem>>, %arg5: memref<6x64x64xf32, #tpu.memory_space<vmem>>, %arg6: memref<6x1x64xf32, #tpu.memory_space<vmem>>, %arg7: memref<6x64x64xf32, #tpu.memory_space<vmem>>, %arg8: memref<6x64x64xf32, #tpu.memory_space<vmem>>, %arg9: memref<6x1x64xf32, #tpu.memory_space<vmem>>, %arg10: memref<6x64x64xf32, #tpu.memory_space<vmem>>, %arg11: memref<6x1x64xf32, #tpu.memory_space<vmem>>, %arg12: memref<128x64xf32, #tpu.memory_space<vmem>>) attributes {dimension_semantics = [#tpu.dimension_semantics<parallel>], iteration_bounds = array<i64: 1>, scalar_prefetch = 0 : i64, scratch_operands = 0 : i64, tpu.core_type = #tpu.core_type<tc>, window_params = [{transform_indices = @transform_0, window_bounds = array<i64: 128, 4>}, {pipeline_mode = #tpu.pipeline_mode<synchronous>, transform_indices = @transform_1, window_bounds = array<i64: 4, 64>}, {pipeline_mode = #tpu.pipeline_mode<synchronous>, transform_indices = @transform_2, window_bounds = array<i64: 1, 64>}, {pipeline_mode = #tpu.pipeline_mode<synchronous>, transform_indices = @transform_3, window_bounds = array<i64: 6, 64, 64>}, {pipeline_mode = #tpu.pipeline_mode<synchronous>, transform_indices = @transform_4, window_bounds = array<i64: 6, 64, 64>}, {pipeline_mode = #tpu.pipeline_mode<synchronous>, transform_indices = @transform_5, window_bounds = array<i64: 6, 1, 64>}, {pipeline_mode = #tpu.pipeline_mode<synchronous>, transform_indices = @transform_6, window_bounds = array<i64: 6, 64, 64>}, {pipeline_mode = #tpu.pipeline_mode<synchronous>, transform_indices = @transform_7, window_bounds = array<i64: 6, 64, 64>}, {pipeline_mode = #tpu.pipeline_mode<synchronous>, transform_indices = @transform_8, window_bounds = array<i64: 6, 1, 64>}, {pipeline_mode = #tpu.pipeline_mode<synchronous>, transform_indices = @transform_9, window_bounds = array<i64: 6, 64, 64>}, {pipeline_mode = #tpu.pipeline_mode<synchronous>, transform_indices = @transform_10, window_bounds = array<i64: 6, 1, 64>}, {transform_indices = @transform_11, window_bounds = array<i64: 128, 64>}]} {
    %c0 = arith.constant 0 : index
    %c0_0 = arith.constant 0 : index
    %0 = vector.load %arg1[%c0, %c0_0] : memref<128x4xf32, #tpu.memory_space<vmem>>, vector<128x4xf32>
    %c0_1 = arith.constant 0 : index
    %c0_2 = arith.constant 0 : index
    %1 = vector.load %arg2[%c0_1, %c0_2] : memref<4x64xf32, #tpu.memory_space<vmem>>, vector<4x64xf32>
    %cst = arith.constant dense<0.000000e+00> : vector<128x64xf32>
    %2 = tpu.matmul %0, %1, %cst {dimension_numbers = #tpu.dot_dimension_numbers<[1], [0], [0], [1], [0, 0, 1, 1], [], []>} : vector<128x4xf32>, vector<4x64xf32>, vector<128x64xf32> -> vector<128x64xf32>
    %c0_3 = arith.constant 0 : index
    %c0_4 = arith.constant 0 : index
    %3 = vector.load %arg3[%c0_3, %c0_4] : memref<1x64xf32, #tpu.memory_space<vmem>>, vector<1x64xf32>
    %4 = vector.broadcast %3 : vector<1x64xf32> to vector<128x64xf32>
    %5 = arith.addf %2, %4 : vector<128x64xf32>
    %6 = tpu.iota {dimensions = array<i32: 0>} : vector<128x1xi32>
    %c63_i32 = arith.constant 63 : i32
    %7 = vector.broadcast %c63_i32 : i32 to vector<128x1xi32>
    %8 = arith.andi %6, %7 : vector<128x1xi32>
    %c1_i32 = arith.constant 1 : i32
    %9 = vector.broadcast %c1_i32 : i32 to vector<128x1xi32>
    %10 = arith.cmpi sge, %8, %9 : vector<128x1xi32>
    %11 = arith.extui %10 : vector<128x1xi1> to vector<128x1xi32>
    %12 = arith.sitofp %11 : vector<128x1xi32> to vector<128x1xf32>
    %c2_i32 = arith.constant 2 : i32
    %13 = vector.broadcast %c2_i32 : i32 to vector<128x1xi32>
    %14 = arith.cmpi sge, %8, %13 : vector<128x1xi32>
    %15 = arith.extui %14 : vector<128x1xi1> to vector<128x1xi32>
    %16 = arith.sitofp %15 : vector<128x1xi32> to vector<128x1xf32>
    %c4_i32 = arith.constant 4 : i32
    %17 = vector.broadcast %c4_i32 : i32 to vector<128x1xi32>
    %18 = arith.cmpi sge, %8, %17 : vector<128x1xi32>
    %19 = arith.extui %18 : vector<128x1xi1> to vector<128x1xi32>
    %20 = arith.sitofp %19 : vector<128x1xi32> to vector<128x1xf32>
    %c8_i32 = arith.constant 8 : i32
    %21 = vector.broadcast %c8_i32 : i32 to vector<128x1xi32>
    %22 = arith.cmpi sge, %8, %21 : vector<128x1xi32>
    %23 = arith.extui %22 : vector<128x1xi1> to vector<128x1xi32>
    %24 = arith.sitofp %23 : vector<128x1xi32> to vector<128x1xf32>
    %c16_i32 = arith.constant 16 : i32
    %25 = vector.broadcast %c16_i32 : i32 to vector<128x1xi32>
    %26 = arith.cmpi sge, %8, %25 : vector<128x1xi32>
    %27 = arith.extui %26 : vector<128x1xi1> to vector<128x1xi32>
    %28 = arith.sitofp %27 : vector<128x1xi32> to vector<128x1xf32>
    %c32_i32 = arith.constant 32 : i32
    %29 = vector.broadcast %c32_i32 : i32 to vector<128x1xi32>
    %30 = arith.cmpi sge, %8, %29 : vector<128x1xi32>
    %31 = arith.extui %30 : vector<128x1xi1> to vector<128x1xi32>
    %32 = arith.sitofp %31 : vector<128x1xi32> to vector<128x1xf32>
    %cst_5 = arith.constant 0.000000e+00 : f32
    %33 = vector.broadcast %cst_5 : f32 to vector<128x64xf32>
    %c1_i32_6 = arith.constant 1 : i32
    %34 = tpu.dynamic_rotate %5 by %c1_i32_6 dim 0 : vector<128x64xf32>, i32 -> vector<128x64xf32>
    %35 = vector.broadcast %12 : vector<128x1xf32> to vector<128x64xf32>
    %36 = arith.mulf %34, %35 : vector<128x64xf32>
    %c0_7 = arith.constant 0 : index
    %c0_8 = arith.constant 0 : index
    %c0_9 = arith.constant 0 : index
    %37 = vector.load %arg4[%c0_7, %c0_8, %c0_9] : memref<6x64x64xf32, #tpu.memory_space<vmem>>, vector<1x64x64xf32>
    %38 = vector.shape_cast %37 : vector<1x64x64xf32> to vector<64x64xf32>
    %cst_10 = arith.constant dense<0.000000e+00> : vector<128x64xf32>
    %39 = tpu.matmul %36, %38, %cst_10 {dimension_numbers = #tpu.dot_dimension_numbers<[1], [0], [0], [1], [0, 0, 1, 1], [], []>} : vector<128x64xf32>, vector<64x64xf32>, vector<128x64xf32> -> vector<128x64xf32>
    %c0_11 = arith.constant 0 : index
    %c0_12 = arith.constant 0 : index
    %c0_13 = arith.constant 0 : index
    %40 = vector.load %arg5[%c0_11, %c0_12, %c0_13] : memref<6x64x64xf32, #tpu.memory_space<vmem>>, vector<1x64x64xf32>
    %41 = vector.shape_cast %40 : vector<1x64x64xf32> to vector<64x64xf32>
    %cst_14 = arith.constant dense<0.000000e+00> : vector<128x64xf32>
    %42 = tpu.matmul %5, %41, %cst_14 {dimension_numbers = #tpu.dot_dimension_numbers<[1], [0], [0], [1], [0, 0, 1, 1], [], []>} : vector<128x64xf32>, vector<64x64xf32>, vector<128x64xf32> -> vector<128x64xf32>
    %43 = arith.addf %39, %42 : vector<128x64xf32>
    %c0_15 = arith.constant 0 : index
    %c0_16 = arith.constant 0 : index
    %c0_17 = arith.constant 0 : index
    %44 = vector.load %arg6[%c0_15, %c0_16, %c0_17] : memref<6x1x64xf32, #tpu.memory_space<vmem>>, vector<1x1x64xf32>
    %45 = vector.shape_cast %44 : vector<1x1x64xf32> to vector<1x64xf32>
    %46 = vector.broadcast %45 : vector<1x64xf32> to vector<128x64xf32>
    %47 = arith.addf %43, %46 : vector<128x64xf32>
    %cst_18 = arith.constant 0.000000e+00 : f32
    %48 = vector.broadcast %cst_18 : f32 to vector<128x64xf32>
    %49 = arith.maximumf %47, %48 : vector<128x64xf32>
    %c1_i32_19 = arith.constant 1 : i32
    %50 = tpu.dynamic_rotate %49 by %c1_i32_19 dim 0 : vector<128x64xf32>, i32 -> vector<128x64xf32>
    %51 = vector.broadcast %12 : vector<128x1xf32> to vector<128x64xf32>
    %52 = arith.mulf %50, %51 : vector<128x64xf32>
    %c0_20 = arith.constant 0 : index
    %c0_21 = arith.constant 0 : index
    %c0_22 = arith.constant 0 : index
    %53 = vector.load %arg7[%c0_20, %c0_21, %c0_22] : memref<6x64x64xf32, #tpu.memory_space<vmem>>, vector<1x64x64xf32>
    %54 = vector.shape_cast %53 : vector<1x64x64xf32> to vector<64x64xf32>
    %cst_23 = arith.constant dense<0.000000e+00> : vector<128x64xf32>
    %55 = tpu.matmul %52, %54, %cst_23 {dimension_numbers = #tpu.dot_dimension_numbers<[1], [0], [0], [1], [0, 0, 1, 1], [], []>} : vector<128x64xf32>, vector<64x64xf32>, vector<128x64xf32> -> vector<128x64xf32>
    %c0_24 = arith.constant 0 : index
    %c0_25 = arith.constant 0 : index
    %c0_26 = arith.constant 0 : index
    %56 = vector.load %arg8[%c0_24, %c0_25, %c0_26] : memref<6x64x64xf32, #tpu.memory_space<vmem>>, vector<1x64x64xf32>
    %57 = vector.shape_cast %56 : vector<1x64x64xf32> to vector<64x64xf32>
    %cst_27 = arith.constant dense<0.000000e+00> : vector<128x64xf32>
    %58 = tpu.matmul %49, %57, %cst_27 {dimension_numbers = #tpu.dot_dimension_numbers<[1], [0], [0], [1], [0, 0, 1, 1], [], []>} : vector<128x64xf32>, vector<64x64xf32>, vector<128x64xf32> -> vector<128x64xf32>
    %59 = arith.addf %55, %58 : vector<128x64xf32>
    %c0_28 = arith.constant 0 : index
    %c0_29 = arith.constant 0 : index
    %c0_30 = arith.constant 0 : index
    %60 = vector.load %arg9[%c0_28, %c0_29, %c0_30] : memref<6x1x64xf32, #tpu.memory_space<vmem>>, vector<1x1x64xf32>
    %61 = vector.shape_cast %60 : vector<1x1x64xf32> to vector<1x64xf32>
    %62 = vector.broadcast %61 : vector<1x64xf32> to vector<128x64xf32>
    %63 = arith.addf %59, %62 : vector<128x64xf32>
    %cst_31 = arith.constant 0.000000e+00 : f32
    %64 = vector.broadcast %cst_31 : f32 to vector<128x64xf32>
    %65 = arith.maximumf %63, %64 : vector<128x64xf32>
    %66 = arith.addf %33, %65 : vector<128x64xf32>
    %c0_32 = arith.constant 0 : index
    %c0_33 = arith.constant 0 : index
    %c0_34 = arith.constant 0 : index
    %67 = vector.load %arg10[%c0_32, %c0_33, %c0_34] : memref<6x64x64xf32, #tpu.memory_space<vmem>>, vector<1x64x64xf32>
    %68 = vector.shape_cast %67 : vector<1x64x64xf32> to vector<64x64xf32>
    %cst_35 = arith.constant dense<0.000000e+00> : vector<128x64xf32>
    %69 = tpu.matmul %65, %68, %cst_35 {dimension_numbers = #tpu.dot_dimension_numbers<[1], [0], [0], [1], [0, 0, 1, 1], [], []>} : vector<128x64xf32>, vector<64x64xf32>, vector<128x64xf32> -> vector<128x64xf32>
    %c0_36 = arith.constant 0 : index
    %c0_37 = arith.constant 0 : index
    %c0_38 = arith.constant 0 : index
    %70 = vector.load %arg11[%c0_36, %c0_37, %c0_38] : memref<6x1x64xf32, #tpu.memory_space<vmem>>, vector<1x1x64xf32>
    %71 = vector.shape_cast %70 : vector<1x1x64xf32> to vector<1x64xf32>
    %72 = vector.broadcast %71 : vector<1x64xf32> to vector<128x64xf32>
    %73 = arith.addf %69, %72 : vector<128x64xf32>
    %c2_i32_39 = arith.constant 2 : i32
    %74 = tpu.dynamic_rotate %73 by %c2_i32_39 dim 0 : vector<128x64xf32>, i32 -> vector<128x64xf32>
    %75 = vector.broadcast %16 : vector<128x1xf32> to vector<128x64xf32>
    %76 = arith.mulf %74, %75 : vector<128x64xf32>
    %c1 = arith.constant 1 : index
    %c0_40 = arith.constant 0 : index
    %c0_41 = arith.constant 0 : index
    %77 = vector.load %arg4[%c1, %c0_40, %c0_41] : memref<6x64x64xf32, #tpu.memory_space<vmem>>, vector<1x64x64xf32>
    %78 = vector.shape_cast %77 : vector<1x64x64xf32> to vector<64x64xf32>
    %cst_42 = arith.constant dense<0.000000e+00> : vector<128x64xf32>
    %79 = tpu.matmul %76, %78, %cst_42 {dimension_numbers = #tpu.dot_dimension_numbers<[1], [0], [0], [1], [0, 0, 1, 1], [], []>} : vector<128x64xf32>, vector<64x64xf32>, vector<128x64xf32> -> vector<128x64xf32>
    %c1_43 = arith.constant 1 : index
    %c0_44 = arith.constant 0 : index
    %c0_45 = arith.constant 0 : index
    %80 = vector.load %arg5[%c1_43, %c0_44, %c0_45] : memref<6x64x64xf32, #tpu.memory_space<vmem>>, vector<1x64x64xf32>
    %81 = vector.shape_cast %80 : vector<1x64x64xf32> to vector<64x64xf32>
    %cst_46 = arith.constant dense<0.000000e+00> : vector<128x64xf32>
    %82 = tpu.matmul %73, %81, %cst_46 {dimension_numbers = #tpu.dot_dimension_numbers<[1], [0], [0], [1], [0, 0, 1, 1], [], []>} : vector<128x64xf32>, vector<64x64xf32>, vector<128x64xf32> -> vector<128x64xf32>
    %83 = arith.addf %79, %82 : vector<128x64xf32>
    %c1_47 = arith.constant 1 : index
    %c0_48 = arith.constant 0 : index
    %c0_49 = arith.constant 0 : index
    %84 = vector.load %arg6[%c1_47, %c0_48, %c0_49] : memref<6x1x64xf32, #tpu.memory_space<vmem>>, vector<1x1x64xf32>
    %85 = vector.shape_cast %84 : vector<1x1x64xf32> to vector<1x64xf32>
    %86 = vector.broadcast %85 : vector<1x64xf32> to vector<128x64xf32>
    %87 = arith.addf %83, %86 : vector<128x64xf32>
    %cst_50 = arith.constant 0.000000e+00 : f32
    %88 = vector.broadcast %cst_50 : f32 to vector<128x64xf32>
    %89 = arith.maximumf %87, %88 : vector<128x64xf32>
    %c2_i32_51 = arith.constant 2 : i32
    %90 = tpu.dynamic_rotate %89 by %c2_i32_51 dim 0 : vector<128x64xf32>, i32 -> vector<128x64xf32>
    %91 = vector.broadcast %16 : vector<128x1xf32> to vector<128x64xf32>
    %92 = arith.mulf %90, %91 : vector<128x64xf32>
    %c1_52 = arith.constant 1 : index
    %c0_53 = arith.constant 0 : index
    %c0_54 = arith.constant 0 : index
    %93 = vector.load %arg7[%c1_52, %c0_53, %c0_54] : memref<6x64x64xf32, #tpu.memory_space<vmem>>, vector<1x64x64xf32>
    %94 = vector.shape_cast %93 : vector<1x64x64xf32> to vector<64x64xf32>
    %cst_55 = arith.constant dense<0.000000e+00> : vector<128x64xf32>
    %95 = tpu.matmul %92, %94, %cst_55 {dimension_numbers = #tpu.dot_dimension_numbers<[1], [0], [0], [1], [0, 0, 1, 1], [], []>} : vector<128x64xf32>, vector<64x64xf32>, vector<128x64xf32> -> vector<128x64xf32>
    %c1_56 = arith.constant 1 : index
    %c0_57 = arith.constant 0 : index
    %c0_58 = arith.constant 0 : index
    %96 = vector.load %arg8[%c1_56, %c0_57, %c0_58] : memref<6x64x64xf32, #tpu.memory_space<vmem>>, vector<1x64x64xf32>
    %97 = vector.shape_cast %96 : vector<1x64x64xf32> to vector<64x64xf32>
    %cst_59 = arith.constant dense<0.000000e+00> : vector<128x64xf32>
    %98 = tpu.matmul %89, %97, %cst_59 {dimension_numbers = #tpu.dot_dimension_numbers<[1], [0], [0], [1], [0, 0, 1, 1], [], []>} : vector<128x64xf32>, vector<64x64xf32>, vector<128x64xf32> -> vector<128x64xf32>
    %99 = arith.addf %95, %98 : vector<128x64xf32>
    %c1_60 = arith.constant 1 : index
    %c0_61 = arith.constant 0 : index
    %c0_62 = arith.constant 0 : index
    %100 = vector.load %arg9[%c1_60, %c0_61, %c0_62] : memref<6x1x64xf32, #tpu.memory_space<vmem>>, vector<1x1x64xf32>
    %101 = vector.shape_cast %100 : vector<1x1x64xf32> to vector<1x64xf32>
    %102 = vector.broadcast %101 : vector<1x64xf32> to vector<128x64xf32>
    %103 = arith.addf %99, %102 : vector<128x64xf32>
    %cst_63 = arith.constant 0.000000e+00 : f32
    %104 = vector.broadcast %cst_63 : f32 to vector<128x64xf32>
    %105 = arith.maximumf %103, %104 : vector<128x64xf32>
    %106 = arith.addf %66, %105 : vector<128x64xf32>
    %c1_64 = arith.constant 1 : index
    %c0_65 = arith.constant 0 : index
    %c0_66 = arith.constant 0 : index
    %107 = vector.load %arg10[%c1_64, %c0_65, %c0_66] : memref<6x64x64xf32, #tpu.memory_space<vmem>>, vector<1x64x64xf32>
    %108 = vector.shape_cast %107 : vector<1x64x64xf32> to vector<64x64xf32>
    %cst_67 = arith.constant dense<0.000000e+00> : vector<128x64xf32>
    %109 = tpu.matmul %105, %108, %cst_67 {dimension_numbers = #tpu.dot_dimension_numbers<[1], [0], [0], [1], [0, 0, 1, 1], [], []>} : vector<128x64xf32>, vector<64x64xf32>, vector<128x64xf32> -> vector<128x64xf32>
    %c1_68 = arith.constant 1 : index
    %c0_69 = arith.constant 0 : index
    %c0_70 = arith.constant 0 : index
    %110 = vector.load %arg11[%c1_68, %c0_69, %c0_70] : memref<6x1x64xf32, #tpu.memory_space<vmem>>, vector<1x1x64xf32>
    %111 = vector.shape_cast %110 : vector<1x1x64xf32> to vector<1x64xf32>
    %112 = vector.broadcast %111 : vector<1x64xf32> to vector<128x64xf32>
    %113 = arith.addf %109, %112 : vector<128x64xf32>
    %c4_i32_71 = arith.constant 4 : i32
    %114 = tpu.dynamic_rotate %113 by %c4_i32_71 dim 0 : vector<128x64xf32>, i32 -> vector<128x64xf32>
    %115 = vector.broadcast %20 : vector<128x1xf32> to vector<128x64xf32>
    %116 = arith.mulf %114, %115 : vector<128x64xf32>
    %c2 = arith.constant 2 : index
    %c0_72 = arith.constant 0 : index
    %c0_73 = arith.constant 0 : index
    %117 = vector.load %arg4[%c2, %c0_72, %c0_73] : memref<6x64x64xf32, #tpu.memory_space<vmem>>, vector<1x64x64xf32>
    %118 = vector.shape_cast %117 : vector<1x64x64xf32> to vector<64x64xf32>
    %cst_74 = arith.constant dense<0.000000e+00> : vector<128x64xf32>
    %119 = tpu.matmul %116, %118, %cst_74 {dimension_numbers = #tpu.dot_dimension_numbers<[1], [0], [0], [1], [0, 0, 1, 1], [], []>} : vector<128x64xf32>, vector<64x64xf32>, vector<128x64xf32> -> vector<128x64xf32>
    %c2_75 = arith.constant 2 : index
    %c0_76 = arith.constant 0 : index
    %c0_77 = arith.constant 0 : index
    %120 = vector.load %arg5[%c2_75, %c0_76, %c0_77] : memref<6x64x64xf32, #tpu.memory_space<vmem>>, vector<1x64x64xf32>
    %121 = vector.shape_cast %120 : vector<1x64x64xf32> to vector<64x64xf32>
    %cst_78 = arith.constant dense<0.000000e+00> : vector<128x64xf32>
    %122 = tpu.matmul %113, %121, %cst_78 {dimension_numbers = #tpu.dot_dimension_numbers<[1], [0], [0], [1], [0, 0, 1, 1], [], []>} : vector<128x64xf32>, vector<64x64xf32>, vector<128x64xf32> -> vector<128x64xf32>
    %123 = arith.addf %119, %122 : vector<128x64xf32>
    %c2_79 = arith.constant 2 : index
    %c0_80 = arith.constant 0 : index
    %c0_81 = arith.constant 0 : index
    %124 = vector.load %arg6[%c2_79, %c0_80, %c0_81] : memref<6x1x64xf32, #tpu.memory_space<vmem>>, vector<1x1x64xf32>
    %125 = vector.shape_cast %124 : vector<1x1x64xf32> to vector<1x64xf32>
    %126 = vector.broadcast %125 : vector<1x64xf32> to vector<128x64xf32>
    %127 = arith.addf %123, %126 : vector<128x64xf32>
    %cst_82 = arith.constant 0.000000e+00 : f32
    %128 = vector.broadcast %cst_82 : f32 to vector<128x64xf32>
    %129 = arith.maximumf %127, %128 : vector<128x64xf32>
    %c4_i32_83 = arith.constant 4 : i32
    %130 = tpu.dynamic_rotate %129 by %c4_i32_83 dim 0 : vector<128x64xf32>, i32 -> vector<128x64xf32>
    %131 = vector.broadcast %20 : vector<128x1xf32> to vector<128x64xf32>
    %132 = arith.mulf %130, %131 : vector<128x64xf32>
    %c2_84 = arith.constant 2 : index
    %c0_85 = arith.constant 0 : index
    %c0_86 = arith.constant 0 : index
    %133 = vector.load %arg7[%c2_84, %c0_85, %c0_86] : memref<6x64x64xf32, #tpu.memory_space<vmem>>, vector<1x64x64xf32>
    %134 = vector.shape_cast %133 : vector<1x64x64xf32> to vector<64x64xf32>
    %cst_87 = arith.constant dense<0.000000e+00> : vector<128x64xf32>
    %135 = tpu.matmul %132, %134, %cst_87 {dimension_numbers = #tpu.dot_dimension_numbers<[1], [0], [0], [1], [0, 0, 1, 1], [], []>} : vector<128x64xf32>, vector<64x64xf32>, vector<128x64xf32> -> vector<128x64xf32>
    %c2_88 = arith.constant 2 : index
    %c0_89 = arith.constant 0 : index
    %c0_90 = arith.constant 0 : index
    %136 = vector.load %arg8[%c2_88, %c0_89, %c0_90] : memref<6x64x64xf32, #tpu.memory_space<vmem>>, vector<1x64x64xf32>
    %137 = vector.shape_cast %136 : vector<1x64x64xf32> to vector<64x64xf32>
    %cst_91 = arith.constant dense<0.000000e+00> : vector<128x64xf32>
    %138 = tpu.matmul %129, %137, %cst_91 {dimension_numbers = #tpu.dot_dimension_numbers<[1], [0], [0], [1], [0, 0, 1, 1], [], []>} : vector<128x64xf32>, vector<64x64xf32>, vector<128x64xf32> -> vector<128x64xf32>
    %139 = arith.addf %135, %138 : vector<128x64xf32>
    %c2_92 = arith.constant 2 : index
    %c0_93 = arith.constant 0 : index
    %c0_94 = arith.constant 0 : index
    %140 = vector.load %arg9[%c2_92, %c0_93, %c0_94] : memref<6x1x64xf32, #tpu.memory_space<vmem>>, vector<1x1x64xf32>
    %141 = vector.shape_cast %140 : vector<1x1x64xf32> to vector<1x64xf32>
    %142 = vector.broadcast %141 : vector<1x64xf32> to vector<128x64xf32>
    %143 = arith.addf %139, %142 : vector<128x64xf32>
    %cst_95 = arith.constant 0.000000e+00 : f32
    %144 = vector.broadcast %cst_95 : f32 to vector<128x64xf32>
    %145 = arith.maximumf %143, %144 : vector<128x64xf32>
    %146 = arith.addf %106, %145 : vector<128x64xf32>
    %c2_96 = arith.constant 2 : index
    %c0_97 = arith.constant 0 : index
    %c0_98 = arith.constant 0 : index
    %147 = vector.load %arg10[%c2_96, %c0_97, %c0_98] : memref<6x64x64xf32, #tpu.memory_space<vmem>>, vector<1x64x64xf32>
    %148 = vector.shape_cast %147 : vector<1x64x64xf32> to vector<64x64xf32>
    %cst_99 = arith.constant dense<0.000000e+00> : vector<128x64xf32>
    %149 = tpu.matmul %145, %148, %cst_99 {dimension_numbers = #tpu.dot_dimension_numbers<[1], [0], [0], [1], [0, 0, 1, 1], [], []>} : vector<128x64xf32>, vector<64x64xf32>, vector<128x64xf32> -> vector<128x64xf32>
    %c2_100 = arith.constant 2 : index
    %c0_101 = arith.constant 0 : index
    %c0_102 = arith.constant 0 : index
    %150 = vector.load %arg11[%c2_100, %c0_101, %c0_102] : memref<6x1x64xf32, #tpu.memory_space<vmem>>, vector<1x1x64xf32>
    %151 = vector.shape_cast %150 : vector<1x1x64xf32> to vector<1x64xf32>
    %152 = vector.broadcast %151 : vector<1x64xf32> to vector<128x64xf32>
    %153 = arith.addf %149, %152 : vector<128x64xf32>
    %c8_i32_103 = arith.constant 8 : i32
    %154 = tpu.dynamic_rotate %153 by %c8_i32_103 dim 0 : vector<128x64xf32>, i32 -> vector<128x64xf32>
    %155 = vector.broadcast %24 : vector<128x1xf32> to vector<128x64xf32>
    %156 = arith.mulf %154, %155 : vector<128x64xf32>
    %c3 = arith.constant 3 : index
    %c0_104 = arith.constant 0 : index
    %c0_105 = arith.constant 0 : index
    %157 = vector.load %arg4[%c3, %c0_104, %c0_105] : memref<6x64x64xf32, #tpu.memory_space<vmem>>, vector<1x64x64xf32>
    %158 = vector.shape_cast %157 : vector<1x64x64xf32> to vector<64x64xf32>
    %cst_106 = arith.constant dense<0.000000e+00> : vector<128x64xf32>
    %159 = tpu.matmul %156, %158, %cst_106 {dimension_numbers = #tpu.dot_dimension_numbers<[1], [0], [0], [1], [0, 0, 1, 1], [], []>} : vector<128x64xf32>, vector<64x64xf32>, vector<128x64xf32> -> vector<128x64xf32>
    %c3_107 = arith.constant 3 : index
    %c0_108 = arith.constant 0 : index
    %c0_109 = arith.constant 0 : index
    %160 = vector.load %arg5[%c3_107, %c0_108, %c0_109] : memref<6x64x64xf32, #tpu.memory_space<vmem>>, vector<1x64x64xf32>
    %161 = vector.shape_cast %160 : vector<1x64x64xf32> to vector<64x64xf32>
    %cst_110 = arith.constant dense<0.000000e+00> : vector<128x64xf32>
    %162 = tpu.matmul %153, %161, %cst_110 {dimension_numbers = #tpu.dot_dimension_numbers<[1], [0], [0], [1], [0, 0, 1, 1], [], []>} : vector<128x64xf32>, vector<64x64xf32>, vector<128x64xf32> -> vector<128x64xf32>
    %163 = arith.addf %159, %162 : vector<128x64xf32>
    %c3_111 = arith.constant 3 : index
    %c0_112 = arith.constant 0 : index
    %c0_113 = arith.constant 0 : index
    %164 = vector.load %arg6[%c3_111, %c0_112, %c0_113] : memref<6x1x64xf32, #tpu.memory_space<vmem>>, vector<1x1x64xf32>
    %165 = vector.shape_cast %164 : vector<1x1x64xf32> to vector<1x64xf32>
    %166 = vector.broadcast %165 : vector<1x64xf32> to vector<128x64xf32>
    %167 = arith.addf %163, %166 : vector<128x64xf32>
    %cst_114 = arith.constant 0.000000e+00 : f32
    %168 = vector.broadcast %cst_114 : f32 to vector<128x64xf32>
    %169 = arith.maximumf %167, %168 : vector<128x64xf32>
    %c8_i32_115 = arith.constant 8 : i32
    %170 = tpu.dynamic_rotate %169 by %c8_i32_115 dim 0 : vector<128x64xf32>, i32 -> vector<128x64xf32>
    %171 = vector.broadcast %24 : vector<128x1xf32> to vector<128x64xf32>
    %172 = arith.mulf %170, %171 : vector<128x64xf32>
    %c3_116 = arith.constant 3 : index
    %c0_117 = arith.constant 0 : index
    %c0_118 = arith.constant 0 : index
    %173 = vector.load %arg7[%c3_116, %c0_117, %c0_118] : memref<6x64x64xf32, #tpu.memory_space<vmem>>, vector<1x64x64xf32>
    %174 = vector.shape_cast %173 : vector<1x64x64xf32> to vector<64x64xf32>
    %cst_119 = arith.constant dense<0.000000e+00> : vector<128x64xf32>
    %175 = tpu.matmul %172, %174, %cst_119 {dimension_numbers = #tpu.dot_dimension_numbers<[1], [0], [0], [1], [0, 0, 1, 1], [], []>} : vector<128x64xf32>, vector<64x64xf32>, vector<128x64xf32> -> vector<128x64xf32>
    %c3_120 = arith.constant 3 : index
    %c0_121 = arith.constant 0 : index
    %c0_122 = arith.constant 0 : index
    %176 = vector.load %arg8[%c3_120, %c0_121, %c0_122] : memref<6x64x64xf32, #tpu.memory_space<vmem>>, vector<1x64x64xf32>
    %177 = vector.shape_cast %176 : vector<1x64x64xf32> to vector<64x64xf32>
    %cst_123 = arith.constant dense<0.000000e+00> : vector<128x64xf32>
    %178 = tpu.matmul %169, %177, %cst_123 {dimension_numbers = #tpu.dot_dimension_numbers<[1], [0], [0], [1], [0, 0, 1, 1], [], []>} : vector<128x64xf32>, vector<64x64xf32>, vector<128x64xf32> -> vector<128x64xf32>
    %179 = arith.addf %175, %178 : vector<128x64xf32>
    %c3_124 = arith.constant 3 : index
    %c0_125 = arith.constant 0 : index
    %c0_126 = arith.constant 0 : index
    %180 = vector.load %arg9[%c3_124, %c0_125, %c0_126] : memref<6x1x64xf32, #tpu.memory_space<vmem>>, vector<1x1x64xf32>
    %181 = vector.shape_cast %180 : vector<1x1x64xf32> to vector<1x64xf32>
    %182 = vector.broadcast %181 : vector<1x64xf32> to vector<128x64xf32>
    %183 = arith.addf %179, %182 : vector<128x64xf32>
    %cst_127 = arith.constant 0.000000e+00 : f32
    %184 = vector.broadcast %cst_127 : f32 to vector<128x64xf32>
    %185 = arith.maximumf %183, %184 : vector<128x64xf32>
    %186 = arith.addf %146, %185 : vector<128x64xf32>
    %c3_128 = arith.constant 3 : index
    %c0_129 = arith.constant 0 : index
    %c0_130 = arith.constant 0 : index
    %187 = vector.load %arg10[%c3_128, %c0_129, %c0_130] : memref<6x64x64xf32, #tpu.memory_space<vmem>>, vector<1x64x64xf32>
    %188 = vector.shape_cast %187 : vector<1x64x64xf32> to vector<64x64xf32>
    %cst_131 = arith.constant dense<0.000000e+00> : vector<128x64xf32>
    %189 = tpu.matmul %185, %188, %cst_131 {dimension_numbers = #tpu.dot_dimension_numbers<[1], [0], [0], [1], [0, 0, 1, 1], [], []>} : vector<128x64xf32>, vector<64x64xf32>, vector<128x64xf32> -> vector<128x64xf32>
    %c3_132 = arith.constant 3 : index
    %c0_133 = arith.constant 0 : index
    %c0_134 = arith.constant 0 : index
    %190 = vector.load %arg11[%c3_132, %c0_133, %c0_134] : memref<6x1x64xf32, #tpu.memory_space<vmem>>, vector<1x1x64xf32>
    %191 = vector.shape_cast %190 : vector<1x1x64xf32> to vector<1x64xf32>
    %192 = vector.broadcast %191 : vector<1x64xf32> to vector<128x64xf32>
    %193 = arith.addf %189, %192 : vector<128x64xf32>
    %c16_i32_135 = arith.constant 16 : i32
    %194 = tpu.dynamic_rotate %193 by %c16_i32_135 dim 0 : vector<128x64xf32>, i32 -> vector<128x64xf32>
    %195 = vector.broadcast %28 : vector<128x1xf32> to vector<128x64xf32>
    %196 = arith.mulf %194, %195 : vector<128x64xf32>
    %c4 = arith.constant 4 : index
    %c0_136 = arith.constant 0 : index
    %c0_137 = arith.constant 0 : index
    %197 = vector.load %arg4[%c4, %c0_136, %c0_137] : memref<6x64x64xf32, #tpu.memory_space<vmem>>, vector<1x64x64xf32>
    %198 = vector.shape_cast %197 : vector<1x64x64xf32> to vector<64x64xf32>
    %cst_138 = arith.constant dense<0.000000e+00> : vector<128x64xf32>
    %199 = tpu.matmul %196, %198, %cst_138 {dimension_numbers = #tpu.dot_dimension_numbers<[1], [0], [0], [1], [0, 0, 1, 1], [], []>} : vector<128x64xf32>, vector<64x64xf32>, vector<128x64xf32> -> vector<128x64xf32>
    %c4_139 = arith.constant 4 : index
    %c0_140 = arith.constant 0 : index
    %c0_141 = arith.constant 0 : index
    %200 = vector.load %arg5[%c4_139, %c0_140, %c0_141] : memref<6x64x64xf32, #tpu.memory_space<vmem>>, vector<1x64x64xf32>
    %201 = vector.shape_cast %200 : vector<1x64x64xf32> to vector<64x64xf32>
    %cst_142 = arith.constant dense<0.000000e+00> : vector<128x64xf32>
    %202 = tpu.matmul %193, %201, %cst_142 {dimension_numbers = #tpu.dot_dimension_numbers<[1], [0], [0], [1], [0, 0, 1, 1], [], []>} : vector<128x64xf32>, vector<64x64xf32>, vector<128x64xf32> -> vector<128x64xf32>
    %203 = arith.addf %199, %202 : vector<128x64xf32>
    %c4_143 = arith.constant 4 : index
    %c0_144 = arith.constant 0 : index
    %c0_145 = arith.constant 0 : index
    %204 = vector.load %arg6[%c4_143, %c0_144, %c0_145] : memref<6x1x64xf32, #tpu.memory_space<vmem>>, vector<1x1x64xf32>
    %205 = vector.shape_cast %204 : vector<1x1x64xf32> to vector<1x64xf32>
    %206 = vector.broadcast %205 : vector<1x64xf32> to vector<128x64xf32>
    %207 = arith.addf %203, %206 : vector<128x64xf32>
    %cst_146 = arith.constant 0.000000e+00 : f32
    %208 = vector.broadcast %cst_146 : f32 to vector<128x64xf32>
    %209 = arith.maximumf %207, %208 : vector<128x64xf32>
    %c16_i32_147 = arith.constant 16 : i32
    %210 = tpu.dynamic_rotate %209 by %c16_i32_147 dim 0 : vector<128x64xf32>, i32 -> vector<128x64xf32>
    %211 = vector.broadcast %28 : vector<128x1xf32> to vector<128x64xf32>
    %212 = arith.mulf %210, %211 : vector<128x64xf32>
    %c4_148 = arith.constant 4 : index
    %c0_149 = arith.constant 0 : index
    %c0_150 = arith.constant 0 : index
    %213 = vector.load %arg7[%c4_148, %c0_149, %c0_150] : memref<6x64x64xf32, #tpu.memory_space<vmem>>, vector<1x64x64xf32>
    %214 = vector.shape_cast %213 : vector<1x64x64xf32> to vector<64x64xf32>
    %cst_151 = arith.constant dense<0.000000e+00> : vector<128x64xf32>
    %215 = tpu.matmul %212, %214, %cst_151 {dimension_numbers = #tpu.dot_dimension_numbers<[1], [0], [0], [1], [0, 0, 1, 1], [], []>} : vector<128x64xf32>, vector<64x64xf32>, vector<128x64xf32> -> vector<128x64xf32>
    %c4_152 = arith.constant 4 : index
    %c0_153 = arith.constant 0 : index
    %c0_154 = arith.constant 0 : index
    %216 = vector.load %arg8[%c4_152, %c0_153, %c0_154] : memref<6x64x64xf32, #tpu.memory_space<vmem>>, vector<1x64x64xf32>
    %217 = vector.shape_cast %216 : vector<1x64x64xf32> to vector<64x64xf32>
    %cst_155 = arith.constant dense<0.000000e+00> : vector<128x64xf32>
    %218 = tpu.matmul %209, %217, %cst_155 {dimension_numbers = #tpu.dot_dimension_numbers<[1], [0], [0], [1], [0, 0, 1, 1], [], []>} : vector<128x64xf32>, vector<64x64xf32>, vector<128x64xf32> -> vector<128x64xf32>
    %219 = arith.addf %215, %218 : vector<128x64xf32>
    %c4_156 = arith.constant 4 : index
    %c0_157 = arith.constant 0 : index
    %c0_158 = arith.constant 0 : index
    %220 = vector.load %arg9[%c4_156, %c0_157, %c0_158] : memref<6x1x64xf32, #tpu.memory_space<vmem>>, vector<1x1x64xf32>
    %221 = vector.shape_cast %220 : vector<1x1x64xf32> to vector<1x64xf32>
    %222 = vector.broadcast %221 : vector<1x64xf32> to vector<128x64xf32>
    %223 = arith.addf %219, %222 : vector<128x64xf32>
    %cst_159 = arith.constant 0.000000e+00 : f32
    %224 = vector.broadcast %cst_159 : f32 to vector<128x64xf32>
    %225 = arith.maximumf %223, %224 : vector<128x64xf32>
    %226 = arith.addf %186, %225 : vector<128x64xf32>
    %c4_160 = arith.constant 4 : index
    %c0_161 = arith.constant 0 : index
    %c0_162 = arith.constant 0 : index
    %227 = vector.load %arg10[%c4_160, %c0_161, %c0_162] : memref<6x64x64xf32, #tpu.memory_space<vmem>>, vector<1x64x64xf32>
    %228 = vector.shape_cast %227 : vector<1x64x64xf32> to vector<64x64xf32>
    %cst_163 = arith.constant dense<0.000000e+00> : vector<128x64xf32>
    %229 = tpu.matmul %225, %228, %cst_163 {dimension_numbers = #tpu.dot_dimension_numbers<[1], [0], [0], [1], [0, 0, 1, 1], [], []>} : vector<128x64xf32>, vector<64x64xf32>, vector<128x64xf32> -> vector<128x64xf32>
    %c4_164 = arith.constant 4 : index
    %c0_165 = arith.constant 0 : index
    %c0_166 = arith.constant 0 : index
    %230 = vector.load %arg11[%c4_164, %c0_165, %c0_166] : memref<6x1x64xf32, #tpu.memory_space<vmem>>, vector<1x1x64xf32>
    %231 = vector.shape_cast %230 : vector<1x1x64xf32> to vector<1x64xf32>
    %232 = vector.broadcast %231 : vector<1x64xf32> to vector<128x64xf32>
    %233 = arith.addf %229, %232 : vector<128x64xf32>
    %c32_i32_167 = arith.constant 32 : i32
    %234 = tpu.dynamic_rotate %233 by %c32_i32_167 dim 0 : vector<128x64xf32>, i32 -> vector<128x64xf32>
    %235 = vector.broadcast %32 : vector<128x1xf32> to vector<128x64xf32>
    %236 = arith.mulf %234, %235 : vector<128x64xf32>
    %c5 = arith.constant 5 : index
    %c0_168 = arith.constant 0 : index
    %c0_169 = arith.constant 0 : index
    %237 = vector.load %arg4[%c5, %c0_168, %c0_169] : memref<6x64x64xf32, #tpu.memory_space<vmem>>, vector<1x64x64xf32>
    %238 = vector.shape_cast %237 : vector<1x64x64xf32> to vector<64x64xf32>
    %cst_170 = arith.constant dense<0.000000e+00> : vector<128x64xf32>
    %239 = tpu.matmul %236, %238, %cst_170 {dimension_numbers = #tpu.dot_dimension_numbers<[1], [0], [0], [1], [0, 0, 1, 1], [], []>} : vector<128x64xf32>, vector<64x64xf32>, vector<128x64xf32> -> vector<128x64xf32>
    %c5_171 = arith.constant 5 : index
    %c0_172 = arith.constant 0 : index
    %c0_173 = arith.constant 0 : index
    %240 = vector.load %arg5[%c5_171, %c0_172, %c0_173] : memref<6x64x64xf32, #tpu.memory_space<vmem>>, vector<1x64x64xf32>
    %241 = vector.shape_cast %240 : vector<1x64x64xf32> to vector<64x64xf32>
    %cst_174 = arith.constant dense<0.000000e+00> : vector<128x64xf32>
    %242 = tpu.matmul %233, %241, %cst_174 {dimension_numbers = #tpu.dot_dimension_numbers<[1], [0], [0], [1], [0, 0, 1, 1], [], []>} : vector<128x64xf32>, vector<64x64xf32>, vector<128x64xf32> -> vector<128x64xf32>
    %243 = arith.addf %239, %242 : vector<128x64xf32>
    %c5_175 = arith.constant 5 : index
    %c0_176 = arith.constant 0 : index
    %c0_177 = arith.constant 0 : index
    %244 = vector.load %arg6[%c5_175, %c0_176, %c0_177] : memref<6x1x64xf32, #tpu.memory_space<vmem>>, vector<1x1x64xf32>
    %245 = vector.shape_cast %244 : vector<1x1x64xf32> to vector<1x64xf32>
    %246 = vector.broadcast %245 : vector<1x64xf32> to vector<128x64xf32>
    %247 = arith.addf %243, %246 : vector<128x64xf32>
    %cst_178 = arith.constant 0.000000e+00 : f32
    %248 = vector.broadcast %cst_178 : f32 to vector<128x64xf32>
    %249 = arith.maximumf %247, %248 : vector<128x64xf32>
    %c32_i32_179 = arith.constant 32 : i32
    %250 = tpu.dynamic_rotate %249 by %c32_i32_179 dim 0 : vector<128x64xf32>, i32 -> vector<128x64xf32>
    %251 = vector.broadcast %32 : vector<128x1xf32> to vector<128x64xf32>
    %252 = arith.mulf %250, %251 : vector<128x64xf32>
    %c5_180 = arith.constant 5 : index
    %c0_181 = arith.constant 0 : index
    %c0_182 = arith.constant 0 : index
    %253 = vector.load %arg7[%c5_180, %c0_181, %c0_182] : memref<6x64x64xf32, #tpu.memory_space<vmem>>, vector<1x64x64xf32>
    %254 = vector.shape_cast %253 : vector<1x64x64xf32> to vector<64x64xf32>
    %cst_183 = arith.constant dense<0.000000e+00> : vector<128x64xf32>
    %255 = tpu.matmul %252, %254, %cst_183 {dimension_numbers = #tpu.dot_dimension_numbers<[1], [0], [0], [1], [0, 0, 1, 1], [], []>} : vector<128x64xf32>, vector<64x64xf32>, vector<128x64xf32> -> vector<128x64xf32>
    %c5_184 = arith.constant 5 : index
    %c0_185 = arith.constant 0 : index
    %c0_186 = arith.constant 0 : index
    %256 = vector.load %arg8[%c5_184, %c0_185, %c0_186] : memref<6x64x64xf32, #tpu.memory_space<vmem>>, vector<1x64x64xf32>
    %257 = vector.shape_cast %256 : vector<1x64x64xf32> to vector<64x64xf32>
    %cst_187 = arith.constant dense<0.000000e+00> : vector<128x64xf32>
    %258 = tpu.matmul %249, %257, %cst_187 {dimension_numbers = #tpu.dot_dimension_numbers<[1], [0], [0], [1], [0, 0, 1, 1], [], []>} : vector<128x64xf32>, vector<64x64xf32>, vector<128x64xf32> -> vector<128x64xf32>
    %259 = arith.addf %255, %258 : vector<128x64xf32>
    %c5_188 = arith.constant 5 : index
    %c0_189 = arith.constant 0 : index
    %c0_190 = arith.constant 0 : index
    %260 = vector.load %arg9[%c5_188, %c0_189, %c0_190] : memref<6x1x64xf32, #tpu.memory_space<vmem>>, vector<1x1x64xf32>
    %261 = vector.shape_cast %260 : vector<1x1x64xf32> to vector<1x64xf32>
    %262 = vector.broadcast %261 : vector<1x64xf32> to vector<128x64xf32>
    %263 = arith.addf %259, %262 : vector<128x64xf32>
    %cst_191 = arith.constant 0.000000e+00 : f32
    %264 = vector.broadcast %cst_191 : f32 to vector<128x64xf32>
    %265 = arith.maximumf %263, %264 : vector<128x64xf32>
    %266 = arith.addf %226, %265 : vector<128x64xf32>
    %c0_192 = arith.constant 0 : index
    %c0_193 = arith.constant 0 : index
    %267 = vector.load %arg12[%c0_192, %c0_193] : memref<128x64xf32, #tpu.memory_space<vmem>>, vector<128x64xf32>
    tpu.vector_store %arg12[%c0_192, %c0_193], %266 {strides = array<i32>} : memref<128x64xf32, #tpu.memory_space<vmem>>, vector<128x64xf32>,
    return
  }
  func.func @transform_0(%arg0: i32) -> (i32, i32) {
    %c0_i32 = arith.constant 0 : i32
    %c0_i32_0 = arith.constant 0 : i32
    return %arg0, %c0_i32 : i32, i32
  }
  func.func @transform_1(%arg0: i32) -> (i32, i32) {
    %c0_i32 = arith.constant 0 : i32
    %c0_i32_0 = arith.constant 0 : i32
    %c0_i32_1 = arith.constant 0 : i32
    return %c0_i32, %c0_i32_0 : i32, i32
  }
  func.func @transform_2(%arg0: i32) -> (i32, i32) {
    %c0_i32 = arith.constant 0 : i32
    %c0_i32_0 = arith.constant 0 : i32
    %c0_i32_1 = arith.constant 0 : i32
    return %c0_i32, %c0_i32_0 : i32, i32
  }
  func.func @transform_3(%arg0: i32) -> (i32, i32, i32) {
    %c0_i32 = arith.constant 0 : i32
    %c0_i32_0 = arith.constant 0 : i32
    %c0_i32_1 = arith.constant 0 : i32
    %c0_i32_2 = arith.constant 0 : i32
    return %c0_i32, %c0_i32_0, %c0_i32_1 : i32, i32, i32
  }
  func.func @transform_4(%arg0: i32) -> (i32, i32, i32) {
    %c0_i32 = arith.constant 0 : i32
    %c0_i32_0 = arith.constant 0 : i32
    %c0_i32_1 = arith.constant 0 : i32
    %c0_i32_2 = arith.constant 0 : i32
    return %c0_i32, %c0_i32_0, %c0_i32_1 : i32, i32, i32
  }
  func.func @transform_5(%arg0: i32) -> (i32, i32, i32) {
    %c0_i32 = arith.constant 0 : i32
    %c0_i32_0 = arith.constant 0 : i32
    %c0_i32_1 = arith.constant 0 : i32
    %c0_i32_2 = arith.constant 0 : i32
    return %c0_i32, %c0_i32_0, %c0_i32_1 : i32, i32, i32
  }
  func.func @transform_6(%arg0: i32) -> (i32, i32, i32) {
    %c0_i32 = arith.constant 0 : i32
    %c0_i32_0 = arith.constant 0 : i32
    %c0_i32_1 = arith.constant 0 : i32
    %c0_i32_2 = arith.constant 0 : i32
    return %c0_i32, %c0_i32_0, %c0_i32_1 : i32, i32, i32
  }
  func.func @transform_7(%arg0: i32) -> (i32, i32, i32) {
    %c0_i32 = arith.constant 0 : i32
    %c0_i32_0 = arith.constant 0 : i32
    %c0_i32_1 = arith.constant 0 : i32
    %c0_i32_2 = arith.constant 0 : i32
    return %c0_i32, %c0_i32_0, %c0_i32_1 : i32, i32, i32
  }
  func.func @transform_8(%arg0: i32) -> (i32, i32, i32) {
    %c0_i32 = arith.constant 0 : i32
    %c0_i32_0 = arith.constant 0 : i32
    %c0_i32_1 = arith.constant 0 : i32
    %c0_i32_2 = arith.constant 0 : i32
    return %c0_i32, %c0_i32_0, %c0_i32_1 : i32, i32, i32
  }
  func.func @transform_9(%arg0: i32) -> (i32, i32, i32) {
    %c0_i32 = arith.constant 0 : i32
    %c0_i32_0 = arith.constant 0 : i32
    %c0_i32_1 = arith.constant 0 : i32
    %c0_i32_2 = arith.constant 0 : i32
    return %c0_i32, %c0_i32_0, %c0_i32_1 : i32, i32, i32
  }
  func.func @transform_10(%arg0: i32) -> (i32, i32, i32) {
    %c0_i32 = arith.constant 0 : i32
    %c0_i32_0 = arith.constant 0 : i32
    %c0_i32_1 = arith.constant 0 : i32
    %c0_i32_2 = arith.constant 0 : i32
    return %c0_i32, %c0_i32_0, %c0_i32_1 : i32, i32, i32
  }
  func.func @transform_11(%arg0: i32) -> (i32, i32) {
    %c0_i32 = arith.constant 0 : i32
    %c0_i32_0 = arith.constant 0 : i32
    return %arg0, %c0_i32 : i32, i32
  }
}

</mosaic_0001>

<llo_original>
// kernel: tpu_custom_call.1
$region0: #{tpu_custom_call.1}
  #allocation0 [shape = 'u32[]', space=smem, size = 0x4, offset = 0x4, fixed_abs, tag = 'smem constant byte address 0x4 - core index']
  #allocation1 [shape = 'u32[72,128]{1,0:T(1,128)}', space=vmem, size = 0x9000, scoped, tag = 'internal scratch']
  %s0 = inlined_call_operand.vmem [shape: f32[128,4], index: 0, kind: input, shape index: {}]
  %s1 = inlined_call_operand.vmem [shape: f32[4,64], index: 1, kind: input, shape index: {}]
  %s2 = inlined_call_operand.vmem [shape: f32[1,64], index: 2, kind: input, shape index: {}]
  %s3 = inlined_call_operand.hbm [shape: f32[6,64,64], index: 3, kind: input, shape index: {}]
  %s4 = inlined_call_operand.hbm [shape: f32[6,64,64], index: 4, kind: input, shape index: {}]
  %s5 = inlined_call_operand.vmem [shape: f32[6,1,64], index: 5, kind: input, shape index: {}]
  %s6 = inlined_call_operand.hbm [shape: f32[6,64,64], index: 6, kind: input, shape index: {}]
  %s7 = inlined_call_operand.hbm [shape: f32[6,64,64], index: 7, kind: input, shape index: {}]
  %s8 = inlined_call_operand.vmem [shape: f32[6,1,64], index: 8, kind: input, shape index: {}]
  %s9 = inlined_call_operand.hbm [shape: f32[6,64,64], index: 9, kind: input, shape index: {}]
  %s10 = inlined_call_operand.vmem [shape: f32[6,1,64], index: 10, kind: input, shape index: {}]
  %s11 = inlined_call_operand.vmem [shape: f32[128,64], index: 11, kind: output, shape index: {}]
  %s12 = sld [smem:[#allocation0]]
  $region74: #{tpu_custom_call.1} parent=0
    _
  %s14 = ssub.s32 1, %s12
  %s15 = scalar_select 0, %s14, %s12
  $region1: #{tpu_custom_call.1} parent=0
    #allocation2 [shape = 'u8[196608]{0}', space=vmem, size = 0x30000, scoped, tag = 'input window, operand 3, single buffered']
    #allocation3 [shape = 's32[1]{0}', space=sflag, size = 0x4, scoped, tag = 'scoped memory for tpu_custom_call.1']
    #allocation4 [shape = 'u8[196608]{0}', space=vmem, size = 0x30000, scoped, tag = 'input window, operand 4, single buffered']
    #allocation5 [shape = 's32[1]{0}', space=sflag, size = 0x4, scoped, tag = 'scoped memory for tpu_custom_call.1']
    #allocation6 [shape = 'u8[196608]{0}', space=vmem, size = 0x30000, scoped, tag = 'input window, operand 6, single buffered']
    #allocation7 [shape = 'u8[196608]{0}', space=vmem, size = 0x30000, scoped, tag = 'input window, operand 7, single buffered']
    #allocation8 [shape = 's32[1]{0}', space=sflag, size = 0x4, scoped, tag = 'scoped memory for tpu_custom_call.1']
    #allocation9 [shape = 'u8[196608]{0}', space=vmem, size = 0x30000, scoped, tag = 'input window, operand 9, single buffered']
    %16 = vsyncpa [#allocation3], 0
    %17 = vsyncpa [#allocation5], 0
    %18 = vsyncpa [#allocation8], 0
    // Predicated region
    $region2: #{tpu_custom_call.1} parent=1 // pred_check
      _
    $region3: #{tpu_custom_call.1} parent=1 // pred_check_branch
      %20 = sbr.rel (0) target = $region5
    $region4: #{tpu_custom_call.1} parent=1 // pred_region
      _
    $region5: #{tpu_custom_call.1} parent=1 // pred_fallthru
      _
    // Predicated region
    $region6: #{tpu_custom_call.1} parent=1 // pred_check
      _
    $region7: #{tpu_custom_call.1} parent=1 // pred_check_branch
      %22 = sbr.rel (0) target = $region9
    $region8: #{tpu_custom_call.1} parent=1 // pred_region
      _
    $region9: #{tpu_custom_call.1} parent=1 // pred_fallthru
      _
    // Predicated region
    $region10: #{tpu_custom_call.1} parent=1 // pred_check
      _
    $region11: #{tpu_custom_call.1} parent=1 // pred_check_branch
      %24 = sbr.rel (0) target = $region13
    $region12: #{tpu_custom_call.1} parent=1 // pred_region
      _
    $region13: #{tpu_custom_call.1} parent=1 // pred_fallthru
      _
    // Predicated region
    $region14: #{tpu_custom_call.1} parent=1 // pred_check
      _
    $region15: #{tpu_custom_call.1} parent=1 // pred_check_branch
      %26 = sbr.rel (0) target = $region17
    $region16: #{tpu_custom_call.1} parent=1 // pred_region
      %28 = vsyncadd [#allocation3], 0
      %s29 = sshll.u32 %s3, 4
      %s30 = int_to_ptr.hbm [resolvable:$true] %s29
      %s31 = sshll.u32 [#allocation2], 4
      %s32 = int_to_ptr.vmem [resolvable:$true] %s31
      %37 = dma.hbm_to_vmem [thread:$0]  %s30, 6144, %s32, [#allocation3], 128, 128, 8
    $region17: #{tpu_custom_call.1} parent=1 // pred_fallthru
      _
    // Predicated region
    $region18: #{tpu_custom_call.1} parent=1 // pred_check
      _
    $region19: #{tpu_custom_call.1} parent=1 // pred_check_branch
      %39 = sbr.rel (0) target = $region21
    $region20: #{tpu_custom_call.1} parent=1 // pred_region
      %41 = vsyncadd [#allocation5], 0
      %s42 = sshll.u32 %s4, 4
      %s43 = int_to_ptr.hbm [resolvable:$true] %s42
      %s44 = sshll.u32 [#allocation4], 4
      %s45 = int_to_ptr.vmem [resolvable:$true] %s44
      %50 = dma.hbm_to_vmem [thread:$0]  %s43, 6144, %s45, [#allocation5], 128, 128, 8
    $region21: #{tpu_custom_call.1} parent=1 // pred_fallthru
      _
    // Predicated region
    $region22: #{tpu_custom_call.1} parent=1 // pred_check
      _
    $region23: #{tpu_custom_call.1} parent=1 // pred_check_branch
      %52 = sbr.rel (0) target = $region25
    $region24: #{tpu_custom_call.1} parent=1 // pred_region
      _
    $region25: #{tpu_custom_call.1} parent=1 // pred_fallthru
      _
    // Predicated region
    $region26: #{tpu_custom_call.1} parent=1 // pred_check
      _
    $region27: #{tpu_custom_call.1} parent=1 // pred_check_branch
      %54 = sbr.rel (0) target = $region29
    $region28: #{tpu_custom_call.1} parent=1 // pred_region
      %56 = vsyncadd [#allocation5], 0
      %s57 = sshll.u32 %s6, 4
      %s58 = int_to_ptr.hbm [resolvable:$true] %s57
      %s59 = sshll.u32 [#allocation6], 4
      %s60 = int_to_ptr.vmem [resolvable:$true] %s59
      %65 = dma.hbm_to_vmem [thread:$0]  %s58, 6144, %s60, [#allocation5], 128, 128, 8
    $region29: #{tpu_custom_call.1} parent=1 // pred_fallthru
      _
    // Predicated region
    $region30: #{tpu_custom_call.1} parent=1 // pred_check
      _
    $region31: #{tpu_custom_call.1} parent=1 // pred_check_branch
      %67 = sbr.rel (0) target = $region33
    $region32: #{tpu_custom_call.1} parent=1 // pred_region
      %69 = vsyncadd [#allocation8], 0
      %s70 = sshll.u32 %s7, 4
      %s71 = int_to_ptr.hbm [resolvable:$true] %s70
      %s72 = sshll.u32 [#allocation7], 4
      %s73 = int_to_ptr.vmem [resolvable:$true] %s72
      %78 = dma.hbm_to_vmem [thread:$0]  %s71, 6144, %s73, [#allocation8], 128, 128, 8
    $region33: #{tpu_custom_call.1} parent=1 // pred_fallthru
      _
    // Predicated region
    $region34: #{tpu_custom_call.1} parent=1 // pred_check
      _
    $region35: #{tpu_custom_call.1} parent=1 // pred_check_branch
      %80 = sbr.rel (0) target = $region37
    $region36: #{tpu_custom_call.1} parent=1 // pred_region
      _
    $region37: #{tpu_custom_call.1} parent=1 // pred_fallthru
      _
    // Predicated region
    $region38: #{tpu_custom_call.1} parent=1 // pred_check
      _
    $region39: #{tpu_custom_call.1} parent=1 // pred_check_branch
      %82 = sbr.rel (0) target = $region41
    $region40: #{tpu_custom_call.1} parent=1 // pred_region
      %84 = vsyncadd [#allocation8], 0
      %s85 = sshll.u32 %s9, 4
      %s86 = int_to_ptr.hbm [resolvable:$true] %s85
      %s87 = sshll.u32 [#allocation9], 4
      %s88 = int_to_ptr.vmem [resolvable:$true] %s87
      %93 = dma.hbm_to_vmem [thread:$0]  %s86, 6144, %s88, [#allocation8], 128, 128, 8
    $region41: #{tpu_custom_call.1} parent=1 // pred_fallthru
      _
    // Predicated region
    $region42: #{tpu_custom_call.1} parent=1 // pred_check
      _
    $region43: #{tpu_custom_call.1} parent=1 // pred_check_branch
      %95 = sbr.rel (0) target = $region45
    $region44: #{tpu_custom_call.1} parent=1 // pred_region
      _
    $region45: #{tpu_custom_call.1} parent=1 // pred_fallthru
      _
    // Predicated region
    $region46: #{tpu_custom_call.1} parent=1 // pred_check
      _
    $region47: #{tpu_custom_call.1} parent=1 // pred_check_branch
      %97 = sbr.rel (0) target = $region49
    $region48: #{tpu_custom_call.1} parent=1 // pred_region
      %99 = dma.done [#allocation3], 6144
    $region49: #{tpu_custom_call.1} parent=1 // pred_fallthru
      _
    // Predicated region
    $region50: #{tpu_custom_call.1} parent=1 // pred_check
      _
    $region51: #{tpu_custom_call.1} parent=1 // pred_check_branch
      %101 = sbr.rel (0) target = $region53
    $region52: #{tpu_custom_call.1} parent=1 // pred_region
      %103 = dma.done [#allocation5], 6144
    $region53: #{tpu_custom_call.1} parent=1 // pred_fallthru
      _
    // Predicated region
    $region54: #{tpu_custom_call.1} parent=1 // pred_check
      _
    $region55: #{tpu_custom_call.1} parent=1 // pred_check_branch
      %105 = sbr.rel (0) target = $region57
    $region56: #{tpu_custom_call.1} parent=1 // pred_region
      %107 = dma.done [#allocation5], 6144
    $region57: #{tpu_custom_call.1} parent=1 // pred_fallthru
      _
    // Predicated region
    $region58: #{tpu_custom_call.1} parent=1 // pred_check
      _
    $region59: #{tpu_custom_call.1} parent=1 // pred_check_branch
      %109 = sbr.rel (0) target = $region61
    $region60: #{tpu_custom_call.1} parent=1 // pred_region
      %111 = dma.done [#allocation8], 6144
    $region61: #{tpu_custom_call.1} parent=1 // pred_fallthru
      _
    // Predicated region
    $region62: #{tpu_custom_call.1} parent=1 // pred_check
      _
    $region63: #{tpu_custom_call.1} parent=1 // pred_check_branch
      %113 = sbr.rel (0) target = $region65
    $region64: #{tpu_custom_call.1} parent=1 // pred_region
      %115 = dma.done [#allocation8], 6144
    $region65: #{tpu_custom_call.1} parent=1 // pred_fallthru
      _
    %v116 = vld [vmem:[%s0] sm:$0xff]
    %v117 = vld [vmem:[%s0 + $0x8] sm:$0xff]
    %v118 = vld [vmem:[%s0 + $0x10] sm:$0xff]
    %v119 = vld [vmem:[%s0 + $0x18] sm:$0xff]
    %v120 = vld [vmem:[%s0 + $0x20] sm:$0xff]
    %v121 = vld [vmem:[%s0 + $0x28] sm:$0xff]
    %v122 = vld [vmem:[%s0 + $0x30] sm:$0xff]
    %v123 = vld [vmem:[%s0 + $0x38] sm:$0xff]
    %v124 = vld [vmem:[%s0 + $0x40] sm:$0xff]
    %v125 = vld [vmem:[%s0 + $0x48] sm:$0xff]
    %v126 = vld [vmem:[%s0 + $0x50] sm:$0xff]
    %v127 = vld [vmem:[%s0 + $0x58] sm:$0xff]
    %v128 = vld [vmem:[%s0 + $0x60] sm:$0xff]
    %v129 = vld [vmem:[%s0 + $0x68] sm:$0xff]
    %v130 = vld [vmem:[%s0 + $0x70] sm:$0xff]
    %v131 = vld [vmem:[%s0 + $0x78] sm:$0xff]
    %v132 = vld [vmem:[%s1] sm:$0xf]
    %v133 = vld [vmem:[%s2] sm:$0x1]
    %v135 = vperm.slane %v133, 0
    %vm137 = vcmask 31744
    %v139 = vsel %vm137, %v116, 0
    %v142 = vsel %vm137, %v117, 0
    %v145 = vsel %vm137, %v118, 0
    %v148 = vsel %vm137, %v119, 0
    %v151 = vsel %vm137, %v120, 0
    %v154 = vsel %vm137, %v121, 0
    %v157 = vsel %vm137, %v122, 0
    %v160 = vsel %vm137, %v123, 0
    %v163 = vsel %vm137, %v124, 0
    %v166 = vsel %vm137, %v125, 0
    %v169 = vsel %vm137, %v126, 0
    %v172 = vsel %vm137, %v127, 0
    %v175 = vsel %vm137, %v128, 0
    %v178 = vsel %vm137, %v129, 0
    %v181 = vsel %vm137, %v130, 0
    %v184 = vsel %vm137, %v131, 0
    %vm186 = vcmask 1043456
    %v188 = vsel %vm186, %v132, 0
    %190 = vmatpush.msra.mxu0 0.0
    %191 = vmatpush.msra.mxu0 0.0
    %192 = vmatpush.msra.mxu0 0.0
    %193 = vmatpush.msra.mxu0 0.0
    %194 = vmatpush.msra.mxu0 0.0
    %195 = vmatpush.msra.mxu0 0.0
    %196 = vmatpush.msra.mxu0 0.0
    %197 = vmatpush.msra.mxu0 0.0
    %198 = vmatpush.msra.mxu0 0.0
    %199 = vmatpush.msra.mxu0 0.0
    %200 = vmatpush.msra.mxu0 0.0
    %201 = vmatpush.msra.mxu0 0.0
    %202 = vmatpush.msra.mxu0 0.0
    %203 = vmatpush.msra.mxu0 0.0
    %204 = vmatpush.msra.mxu0 0.0
    %205 = vmatpush.msra.mxu0 %v188
    %206 = vmatmul.f32.gmra.mxu0 %v139
    %v207 = vpop.f32.mrf.mxu0
    %v208 = vadd.f32 %v135, %v207
    %209 = vmatmul.f32.gmra.mxu0 %v142
    %v210 = vpop.f32.mrf.mxu0
    %v211 = vadd.f32 %v135, %v210
    %212 = vmatmul.f32.gmra.mxu0 %v145
    %v213 = vpop.f32.mrf.mxu0
    %v214 = vadd.f32 %v135, %v213
    %215 = vmatmul.f32.gmra.mxu0 %v148
    %v216 = vpop.f32.mrf.mxu0
    %v217 = vadd.f32 %v135, %v216
    %218 = vmatmul.f32.gmra.mxu0 %v151
    %v219 = vpop.f32.mrf.mxu0
    %v220 = vadd.f32 %v135, %v219
    %221 = vmatmul.f32.gmra.mxu0 %v154
    %v222 = vpop.f32.mrf.mxu0
    %v223 = vadd.f32 %v135, %v222
    %224 = vmatmul.f32.gmra.mxu0 %v157
    %v225 = vpop.f32.mrf.mxu0
    %v226 = vadd.f32 %v135, %v225
    %227 = vmatmul.f32.gmra.mxu0 %v160
    %v228 = vpop.f32.mrf.mxu0
    %v229 = vadd.f32 %v135, %v228
    %230 = vmatmul.f32.gmra.mxu0 %v163
    %v231 = vpop.f32.mrf.mxu0
    %v232 = vadd.f32 %v135, %v231
    %233 = vmatmul.f32.gmra.mxu0 %v166
    %v234 = vpop.f32.mrf.mxu0
    %v235 = vadd.f32 %v135, %v234
    %236 = vmatmul.f32.gmra.mxu0 %v169
    %v237 = vpop.f32.mrf.mxu0
    %v238 = vadd.f32 %v135, %v237
    %239 = vmatmul.f32.gmra.mxu0 %v172
    %v240 = vpop.f32.mrf.mxu0
    %v241 = vadd.f32 %v135, %v240
    %242 = vmatmul.f32.gmra.mxu0 %v175
    %v243 = vpop.f32.mrf.mxu0
    %v244 = vadd.f32 %v135, %v243
    %245 = vmatmul.f32.gmra.mxu0 %v178
    %v246 = vpop.f32.mrf.mxu0
    %v247 = vadd.f32 %v135, %v246
    %248 = vmatmul.f32.gmra.mxu0 %v181
    %v249 = vpop.f32.mrf.mxu0
    %v250 = vadd.f32 %v135, %v249
    %251 = vmatmul.f32.gmra.mxu0 %v184
    %v252 = vpop.f32.mrf.mxu0
    %v253 = vadd.f32 %v135, %v252
    %254 = vdwg.mxu0
    %v255 = vlaneseq
    %v256 = vshrl.u32 %v255, 7
    %v257 = vadd.s32 %v256, 8
    %v258 = vadd.s32 %v256, 16
    %v259 = vadd.s32 %v256, 24
    %v260 = vadd.s32 %v256, 32
    %v261 = vadd.s32 %v256, 40
    %v262 = vadd.s32 %v256, 48
    %v263 = vadd.s32 %v256, 56
    %v264 = vadd.s32 %v256, 64
    %v265 = vadd.s32 %v256, 72
    %v266 = vadd.s32 %v256, 80
    %v267 = vadd.s32 %v256, 88
    %v268 = vadd.s32 %v256, 96
    %v269 = vadd.s32 %v256, 104
    %v270 = vadd.s32 %v256, 112
    %v271 = vadd.s32 %v256, 120
    %v272 = vand.u32 %v256, 63
    %v273 = vand.u32 %v257, 63
    %v274 = vand.u32 %v258, 63
    %v275 = vand.u32 %v259, 63
    %v276 = vand.u32 %v260, 63
    %v277 = vand.u32 %v261, 63
    %v278 = vand.u32 %v262, 63
    %v279 = vand.u32 %v263, 63
    %v280 = vand.u32 %v264, 63
    %v281 = vand.u32 %v265, 63
    %v282 = vand.u32 %v266, 63
    %v283 = vand.u32 %v267, 63
    %v284 = vand.u32 %v268, 63
    %v285 = vand.u32 %v269, 63
    %v286 = vand.u32 %v270, 63
    %v287 = vand.u32 %v271, 63
    %vm288 = vcmp.ge.s32.totalorder %v272, 1
    %vm289 = vcmp.ge.s32.totalorder %v273, 1
    %vm290 = vcmp.ge.s32.totalorder %v274, 1
    %vm291 = vcmp.ge.s32.totalorder %v275, 1
    %vm292 = vcmp.ge.s32.totalorder %v276, 1
    %vm293 = vcmp.ge.s32.totalorder %v277, 1
    %vm294 = vcmp.ge.s32.totalorder %v278, 1
    %vm295 = vcmp.ge.s32.totalorder %v279, 1
    %vm296 = vcmp.ge.s32.totalorder %v280, 1
    %vm297 = vcmp.ge.s32.totalorder %v281, 1
    %vm298 = vcmp.ge.s32.totalorder %v282, 1
    %vm299 = vcmp.ge.s32.totalorder %v283, 1
    %vm300 = vcmp.ge.s32.totalorder %v284, 1
    %vm301 = vcmp.ge.s32.totalorder %v285, 1
    %vm302 = vcmp.ge.s32.totalorder %v286, 1
    %vm303 = vcmp.ge.s32.totalorder %v287, 1
    %v304 = vsel %vm288, 1, 0
    %v305 = vsel %vm289, 1, 0
    %v306 = vsel %vm290, 1, 0
    %v307 = vsel %vm291, 1, 0
    %v308 = vsel %vm292, 1, 0
    %v309 = vsel %vm293, 1, 0
    %v310 = vsel %vm294, 1, 0
    %v311 = vsel %vm295, 1, 0
    %v312 = vsel %vm296, 1, 0
    %v313 = vsel %vm297, 1, 0
    %v314 = vsel %vm298, 1, 0
    %v315 = vsel %vm299, 1, 0
    %v316 = vsel %vm300, 1, 0
    %v317 = vsel %vm301, 1, 0
    %v318 = vsel %vm302, 1, 0
    %v319 = vsel %vm303, 1, 0
    %v320 = vcvt.s32.f32 %v304
    %v321 = vcvt.s32.f32 %v305
    %v322 = vcvt.s32.f32 %v306
    %v323 = vcvt.s32.f32 %v307
    %v324 = vcvt.s32.f32 %v308
    %v325 = vcvt.s32.f32 %v309
    %v326 = vcvt.s32.f32 %v310
    %v327 = vcvt.s32.f32 %v311
    %v328 = vcvt.s32.f32 %v312
    %v329 = vcvt.s32.f32 %v313
    %v330 = vcvt.s32.f32 %v314
    %v331 = vcvt.s32.f32 %v315
    %v332 = vcvt.s32.f32 %v316
    %v333 = vcvt.s32.f32 %v317
    %v334 = vcvt.s32.f32 %v318
    %v335 = vcvt.s32.f32 %v319
    %vm336 = vcmp.ge.s32.totalorder %v272, 2
    %vm337 = vcmp.ge.s32.totalorder %v273, 2
    %vm338 = vcmp.ge.s32.totalorder %v274, 2
    %vm339 = vcmp.ge.s32.totalorder %v275, 2
    %vm340 = vcmp.ge.s32.totalorder %v276, 2
    %vm341 = vcmp.ge.s32.totalorder %v277, 2
    %vm342 = vcmp.ge.s32.totalorder %v278, 2
    %vm343 = vcmp.ge.s32.totalorder %v279, 2
    %vm344 = vcmp.ge.s32.totalorder %v280, 2
    %vm345 = vcmp.ge.s32.totalorder %v281, 2
    %vm346 = vcmp.ge.s32.totalorder %v282, 2
    %vm347 = vcmp.ge.s32.totalorder %v283, 2
    %vm348 = vcmp.ge.s32.totalorder %v284, 2
    %vm349 = vcmp.ge.s32.totalorder %v285, 2
    %vm350 = vcmp.ge.s32.totalorder %v286, 2
    %vm351 = vcmp.ge.s32.totalorder %v287, 2
    %v352 = vsel %vm336, 1, 0
    %v353 = vsel %vm337, 1, 0
    %v354 = vsel %vm338, 1, 0
    %v355 = vsel %vm339, 1, 0
    %v356 = vsel %vm340, 1, 0
    %v357 = vsel %vm341, 1, 0
    %v358 = vsel %vm342, 1, 0
    %v359 = vsel %vm343, 1, 0
    %v360 = vsel %vm344, 1, 0
    %v361 = vsel %vm345, 1, 0
    %v362 = vsel %vm346, 1, 0
    %v363 = vsel %vm347, 1, 0
    %v364 = vsel %vm348, 1, 0
    %v365 = vsel %vm349, 1, 0
    %v366 = vsel %vm350, 1, 0
    %v367 = vsel %vm351, 1, 0
    %v368 = vcvt.s32.f32 %v352
    %v369 = vcvt.s32.f32 %v353
    %v370 = vcvt.s32.f32 %v354
    %v371 = vcvt.s32.f32 %v355
    %v372 = vcvt.s32.f32 %v356
    %v373 = vcvt.s32.f32 %v357
    %v374 = vcvt.s32.f32 %v358
    %v375 = vcvt.s32.f32 %v359
    %v376 = vcvt.s32.f32 %v360
    %v377 = vcvt.s32.f32 %v361
    %v378 = vcvt.s32.f32 %v362
    %v379 = vcvt.s32.f32 %v363
    %v380 = vcvt.s32.f32 %v364
    %v381 = vcvt.s32.f32 %v365
    %v382 = vcvt.s32.f32 %v366
    %v383 = vcvt.s32.f32 %v367
    %vm384 = vcmp.ge.s32.totalorder %v272, 4
    %vm385 = vcmp.ge.s32.totalorder %v273, 4
    %vm386 = vcmp.ge.s32.totalorder %v274, 4
    %vm387 = vcmp.ge.s32.totalorder %v275, 4
    %vm388 = vcmp.ge.s32.totalorder %v276, 4
    %vm389 = vcmp.ge.s32.totalorder %v277, 4
    %vm390 = vcmp.ge.s32.totalorder %v278, 4
    %vm391 = vcmp.ge.s32.totalorder %v279, 4
    %vm392 = vcmp.ge.s32.totalorder %v280, 4
    %vm393 = vcmp.ge.s32.totalorder %v281, 4
    %vm394 = vcmp.ge.s32.totalorder %v282, 4
    %vm395 = vcmp.ge.s32.totalorder %v283, 4
    %vm396 = vcmp.ge.s32.totalorder %v284, 4
    %vm397 = vcmp.ge.s32.totalorder %v285, 4
    %vm398 = vcmp.ge.s32.totalorder %v286, 4
    %vm399 = vcmp.ge.s32.totalorder %v287, 4
    %v400 = vsel %vm384, 1, 0
    %v401 = vsel %vm385, 1, 0
    %v402 = vsel %vm386, 1, 0
    %v403 = vsel %vm387, 1, 0
    %v404 = vsel %vm388, 1, 0
    %v405 = vsel %vm389, 1, 0
    %v406 = vsel %vm390, 1, 0
    %v407 = vsel %vm391, 1, 0
    %v408 = vsel %vm392, 1, 0
    %v409 = vsel %vm393, 1, 0
    %v410 = vsel %vm394, 1, 0
    %v411 = vsel %vm395, 1, 0
    %v412 = vsel %vm396, 1, 0
    %v413 = vsel %vm397, 1, 0
    %v414 = vsel %vm398, 1, 0
    %v415 = vsel %vm399, 1, 0
    %v416 = vcvt.s32.f32 %v400
    %v417 = vcvt.s32.f32 %v401
    %v418 = vcvt.s32.f32 %v402
    %v419 = vcvt.s32.f32 %v403
    %v420 = vcvt.s32.f32 %v404
    %v421 = vcvt.s32.f32 %v405
    %v422 = vcvt.s32.f32 %v406
    %v423 = vcvt.s32.f32 %v407
    %v424 = vcvt.s32.f32 %v408
    %v425 = vcvt.s32.f32 %v409
    %v426 = vcvt.s32.f32 %v410
    %v427 = vcvt.s32.f32 %v411
    %v428 = vcvt.s32.f32 %v412
    %v429 = vcvt.s32.f32 %v413
    %v430 = vcvt.s32.f32 %v414
    %v431 = vcvt.s32.f32 %v415
    %vm432 = vcmp.ge.s32.totalorder %v272, 8
    %vm433 = vcmp.ge.s32.totalorder %v273, 8
    %vm434 = vcmp.ge.s32.totalorder %v274, 8
    %vm435 = vcmp.ge.s32.totalorder %v275, 8
    %vm436 = vcmp.ge.s32.totalorder %v276, 8
    %vm437 = vcmp.ge.s32.totalorder %v277, 8
    %vm438 = vcmp.ge.s32.totalorder %v278, 8
    %vm439 = vcmp.ge.s32.totalorder %v279, 8
    %vm440 = vcmp.ge.s32.totalorder %v280, 8
    %vm441 = vcmp.ge.s32.totalorder %v281, 8
    %vm442 = vcmp.ge.s32.totalorder %v282, 8
    %vm443 = vcmp.ge.s32.totalorder %v283, 8
    %vm444 = vcmp.ge.s32.totalorder %v284, 8
    %vm445 = vcmp.ge.s32.totalorder %v285, 8
    %vm446 = vcmp.ge.s32.totalorder %v286, 8
    %vm447 = vcmp.ge.s32.totalorder %v287, 8
    %v448 = vsel %vm432, 1, 0
    %v449 = vsel %vm433, 1, 0
    %v450 = vsel %vm434, 1, 0
    %v451 = vsel %vm435, 1, 0
    %v452 = vsel %vm436, 1, 0
    %v453 = vsel %vm437, 1, 0
    %v454 = vsel %vm438, 1, 0
    %v455 = vsel %vm439, 1, 0
    %v456 = vsel %vm440, 1, 0
    %v457 = vsel %vm441, 1, 0
    %v458 = vsel %vm442, 1, 0
    %v459 = vsel %vm443, 1, 0
    %v460 = vsel %vm444, 1, 0
    %v461 = vsel %vm445, 1, 0
    %v462 = vsel %vm446, 1, 0
    %v463 = vsel %vm447, 1, 0
    %v464 = vcvt.s32.f32 %v448
    %v465 = vcvt.s32.f32 %v449
    %v466 = vcvt.s32.f32 %v450
    %v467 = vcvt.s32.f32 %v451
    %v468 = vcvt.s32.f32 %v452
    %v469 = vcvt.s32.f32 %v453
    %v470 = vcvt.s32.f32 %v454
    %v471 = vcvt.s32.f32 %v455
    %v472 = vcvt.s32.f32 %v456
    %v473 = vcvt.s32.f32 %v457
    %v474 = vcvt.s32.f32 %v458
    %v475 = vcvt.s32.f32 %v459
    %v476 = vcvt.s32.f32 %v460
    %v477 = vcvt.s32.f32 %v461
    %v478 = vcvt.s32.f32 %v462
    %v479 = vcvt.s32.f32 %v463
    %vm480 = vcmp.ge.s32.totalorder %v272, 16
    %vm481 = vcmp.ge.s32.totalorder %v273, 16
    %vm482 = vcmp.ge.s32.totalorder %v274, 16
    %vm483 = vcmp.ge.s32.totalorder %v275, 16
    %vm484 = vcmp.ge.s32.totalorder %v276, 16
    %vm485 = vcmp.ge.s32.totalorder %v277, 16
    %vm486 = vcmp.ge.s32.totalorder %v278, 16
    %vm487 = vcmp.ge.s32.totalorder %v279, 16
    %vm488 = vcmp.ge.s32.totalorder %v280, 16
    %vm489 = vcmp.ge.s32.totalorder %v281, 16
    %vm490 = vcmp.ge.s32.totalorder %v282, 16
    %vm491 = vcmp.ge.s32.totalorder %v283, 16
    %vm492 = vcmp.ge.s32.totalorder %v284, 16
    %vm493 = vcmp.ge.s32.totalorder %v285, 16
    %vm494 = vcmp.ge.s32.totalorder %v286, 16
    %vm495 = vcmp.ge.s32.totalorder %v287, 16
    %v496 = vsel %vm480, 1, 0
    %v497 = vsel %vm481, 1, 0
    %v498 = vsel %vm482, 1, 0
    %v499 = vsel %vm483, 1, 0
    %v500 = vsel %vm484, 1, 0
    %v501 = vsel %vm485, 1, 0
    %v502 = vsel %vm486, 1, 0
    %v503 = vsel %vm487, 1, 0
    %v504 = vsel %vm488, 1, 0
    %v505 = vsel %vm489, 1, 0
    %v506 = vsel %vm490, 1, 0
    %v507 = vsel %vm491, 1, 0
    %v508 = vsel %vm492, 1, 0
    %v509 = vsel %vm493, 1, 0
    %v510 = vsel %vm494, 1, 0
    %v511 = vsel %vm495, 1, 0
    %v512 = vcvt.s32.f32 %v496
    %v513 = vcvt.s32.f32 %v497
    %v514 = vcvt.s32.f32 %v498
    %v515 = vcvt.s32.f32 %v499
    %v516 = vcvt.s32.f32 %v500
    %v517 = vcvt.s32.f32 %v501
    %v518 = vcvt.s32.f32 %v502
    %v519 = vcvt.s32.f32 %v503
    %v520 = vcvt.s32.f32 %v504
    %v521 = vcvt.s32.f32 %v505
    %v522 = vcvt.s32.f32 %v506
    %v523 = vcvt.s32.f32 %v507
    %v524 = vcvt.s32.f32 %v508
    %v525 = vcvt.s32.f32 %v509
    %v526 = vcvt.s32.f32 %v510
    %v527 = vcvt.s32.f32 %v511
    %vm528 = vcmp.ge.s32.totalorder %v272, 32
    %vm529 = vcmp.ge.s32.totalorder %v273, 32
    %vm530 = vcmp.ge.s32.totalorder %v274, 32
    %vm531 = vcmp.ge.s32.totalorder %v275, 32
    %vm532 = vcmp.ge.s32.totalorder %v276, 32
    %vm533 = vcmp.ge.s32.totalorder %v277, 32
    %vm534 = vcmp.ge.s32.totalorder %v278, 32
    %vm535 = vcmp.ge.s32.totalorder %v279, 32
    %vm536 = vcmp.ge.s32.totalorder %v280, 32
    %vm537 = vcmp.ge.s32.totalorder %v281, 32
    %vm538 = vcmp.ge.s32.totalorder %v282, 32
    %vm539 = vcmp.ge.s32.totalorder %v283, 32
    %vm540 = vcmp.ge.s32.totalorder %v284, 32
    %vm541 = vcmp.ge.s32.totalorder %v285, 32
    %vm542 = vcmp.ge.s32.totalorder %v286, 32
    %vm543 = vcmp.ge.s32.totalorder %v287, 32
    %v544 = vsel %vm528, 1, 0
    %v545 = vsel %vm529, 1, 0
    %v546 = vsel %vm530, 1, 0
    %v547 = vsel %vm531, 1, 0
    %v548 = vsel %vm532, 1, 0
    %v549 = vsel %vm533, 1, 0
    %v550 = vsel %vm534, 1, 0
    %v551 = vsel %vm535, 1, 0
    %v552 = vsel %vm536, 1, 0
    %v553 = vsel %vm537, 1, 0
    %v554 = vsel %vm538, 1, 0
    %v555 = vsel %vm539, 1, 0
    %v556 = vsel %vm540, 1, 0
    %v557 = vsel %vm541, 1, 0
    %v558 = vsel %vm542, 1, 0
    %v559 = vsel %vm543, 1, 0
    %v560 = vcvt.s32.f32 %v544
    %v561 = vcvt.s32.f32 %v545
    %v562 = vcvt.s32.f32 %v546
    %v563 = vcvt.s32.f32 %v547
    %v564 = vcvt.s32.f32 %v548
    %v565 = vcvt.s32.f32 %v549
    %v566 = vcvt.s32.f32 %v550
    %v567 = vcvt.s32.f32 %v551
    %v568 = vcvt.s32.f32 %v552
    %v569 = vcvt.s32.f32 %v553
    %v570 = vcvt.s32.f32 %v554
    %v571 = vcvt.s32.f32 %v555
    %v572 = vcvt.s32.f32 %v556
    %v573 = vcvt.s32.f32 %v557
    %v574 = vcvt.s32.f32 %v558
    %v575 = vcvt.s32.f32 %v559
    %v576 = vrot.slane %v208, 7
    %v577 = vrot.slane %v211, 7
    %v578 = vrot.slane %v214, 7
    %v579 = vrot.slane %v217, 7
    %v580 = vrot.slane %v220, 7
    %v581 = vrot.slane %v223, 7
    %v582 = vrot.slane %v226, 7
    %v583 = vrot.slane %v229, 7
    %v584 = vrot.slane %v232, 7
    %v585 = vrot.slane %v235, 7
    %v586 = vrot.slane %v238, 7
    %v587 = vrot.slane %v241, 7
    %v588 = vrot.slane %v244, 7
    %v589 = vrot.slane %v247, 7
    %v590 = vrot.slane %v250, 7
    %v591 = vrot.slane %v253, 7
    %vm592 = vcmp.lt.s32.totalorder %v256, 1
    %v593 = vsel %vm592, %v590, %v591
    %v594 = vsel %vm592, %v589, %v590
    %v595 = vsel %vm592, %v588, %v589
    %v596 = vsel %vm592, %v587, %v588
    %v597 = vsel %vm592, %v586, %v587
    %v598 = vsel %vm592, %v585, %v586
    %v599 = vsel %vm592, %v584, %v585
    %v600 = vsel %vm592, %v583, %v584
    %v601 = vsel %vm592, %v582, %v583
    %v602 = vsel %vm592, %v581, %v582
    %v603 = vsel %vm592, %v580, %v581
    %v604 = vsel %vm592, %v579, %v580
    %v605 = vsel %vm592, %v578, %v579
    %v606 = vsel %vm592, %v577, %v578
    %v607 = vsel %vm592, %v576, %v577
    %v608 = vsel %vm592, %v591, %v576
    %v609 = vmul.f32 %v608, %v320
    %v610 = vmul.f32 %v607, %v321
    %v611 = vmul.f32 %v606, %v322
    %v612 = vmul.f32 %v605, %v323
    %v613 = vmul.f32 %v604, %v324
    %v614 = vmul.f32 %v603, %v325
    %v615 = vmul.f32 %v602, %v326
    %v616 = vmul.f32 %v601, %v327
    %v617 = vmul.f32 %v600, %v328
    %v618 = vmul.f32 %v599, %v329
    %v619 = vmul.f32 %v598, %v330
    %v620 = vmul.f32 %v597, %v331
    %v621 = vmul.f32 %v596, %v332
    %v622 = vmul.f32 %v595, %v333
    %v623 = vmul.f32 %v594, %v334
    %v624 = vmul.f32 %v593, %v335
    %v625 = vld [vmem:[#allocation2] sm:$0xff]
    %v626 = vld [vmem:[#allocation2 + $0x8] sm:$0xff]
    %v627 = vld [vmem:[#allocation2 + $0x10] sm:$0xff]
    %v628 = vld [vmem:[#allocation2 + $0x18] sm:$0xff]
    %v629 = vld [vmem:[#allocation2 + $0x20] sm:$0xff]
    %v630 = vld [vmem:[#allocation2 + $0x28] sm:$0xff]
    %v631 = vld [vmem:[#allocation2 + $0x30] sm:$0xff]
    %v632 = vld [vmem:[#allocation2 + $0x38] sm:$0xff]
    %v633 = vld [vmem:[#allocation4] sm:$0xff]
    %v634 = vld [vmem:[#allocation4 + $0x8] sm:$0xff]
    %v635 = vld [vmem:[#allocation4 + $0x10] sm:$0xff]
    %v636 = vld [vmem:[#allocation4 + $0x18] sm:$0xff]
    %v637 = vld [vmem:[#allocation4 + $0x20] sm:$0xff]
    %v638 = vld [vmem:[#allocation4 + $0x28] sm:$0xff]
    %v639 = vld [vmem:[#allocation4 + $0x30] sm:$0xff]
    %v640 = vld [vmem:[#allocation4 + $0x38] sm:$0xff]
    %vm641 = vcmask 523264
    %v643 = vsel %vm641, %v208, 0
    %v646 = vsel %vm641, %v211, 0
    %v649 = vsel %vm641, %v214, 0
    %v652 = vsel %vm641, %v217, 0
    %v655 = vsel %vm641, %v220, 0
    %v658 = vsel %vm641, %v223, 0
    %v661 = vsel %vm641, %v226, 0
    %v664 = vsel %vm641, %v229, 0
    %v667 = vsel %vm641, %v232, 0
    %v670 = vsel %vm641, %v235, 0
    %v673 = vsel %vm641, %v238, 0
    %v676 = vsel %vm641, %v241, 0
    %v679 = vsel %vm641, %v244, 0
    %v682 = vsel %vm641, %v247, 0
    %v685 = vsel %vm641, %v250, 0
    %v688 = vsel %vm641, %v253, 0
    %690 = vmatpush.msra.mxu0 0.0
    %691 = vmatpush.msra.mxu0 0.0
    %692 = vmatpush.msra.mxu0 0.0
    %693 = vmatpush.msra.mxu0 0.0
    %694 = vmatpush.msra.mxu0 0.0
    %695 = vmatpush.msra.mxu0 0.0
    %696 = vmatpush.msra.mxu0 0.0
    %697 = vmatpush.msra.mxu0 0.0
    %698 = vmatpush.msra.mxu0 %v640
    %699 = vmatpush.msra.mxu0 %v639
    %700 = vmatpush.msra.mxu0 %v638
    %701 = vmatpush.msra.mxu0 %v637
    %702 = vmatpush.msra.mxu0 %v636
    %703 = vmatpush.msra.mxu0 %v635
    %704 = vmatpush.msra.mxu0 %v634
    %705 = vmatpush.msra.mxu0 %v633
    %706 = vmatmul.f32.gmra.mxu0 %v643
    %v707 = vpop.f32.mrf.mxu0
    %v708 = vadd.f32 0.0, %v707
    %709 = vmatmul.f32.gmra.mxu0 %v646
    %v710 = vpop.f32.mrf.mxu0
    %v711 = vadd.f32 0.0, %v710
    %712 = vmatmul.f32.gmra.mxu0 %v649
    %v713 = vpop.f32.mrf.mxu0
    %v714 = vadd.f32 0.0, %v713
    %715 = vmatmul.f32.gmra.mxu0 %v652
    %v716 = vpop.f32.mrf.mxu0
    %v717 = vadd.f32 0.0, %v716
    %718 = vmatmul.f32.gmra.mxu0 %v655
    %v719 = vpop.f32.mrf.mxu0
    %v720 = vadd.f32 0.0, %v719
    %721 = vmatmul.f32.gmra.mxu0 %v658
    %v722 = vpop.f32.mrf.mxu0
    %v723 = vadd.f32 0.0, %v722
    %724 = vmatmul.f32.gmra.mxu0 %v661
    %v725 = vpop.f32.mrf.mxu0
    %v726 = vadd.f32 0.0, %v725
    %727 = vmatmul.f32.gmra.mxu0 %v664
    %v728 = vpop.f32.mrf.mxu0
    %v729 = vadd.f32 0.0, %v728
    %730 = vmatmul.f32.gmra.mxu0 %v667
    %v731 = vpop.f32.mrf.mxu0
    %v732 = vadd.f32 0.0, %v731
    %733 = vmatmul.f32.gmra.mxu0 %v670
    %v734 = vpop.f32.mrf.mxu0
    %v735 = vadd.f32 0.0, %v734
    %736 = vmatmul.f32.gmra.mxu0 %v673
    %v737 = vpop.f32.mrf.mxu0
    %v738 = vadd.f32 0.0, %v737
    %739 = vmatmul.f32.gmra.mxu0 %v676
    %v740 = vpop.f32.mrf.mxu0
    %v741 = vadd.f32 0.0, %v740
    %742 = vmatmul.f32.gmra.mxu0 %v679
    %v743 = vpop.f32.mrf.mxu0
    %v744 = vadd.f32 0.0, %v743
    %745 = vmatmul.f32.gmra.mxu0 %v682
    %v746 = vpop.f32.mrf.mxu0
    %v747 = vadd.f32 0.0, %v746
    %748 = vmatmul.f32.gmra.mxu0 %v685
    %v749 = vpop.f32.mrf.mxu0
    %v750 = vadd.f32 0.0, %v749
    %751 = vmatmul.f32.gmra.mxu0 %v688
    %v752 = vpop.f32.mrf.mxu0
    %v753 = vadd.f32 0.0, %v752
    %754 = vdwg.mxu0
    %v756 = vsel %vm641, %v609, 0
    %v759 = vsel %vm641, %v610, 0
    %v762 = vsel %vm641, %v611, 0
    %v765 = vsel %vm641, %v612, 0
    %v768 = vsel %vm641, %v613, 0
    %v771 = vsel %vm641, %v614, 0
    %v774 = vsel %vm641, %v615, 0
    %v777 = vsel %vm641, %v616, 0
    %v780 = vsel %vm641, %v617, 0
    %v783 = vsel %vm641, %v618, 0
    %v786 = vsel %vm641, %v619, 0
    %v789 = vsel %vm641, %v620, 0
    %v792 = vsel %vm641, %v621, 0
    %v795 = vsel %vm641, %v622, 0
    %v798 = vsel %vm641, %v623, 0
    %v801 = vsel %vm641, %v624, 0
    %803 = vmatpush.msra.mxu0 0.0
    %804 = vmatpush.msra.mxu0 0.0
    %805 = vmatpush.msra.mxu0 0.0
    %806 = vmatpush.msra.mxu0 0.0
    %807 = vmatpush.msra.mxu0 0.0
    %808 = vmatpush.msra.mxu0 0.0
    %809 = vmatpush.msra.mxu0 0.0
    %810 = vmatpush.msra.mxu0 0.0
    %811 = vmatpush.msra.mxu0 %v632
    %812 = vmatpush.msra.mxu0 %v631
    %813 = vmatpush.msra.mxu0 %v630
    %814 = vmatpush.msra.mxu0 %v629
    %815 = vmatpush.msra.mxu0 %v628
    %816 = vmatpush.msra.mxu0 %v627
    %817 = vmatpush.msra.mxu0 %v626
    %818 = vmatpush.msra.mxu0 %v625
    %819 = vmatmul.f32.gmra.mxu0 %v756
    %v820 = vpop.f32.mrf.mxu0
    %v821 = vadd.f32 %v708, %v820
    %822 = vmatmul.f32.gmra.mxu0 %v759
    %v823 = vpop.f32.mrf.mxu0
    %v824 = vadd.f32 %v711, %v823
    %825 = vmatmul.f32.gmra.mxu0 %v762
    %v826 = vpop.f32.mrf.mxu0
    %v827 = vadd.f32 %v714, %v826
    %828 = vmatmul.f32.gmra.mxu0 %v765
    %v829 = vpop.f32.mrf.mxu0
    %v830 = vadd.f32 %v717, %v829
    %831 = vmatmul.f32.gmra.mxu0 %v768
    %v832 = vpop.f32.mrf.mxu0
    %v833 = vadd.f32 %v720, %v832
    %834 = vmatmul.f32.gmra.mxu0 %v771
    %v835 = vpop.f32.mrf.mxu0
    %v836 = vadd.f32 %v723, %v835
    %837 = vmatmul.f32.gmra.mxu0 %v774
    %v838 = vpop.f32.mrf.mxu0
    %v839 = vadd.f32 %v726, %v838
    %840 = vmatmul.f32.gmra.mxu0 %v777
    %v841 = vpop.f32.mrf.mxu0
    %v842 = vadd.f32 %v729, %v841
    %843 = vmatmul.f32.gmra.mxu0 %v780
    %v844 = vpop.f32.mrf.mxu0
    %v845 = vadd.f32 %v732, %v844
    %846 = vmatmul.f32.gmra.mxu0 %v783
    %v847 = vpop.f32.mrf.mxu0
    %v848 = vadd.f32 %v735, %v847
    %849 = vmatmul.f32.gmra.mxu0 %v786
    %v850 = vpop.f32.mrf.mxu0
    %v851 = vadd.f32 %v738, %v850
    %852 = vmatmul.f32.gmra.mxu0 %v789
    %v853 = vpop.f32.mrf.mxu0
    %v854 = vadd.f32 %v741, %v853
    %855 = vmatmul.f32.gmra.mxu0 %v792
    %v856 = vpop.f32.mrf.mxu0
    %v857 = vadd.f32 %v744, %v856
    %858 = vmatmul.f32.gmra.mxu0 %v795
    %v859 = vpop.f32.mrf.mxu0
    %v860 = vadd.f32 %v747, %v859
    %861 = vmatmul.f32.gmra.mxu0 %v798
    %v862 = vpop.f32.mrf.mxu0
    %v863 = vadd.f32 %v750, %v862
    %864 = vmatmul.f32.gmra.mxu0 %v801
    %v865 = vpop.f32.mrf.mxu0
    %v866 = vadd.f32 %v753, %v865
    %867 = vdwg.mxu0
    %v868 = vld [vmem:[%s5] sm:$0x1]
    %v870 = vperm.slane %v868, 0
    %v872 = vadd.f32 %v821, %v870
    %v873 = vadd.f32 %v824, %v870
    %v874 = vadd.f32 %v827, %v870
    %v875 = vadd.f32 %v830, %v870
    %v876 = vadd.f32 %v833, %v870
    %v877 = vadd.f32 %v836, %v870
    %v878 = vadd.f32 %v839, %v870
    %v879 = vadd.f32 %v842, %v870
    %v880 = vadd.f32 %v845, %v870
    %v881 = vadd.f32 %v848, %v870
    %v882 = vadd.f32 %v851, %v870
    %v883 = vadd.f32 %v854, %v870
    %v884 = vadd.f32 %v857, %v870
    %v885 = vadd.f32 %v860, %v870
    %v886 = vadd.f32 %v863, %v870
    %v887 = vadd.f32 %v866, %v870
    %v888 = vmax.f32 %v872, 0.0
    %v889 = vmax.f32 %v873, 0.0
    %v890 = vmax.f32 %v874, 0.0
    %v891 = vmax.f32 %v875, 0.0
    %v892 = vmax.f32 %v876, 0.0
    %v893 = vmax.f32 %v877, 0.0
    %v894 = vmax.f32 %v878, 0.0
    %v895 = vmax.f32 %v879, 0.0
    %v896 = vmax.f32 %v880, 0.0
    %v897 = vmax.f32 %v881, 0.0
    %v898 = vmax.f32 %v882, 0.0
    %v899 = vmax.f32 %v883, 0.0
    %v900 = vmax.f32 %v884, 0.0
    %v901 = vmax.f32 %v885, 0.0
    %v902 = vmax.f32 %v886, 0.0
    %v903 = vmax.f32 %v887, 0.0
    %v904 = vrot.slane %v888, 7
    %v905 = vrot.slane %v889, 7
    %v906 = vrot.slane %v890, 7
    %v907 = vrot.slane %v891, 7
    %v908 = vrot.slane %v892, 7
    %v909 = vrot.slane %v893, 7
    %v910 = vrot.slane %v894, 7
    %v911 = vrot.slane %v895, 7
    %v912 = vrot.slane %v896, 7
    %v913 = vrot.slane %v897, 7
    %v914 = vrot.slane %v898, 7
    %v915 = vrot.slane %v899, 7
    %v916 = vrot.slane %v900, 7
    %v917 = vrot.slane %v901, 7
    %v918 = vrot.slane %v902, 7
    %v919 = vrot.slane %v903, 7
    %v920 = vsel %vm592, %v918, %v919
    %v921 = vsel %vm592, %v917, %v918
    %v922 = vsel %vm592, %v916, %v917
    %v923 = vsel %vm592, %v915, %v916
    %v924 = vsel %vm592, %v914, %v915
    %v925 = vsel %vm592, %v913, %v914
    %v926 = vsel %vm592, %v912, %v913
    %v927 = vsel %vm592, %v911, %v912
    %v928 = vsel %vm592, %v910, %v911
    %v929 = vsel %vm592, %v909, %v910
    %v930 = vsel %vm592, %v908, %v909
    %v931 = vsel %vm592, %v907, %v908
    %v932 = vsel %vm592, %v906, %v907
    %v933 = vsel %vm592, %v905, %v906
    %v934 = vsel %vm592, %v904, %v905
    %v935 = vsel %vm592, %v919, %v904
    %v936 = vmul.f32 %v935, %v320
    %v937 = vmul.f32 %v934, %v321
    %v938 = vmul.f32 %v933, %v322
    %v939 = vmul.f32 %v932, %v323
    %v940 = vmul.f32 %v931, %v324
    %v941 = vmul.f32 %v930, %v325
    %v942 = vmul.f32 %v929, %v326
    %v943 = vmul.f32 %v928, %v327
    %v944 = vmul.f32 %v927, %v328
    %v945 = vmul.f32 %v926, %v329
    %v946 = vmul.f32 %v925, %v330
    %v947 = vmul.f32 %v924, %v331
    %v948 = vmul.f32 %v923, %v332
    %v949 = vmul.f32 %v922, %v333
    %v950 = vmul.f32 %v921, %v334
    %v951 = vmul.f32 %v920, %v335
    %v952 = vld [vmem:[#allocation6] sm:$0xff]
    %v953 = vld [vmem:[#allocation6 + $0x8] sm:$0xff]
    %v954 = vld [vmem:[#allocation6 + $0x10] sm:$0xff]
    %v955 = vld [vmem:[#allocation6 + $0x18] sm:$0xff]
    %v956 = vld [vmem:[#allocation6 + $0x20] sm:$0xff]
    %v957 = vld [vmem:[#allocation6 + $0x28] sm:$0xff]
    %v958 = vld [vmem:[#allocation6 + $0x30] sm:$0xff]
    %v959 = vld [vmem:[#allocation6 + $0x38] sm:$0xff]
    %v960 = vld [vmem:[#allocation7] sm:$0xff]
    %v961 = vld [vmem:[#allocation7 + $0x8] sm:$0xff]
    %v962 = vld [vmem:[#allocation7 + $0x10] sm:$0xff]
    %v963 = vld [vmem:[#allocation7 + $0x18] sm:$0xff]
    %v964 = vld [vmem:[#allocation7 + $0x20] sm:$0xff]
    %v965 = vld [vmem:[#allocation7 + $0x28] sm:$0xff]
    %v966 = vld [vmem:[#allocation7 + $0x30] sm:$0xff]
    %v967 = vld [vmem:[#allocation7 + $0x38] sm:$0xff]
    %v969 = vsel %vm641, %v888, 0
    %v972 = vsel %vm641, %v889, 0
    %v975 = vsel %vm641, %v890, 0
    %v978 = vsel %vm641, %v891, 0
    %v981 = vsel %vm641, %v892, 0
    %v984 = vsel %vm641, %v893, 0
    %v987 = vsel %vm641, %v894, 0
    %v990 = vsel %vm641, %v895, 0
    %v993 = vsel %vm641, %v896, 0
    %v996 = vsel %vm641, %v897, 0
    %v999 = vsel %vm641, %v898, 0
    %v1002 = vsel %vm641, %v899, 0
    %v1005 = vsel %vm641, %v900, 0
    %v1008 = vsel %vm641, %v901, 0
    %v1011 = vsel %vm641, %v902, 0
    %v1014 = vsel %vm641, %v903, 0
    %1016 = vmatpush.msra.mxu0 0.0
    %1017 = vmatpush.msra.mxu0 0.0
    %1018 = vmatpush.msra.mxu0 0.0
    %1019 = vmatpush.msra.mxu0 0.0
    %1020 = vmatpush.msra.mxu0 0.0
    %1021 = vmatpush.msra.mxu0 0.0
    %1022 = vmatpush.msra.mxu0 0.0
    %1023 = vmatpush.msra.mxu0 0.0
    %1024 = vmatpush.msra.mxu0 %v967
    %1025 = vmatpush.msra.mxu0 %v966
    %1026 = vmatpush.msra.mxu0 %v965
    %1027 = vmatpush.msra.mxu0 %v964
    %1028 = vmatpush.msra.mxu0 %v963
    %1029 = vmatpush.msra.mxu0 %v962
    %1030 = vmatpush.msra.mxu0 %v961
    %1031 = vmatpush.msra.mxu0 %v960
    %1032 = vmatmul.f32.gmra.mxu0 %v969
    %v1033 = vpop.f32.mrf.mxu0
    %v1034 = vadd.f32 0.0, %v1033
    %1035 = vmatmul.f32.gmra.mxu0 %v972
    %v1036 = vpop.f32.mrf.mxu0
    %v1037 = vadd.f32 0.0, %v1036
    %1038 = vmatmul.f32.gmra.mxu0 %v975
    %v1039 = vpop.f32.mrf.mxu0
    %v1040 = vadd.f32 0.0, %v1039
    %1041 = vmatmul.f32.gmra.mxu0 %v978
    %v1042 = vpop.f32.mrf.mxu0
    %v1043 = vadd.f32 0.0, %v1042
    %1044 = vmatmul.f32.gmra.mxu0 %v981
    %v1045 = vpop.f32.mrf.mxu0
    %v1046 = vadd.f32 0.0, %v1045
    %1047 = vmatmul.f32.gmra.mxu0 %v984
    %v1048 = vpop.f32.mrf.mxu0
    %v1049 = vadd.f32 0.0, %v1048
    %1050 = vmatmul.f32.gmra.mxu0 %v987
    %v1051 = vpop.f32.mrf.mxu0
    %v1052 = vadd.f32 0.0, %v1051
    %1053 = vmatmul.f32.gmra.mxu0 %v990
    %v1054 = vpop.f32.mrf.mxu0
    %v1055 = vadd.f32 0.0, %v1054
    %1056 = vmatmul.f32.gmra.mxu0 %v993
    %v1057 = vpop.f32.mrf.mxu0
    %v1058 = vadd.f32 0.0, %v1057
    %1059 = vmatmul.f32.gmra.mxu0 %v996
    %v1060 = vpop.f32.mrf.mxu0
    %v1061 = vadd.f32 0.0, %v1060
    %1062 = vmatmul.f32.gmra.mxu0 %v999
    %v1063 = vpop.f32.mrf.mxu0
    %v1064 = vadd.f32 0.0, %v1063
    %1065 = vmatmul.f32.gmra.mxu0 %v1002
    %v1066 = vpop.f32.mrf.mxu0
    %v1067 = vadd.f32 0.0, %v1066
    %1068 = vmatmul.f32.gmra.mxu0 %v1005
    %v1069 = vpop.f32.mrf.mxu0
    %v1070 = vadd.f32 0.0, %v1069
    %1071 = vmatmul.f32.gmra.mxu0 %v1008
    %v1072 = vpop.f32.mrf.mxu0
    %v1073 = vadd.f32 0.0, %v1072
    %1074 = vmatmul.f32.gmra.mxu0 %v1011
    %v1075 = vpop.f32.mrf.mxu0
    %v1076 = vadd.f32 0.0, %v1075
    %1077 = vmatmul.f32.gmra.mxu0 %v1014
    %v1078 = vpop.f32.mrf.mxu0
    %v1079 = vadd.f32 0.0, %v1078
    %1080 = vdwg.mxu0
    %v1082 = vsel %vm641, %v936, 0
    %v1085 = vsel %vm641, %v937, 0
    %v1088 = vsel %vm641, %v938, 0
    %v1091 = vsel %vm641, %v939, 0
    %v1094 = vsel %vm641, %v940, 0
    %v1097 = vsel %vm641, %v941, 0
    %v1100 = vsel %vm641, %v942, 0
    %v1103 = vsel %vm641, %v943, 0
    %v1106 = vsel %vm641, %v944, 0
    %v1109 = vsel %vm641, %v945, 0
    %v1112 = vsel %vm641, %v946, 0
    %v1115 = vsel %vm641, %v947, 0
    %v1118 = vsel %vm641, %v948, 0
    %v1121 = vsel %vm641, %v949, 0
    %v1124 = vsel %vm641, %v950, 0
    %v1127 = vsel %vm641, %v951, 0
    %1129 = vmatpush.msra.mxu0 0.0
    %1130 = vmatpush.msra.mxu0 0.0
    %1131 = vmatpush.msra.mxu0 0.0
    %1132 = vmatpush.msra.mxu0 0.0
    %1133 = vmatpush.msra.mxu0 0.0
    %1134 = vmatpush.msra.mxu0 0.0
    %1135 = vmatpush.msra.mxu0 0.0
    %1136 = vmatpush.msra.mxu0 0.0
    %1137 = vmatpush.msra.mxu0 %v959
    %1138 = vmatpush.msra.mxu0 %v958
    %1139 = vmatpush.msra.mxu0 %v957
    %1140 = vmatpush.msra.mxu0 %v956
    %1141 = vmatpush.msra.mxu0 %v955
    %1142 = vmatpush.msra.mxu0 %v954
    %1143 = vmatpush.msra.mxu0 %v953
    %1144 = vmatpush.msra.mxu0 %v952
    %1145 = vmatmul.f32.gmra.mxu0 %v1082
    %v1146 = vpop.f32.mrf.mxu0
    %v1147 = vadd.f32 %v1034, %v1146
    %1148 = vmatmul.f32.gmra.mxu0 %v1085
    %v1149 = vpop.f32.mrf.mxu0
    %v1150 = vadd.f32 %v1037, %v1149
    %1151 = vmatmul.f32.gmra.mxu0 %v1088
    %v1152 = vpop.f32.mrf.mxu0
    %v1153 = vadd.f32 %v1040, %v1152
    %1154 = vmatmul.f32.gmra.mxu0 %v1091
    %v1155 = vpop.f32.mrf.mxu0
    %v1156 = vadd.f32 %v1043, %v1155
    %1157 = vmatmul.f32.gmra.mxu0 %v1094
    %v1158 = vpop.f32.mrf.mxu0
    %v1159 = vadd.f32 %v1046, %v1158
    %1160 = vmatmul.f32.gmra.mxu0 %v1097
    %v1161 = vpop.f32.mrf.mxu0
    %v1162 = vadd.f32 %v1049, %v1161
    %1163 = vmatmul.f32.gmra.mxu0 %v1100
    %v1164 = vpop.f32.mrf.mxu0
    %v1165 = vadd.f32 %v1052, %v1164
    %1166 = vmatmul.f32.gmra.mxu0 %v1103
    %v1167 = vpop.f32.mrf.mxu0
    %v1168 = vadd.f32 %v1055, %v1167
    %1169 = vmatmul.f32.gmra.mxu0 %v1106
    %v1170 = vpop.f32.mrf.mxu0
    %v1171 = vadd.f32 %v1058, %v1170
    %1172 = vmatmul.f32.gmra.mxu0 %v1109
    %v1173 = vpop.f32.mrf.mxu0
    %v1174 = vadd.f32 %v1061, %v1173
    %1175 = vmatmul.f32.gmra.mxu0 %v1112
    %v1176 = vpop.f32.mrf.mxu0
    %v1177 = vadd.f32 %v1064, %v1176
    %1178 = vmatmul.f32.gmra.mxu0 %v1115
    %v1179 = vpop.f32.mrf.mxu0
    %v1180 = vadd.f32 %v1067, %v1179
    %1181 = vmatmul.f32.gmra.mxu0 %v1118
    %v1182 = vpop.f32.mrf.mxu0
    %v1183 = vadd.f32 %v1070, %v1182
    %1184 = vmatmul.f32.gmra.mxu0 %v1121
    %v1185 = vpop.f32.mrf.mxu0
    %v1186 = vadd.f32 %v1073, %v1185
    %1187 = vmatmul.f32.gmra.mxu0 %v1124
    %v1188 = vpop.f32.mrf.mxu0
    %v1189 = vadd.f32 %v1076, %v1188
    %1190 = vmatmul.f32.gmra.mxu0 %v1127
    %v1191 = vpop.f32.mrf.mxu0
    %v1192 = vadd.f32 %v1079, %v1191
    %1193 = vdwg.mxu0
    %v1194 = vld [vmem:[%s8] sm:$0x1]
    %v1196 = vperm.slane %v1194, 0
    %v1198 = vadd.f32 %v1147, %v1196
    %v1199 = vadd.f32 %v1150, %v1196
    %v1200 = vadd.f32 %v1153, %v1196
    %v1201 = vadd.f32 %v1156, %v1196
    %v1202 = vadd.f32 %v1159, %v1196
    %v1203 = vadd.f32 %v1162, %v1196
    %v1204 = vadd.f32 %v1165, %v1196
    %v1205 = vadd.f32 %v1168, %v1196
    %v1206 = vadd.f32 %v1171, %v1196
    %v1207 = vadd.f32 %v1174, %v1196
    %v1208 = vadd.f32 %v1177, %v1196
    %v1209 = vadd.f32 %v1180, %v1196
    %v1210 = vadd.f32 %v1183, %v1196
    %v1211 = vadd.f32 %v1186, %v1196
    %v1212 = vadd.f32 %v1189, %v1196
    %v1213 = vadd.f32 %v1192, %v1196
    %v1214 = vmax.f32 %v1198, 0.0
    %v1215 = vmax.f32 %v1199, 0.0
    %v1216 = vmax.f32 %v1200, 0.0
    %v1217 = vmax.f32 %v1201, 0.0
    %v1218 = vmax.f32 %v1202, 0.0
    %v1219 = vmax.f32 %v1203, 0.0
    %v1220 = vmax.f32 %v1204, 0.0
    %v1221 = vmax.f32 %v1205, 0.0
    %v1222 = vmax.f32 %v1206, 0.0
    %v1223 = vmax.f32 %v1207, 0.0
    %v1224 = vmax.f32 %v1208, 0.0
    %v1225 = vmax.f32 %v1209, 0.0
    %v1226 = vmax.f32 %v1210, 0.0
    %v1227 = vmax.f32 %v1211, 0.0
    %v1228 = vmax.f32 %v1212, 0.0
    %v1229 = vmax.f32 %v1213, 0.0
    %v1230 = vadd.f32 %v1214, 0.0
    %v1231 = vadd.f32 %v1215, 0.0
    %v1232 = vadd.f32 %v1216, 0.0
    %v1233 = vadd.f32 %v1217, 0.0
    %v1234 = vadd.f32 %v1218, 0.0
    %v1235 = vadd.f32 %v1219, 0.0
    %v1236 = vadd.f32 %v1220, 0.0
    %v1237 = vadd.f32 %v1221, 0.0
    %v1238 = vadd.f32 %v1222, 0.0
    %v1239 = vadd.f32 %v1223, 0.0
    %v1240 = vadd.f32 %v1224, 0.0
    %v1241 = vadd.f32 %v1225, 0.0
    %v1242 = vadd.f32 %v1226, 0.0
    %v1243 = vadd.f32 %v1227, 0.0
    %v1244 = vadd.f32 %v1228, 0.0
    %v1245 = vadd.f32 %v1229, 0.0
    %v1246 = vld [vmem:[#allocation9] sm:$0xff]
    %v1247 = vld [vmem:[#allocation9 + $0x8] sm:$0xff]
    %v1248 = vld [vmem:[#allocation9 + $0x10] sm:$0xff]
    %v1249 = vld [vmem:[#allocation9 + $0x18] sm:$0xff]
    %v1250 = vld [vmem:[#allocation9 + $0x20] sm:$0xff]
    %v1251 = vld [vmem:[#allocation9 + $0x28] sm:$0xff]
    %v1252 = vld [vmem:[#allocation9 + $0x30] sm:$0xff]
    %v1253 = vld [vmem:[#allocation9 + $0x38] sm:$0xff]
    %v1254 = vld [vmem:[%s10] sm:$0x1]
    %v1256 = vperm.slane %v1254, 0
    %v1259 = vsel %vm641, %v1214, 0
    %v1262 = vsel %vm641, %v1215, 0
    %v1265 = vsel %vm641, %v1216, 0
    %v1268 = vsel %vm641, %v1217, 0
    %v1271 = vsel %vm641, %v1218, 0
    %v1274 = vsel %vm641, %v1219, 0
    %v1277 = vsel %vm641, %v1220, 0
    %v1280 = vsel %vm641, %v1221, 0
    %v1283 = vsel %vm641, %v1222, 0
    %v1286 = vsel %vm641, %v1223, 0
    %v1289 = vsel %vm641, %v1224, 0
    %v1292 = vsel %vm641, %v1225, 0
    %v1295 = vsel %vm641, %v1226, 0
    %v1298 = vsel %vm641, %v1227, 0
    %v1301 = vsel %vm641, %v1228, 0
    %v1304 = vsel %vm641, %v1229, 0
    %1306 = vmatpush.msra.mxu0 0.0
    %1307 = vmatpush.msra.mxu0 0.0
    %1308 = vmatpush.msra.mxu0 0.0
    %1309 = vmatpush.msra.mxu0 0.0
    %1310 = vmatpush.msra.mxu0 0.0
    %1311 = vmatpush.msra.mxu0 0.0
    %1312 = vmatpush.msra.mxu0 0.0
    %1313 = vmatpush.msra.mxu0 0.0
    %1314 = vmatpush.msra.mxu0 %v1253
    %1315 = vmatpush.msra.mxu0 %v1252
    %1316 = vmatpush.msra.mxu0 %v1251
    %1317 = vmatpush.msra.mxu0 %v1250
    %1318 = vmatpush.msra.mxu0 %v1249
    %1319 = vmatpush.msra.mxu0 %v1248
    %1320 = vmatpush.msra.mxu0 %v1247
    %1321 = vmatpush.msra.mxu0 %v1246
    %1322 = vmatmul.f32.gmra.mxu0 %v1259
    %v1323 = vpop.f32.mrf.mxu0
    %v1324 = vadd.f32 %v1256, %v1323
    %1325 = vmatmul.f32.gmra.mxu0 %v1262
    %v1326 = vpop.f32.mrf.mxu0
    %v1327 = vadd.f32 %v1256, %v1326
    %1328 = vmatmul.f32.gmra.mxu0 %v1265
    %v1329 = vpop.f32.mrf.mxu0
    %v1330 = vadd.f32 %v1256, %v1329
    %1331 = vmatmul.f32.gmra.mxu0 %v1268
    %v1332 = vpop.f32.mrf.mxu0
    %v1333 = vadd.f32 %v1256, %v1332
    %1334 = vmatmul.f32.gmra.mxu0 %v1271
    %v1335 = vpop.f32.mrf.mxu0
    %v1336 = vadd.f32 %v1256, %v1335
    %1337 = vmatmul.f32.gmra.mxu0 %v1274
    %v1338 = vpop.f32.mrf.mxu0
    %v1339 = vadd.f32 %v1256, %v1338
    %1340 = vmatmul.f32.gmra.mxu0 %v1277
    %v1341 = vpop.f32.mrf.mxu0
    %v1342 = vadd.f32 %v1256, %v1341
    %1343 = vmatmul.f32.gmra.mxu0 %v1280
    %v1344 = vpop.f32.mrf.mxu0
    %v1345 = vadd.f32 %v1256, %v1344
    %1346 = vmatmul.f32.gmra.mxu0 %v1283
    %v1347 = vpop.f32.mrf.mxu0
    %v1348 = vadd.f32 %v1256, %v1347
    %1349 = vmatmul.f32.gmra.mxu0 %v1286
    %v1350 = vpop.f32.mrf.mxu0
    %v1351 = vadd.f32 %v1256, %v1350
    %1352 = vmatmul.f32.gmra.mxu0 %v1289
    %v1353 = vpop.f32.mrf.mxu0
    %v1354 = vadd.f32 %v1256, %v1353
    %1355 = vmatmul.f32.gmra.mxu0 %v1292
    %v1356 = vpop.f32.mrf.mxu0
    %v1357 = vadd.f32 %v1256, %v1356
    %1358 = vmatmul.f32.gmra.mxu0 %v1295
    %v1359 = vpop.f32.mrf.mxu0
    %v1360 = vadd.f32 %v1256, %v1359
    %1361 = vmatmul.f32.gmra.mxu0 %v1298
    %v1362 = vpop.f32.mrf.mxu0
    %v1363 = vadd.f32 %v1256, %v1362
    %1364 = vmatmul.f32.gmra.mxu0 %v1301
    %v1365 = vpop.f32.mrf.mxu0
    %v1366 = vadd.f32 %v1256, %v1365
    %1367 = vmatmul.f32.gmra.mxu0 %v1304
    %v1368 = vpop.f32.mrf.mxu0
    %v1369 = vadd.f32 %v1256, %v1368
    %1370 = vdwg.mxu0
    %v1371 = vrot.slane %v1324, 6
    %v1372 = vrot.slane %v1327, 6
    %v1373 = vrot.slane %v1330, 6
    %v1374 = vrot.slane %v1333, 6
    %v1375 = vrot.slane %v1336, 6
    %v1376 = vrot.slane %v1339, 6
    %v1377 = vrot.slane %v1342, 6
    %v1378 = vrot.slane %v1345, 6
    %v1379 = vrot.slane %v1348, 6
    %v1380 = vrot.slane %v1351, 6
    %v1381 = vrot.slane %v1354, 6
    %v1382 = vrot.slane %v1357, 6
    %v1383 = vrot.slane %v1360, 6
    %v1384 = vrot.slane %v1363, 6
    %v1385 = vrot.slane %v1366, 6
    %v1386 = vrot.slane %v1369, 6
    %vm1387 = vcmp.lt.s32.totalorder %v256, 2
    %v1388 = vsel %vm1387, %v1385, %v1386
    %v1389 = vsel %vm1387, %v1384, %v1385
    %v1390 = vsel %vm1387, %v1383, %v1384
    %v1391 = vsel %vm1387, %v1382, %v1383
    %v1392 = vsel %vm1387, %v1381, %v1382
    %v1393 = vsel %vm1387, %v1380, %v1381
    %v1394 = vsel %vm1387, %v1379, %v1380
    %v1395 = vsel %vm1387, %v1378, %v1379
    %v1396 = vsel %vm1387, %v1377, %v1378
    %v1397 = vsel %vm1387, %v1376, %v1377
    %v1398 = vsel %vm1387, %v1375, %v1376
    %v1399 = vsel %vm1387, %v1374, %v1375
    %v1400 = vsel %vm1387, %v1373, %v1374
    %v1401 = vsel %vm1387, %v1372, %v1373
    %v1402 = vsel %vm1387, %v1371, %v1372
    %v1403 = vsel %vm1387, %v1386, %v1371
    %v1404 = vmul.f32 %v1403, %v368
    %v1405 = vmul.f32 %v1402, %v369
    %v1406 = vmul.f32 %v1401, %v370
    %v1407 = vmul.f32 %v1400, %v371
    %v1408 = vmul.f32 %v1399, %v372
    %v1409 = vmul.f32 %v1398, %v373
    %v1410 = vmul.f32 %v1397, %v374
    %v1411 = vmul.f32 %v1396, %v375
    %v1412 = vmul.f32 %v1395, %v376
    %v1413 = vmul.f32 %v1394, %v377
    %v1414 = vmul.f32 %v1393, %v378
    %v1415 = vmul.f32 %v1392, %v379
    %v1416 = vmul.f32 %v1391, %v380
    %v1417 = vmul.f32 %v1390, %v381
    %v1418 = vmul.f32 %v1389, %v382
    %v1419 = vmul.f32 %v1388, %v383
    %s1420 = scalar_lea.vmem [#allocation2], 64
    %v1421 = vld [vmem:[%s1420] sm:$0xff]
    %v1422 = vld [vmem:[%s1420 + $0x8] sm:$0xff]
    %v1423 = vld [vmem:[%s1420 + $0x10] sm:$0xff]
    %v1424 = vld [vmem:[%s1420 + $0x18] sm:$0xff]
    %v1425 = vld [vmem:[%s1420 + $0x20] sm:$0xff]
    %v1426 = vld [vmem:[%s1420 + $0x28] sm:$0xff]
    %v1427 = vld [vmem:[%s1420 + $0x30] sm:$0xff]
    %v1428 = vld [vmem:[%s1420 + $0x38] sm:$0xff]
    %s1429 = scalar_lea.vmem [#allocation4], 64
    %v1430 = vld [vmem:[%s1429] sm:$0xff]
    %v1431 = vld [vmem:[%s1429 + $0x8] sm:$0xff]
    %v1432 = vld [vmem:[%s1429 + $0x10] sm:$0xff]
    %v1433 = vld [vmem:[%s1429 + $0x18] sm:$0xff]
    %v1434 = vld [vmem:[%s1429 + $0x20] sm:$0xff]
    %v1435 = vld [vmem:[%s1429 + $0x28] sm:$0xff]
    %v1436 = vld [vmem:[%s1429 + $0x30] sm:$0xff]
    %v1437 = vld [vmem:[%s1429 + $0x38] sm:$0xff]
    %v1439 = vsel %vm641, %v1324, 0
    %v1442 = vsel %vm641, %v1327, 0
    %v1445 = vsel %vm641, %v1330, 0
    %v1448 = vsel %vm641, %v1333, 0
    %v1451 = vsel %vm641, %v1336, 0
    %v1454 = vsel %vm641, %v1339, 0
    %v1457 = vsel %vm641, %v1342, 0
    %v1460 = vsel %vm641, %v1345, 0
    %v1463 = vsel %vm641, %v1348, 0
    %v1466 = vsel %vm641, %v1351, 0
    %v1469 = vsel %vm641, %v1354, 0
    %v1472 = vsel %vm641, %v1357, 0
    %v1475 = vsel %vm641, %v1360, 0
    %v1478 = vsel %vm641, %v1363, 0
    %v1481 = vsel %vm641, %v1366, 0
    %v1484 = vsel %vm641, %v1369, 0
    %1486 = vmatpush.msra.mxu0 0.0
    %1487 = vmatpush.msra.mxu0 0.0
    %1488 = vmatpush.msra.mxu0 0.0
    %1489 = vmatpush.msra.mxu0 0.0
    %1490 = vmatpush.msra.mxu0 0.0
    %1491 = vmatpush.msra.mxu0 0.0
    %1492 = vmatpush.msra.mxu0 0.0
    %1493 = vmatpush.msra.mxu0 0.0
    %1494 = vmatpush.msra.mxu0 %v1437
    %1495 = vmatpush.msra.mxu0 %v1436
    %1496 = vmatpush.msra.mxu0 %v1435
    %1497 = vmatpush.msra.mxu0 %v1434
    %1498 = vmatpush.msra.mxu0 %v1433
    %1499 = vmatpush.msra.mxu0 %v1432
    %1500 = vmatpush.msra.mxu0 %v1431
    %1501 = vmatpush.msra.mxu0 %v1430
    %1502 = vmatmul.f32.gmra.mxu0 %v1439
    %v1503 = vpop.f32.mrf.mxu0
    %v1504 = vadd.f32 0.0, %v1503
    %1505 = vmatmul.f32.gmra.mxu0 %v1442
    %v1506 = vpop.f32.mrf.mxu0
    %v1507 = vadd.f32 0.0, %v1506
    %1508 = vmatmul.f32.gmra.mxu0 %v1445
    %v1509 = vpop.f32.mrf.mxu0
    %v1510 = vadd.f32 0.0, %v1509
    %1511 = vmatmul.f32.gmra.mxu0 %v1448
    %v1512 = vpop.f32.mrf.mxu0
    %v1513 = vadd.f32 0.0, %v1512
    %1514 = vmatmul.f32.gmra.mxu0 %v1451
    %v1515 = vpop.f32.mrf.mxu0
    %v1516 = vadd.f32 0.0, %v1515
    %1517 = vmatmul.f32.gmra.mxu0 %v1454
    %v1518 = vpop.f32.mrf.mxu0
    %v1519 = vadd.f32 0.0, %v1518
    %1520 = vmatmul.f32.gmra.mxu0 %v1457
    %v1521 = vpop.f32.mrf.mxu0
    %v1522 = vadd.f32 0.0, %v1521
    %1523 = vmatmul.f32.gmra.mxu0 %v1460
    %v1524 = vpop.f32.mrf.mxu0
    %v1525 = vadd.f32 0.0, %v1524
    %1526 = vmatmul.f32.gmra.mxu0 %v1463
    %v1527 = vpop.f32.mrf.mxu0
    %v1528 = vadd.f32 0.0, %v1527
    %1529 = vmatmul.f32.gmra.mxu0 %v1466
    %v1530 = vpop.f32.mrf.mxu0
    %v1531 = vadd.f32 0.0, %v1530
    %1532 = vmatmul.f32.gmra.mxu0 %v1469
    %v1533 = vpop.f32.mrf.mxu0
    %v1534 = vadd.f32 0.0, %v1533
    %1535 = vmatmul.f32.gmra.mxu0 %v1472
    %v1536 = vpop.f32.mrf.mxu0
    %v1537 = vadd.f32 0.0, %v1536
    %1538 = vmatmul.f32.gmra.mxu0 %v1475
    %v1539 = vpop.f32.mrf.mxu0
    %v1540 = vadd.f32 0.0, %v1539
    %1541 = vmatmul.f32.gmra.mxu0 %v1478
    %v1542 = vpop.f32.mrf.mxu0
    %v1543 = vadd.f32 0.0, %v1542
    %1544 = vmatmul.f32.gmra.mxu0 %v1481
    %v1545 = vpop.f32.mrf.mxu0
    %v1546 = vadd.f32 0.0, %v1545
    %1547 = vmatmul.f32.gmra.mxu0 %v1484
    %v1548 = vpop.f32.mrf.mxu0
    %v1549 = vadd.f32 0.0, %v1548
    %1550 = vdwg.mxu0
    %v1552 = vsel %vm641, %v1404, 0
    %v1555 = vsel %vm641, %v1405, 0
    %v1558 = vsel %vm641, %v1406, 0
    %v1561 = vsel %vm641, %v1407, 0
    %v1564 = vsel %vm641, %v1408, 0
    %v1567 = vsel %vm641, %v1409, 0
    %v1570 = vsel %vm641, %v1410, 0
    %v1573 = vsel %vm641, %v1411, 0
    %v1576 = vsel %vm641, %v1412, 0
    %v1579 = vsel %vm641, %v1413, 0
    %v1582 = vsel %vm641, %v1414, 0
    %v1585 = vsel %vm641, %v1415, 0
    %v1588 = vsel %vm641, %v1416, 0
    %v1591 = vsel %vm641, %v1417, 0
    %v1594 = vsel %vm641, %v1418, 0
    %v1597 = vsel %vm641, %v1419, 0
    %1599 = vmatpush.msra.mxu0 0.0
    %1600 = vmatpush.msra.mxu0 0.0
    %1601 = vmatpush.msra.mxu0 0.0
    %1602 = vmatpush.msra.mxu0 0.0
    %1603 = vmatpush.msra.mxu0 0.0
    %1604 = vmatpush.msra.mxu0 0.0
    %1605 = vmatpush.msra.mxu0 0.0
    %1606 = vmatpush.msra.mxu0 0.0
    %1607 = vmatpush.msra.mxu0 %v1428
    %1608 = vmatpush.msra.mxu0 %v1427
    %1609 = vmatpush.msra.mxu0 %v1426
    %1610 = vmatpush.msra.mxu0 %v1425
    %1611 = vmatpush.msra.mxu0 %v1424
    %1612 = vmatpush.msra.mxu0 %v1423
    %1613 = vmatpush.msra.mxu0 %v1422
    %1614 = vmatpush.msra.mxu0 %v1421
    %1615 = vmatmul.f32.gmra.mxu0 %v1552
    %v1616 = vpop.f32.mrf.mxu0
    %v1617 = vadd.f32 %v1504, %v1616
    %1618 = vmatmul.f32.gmra.mxu0 %v1555
    %v1619 = vpop.f32.mrf.mxu0
    %v1620 = vadd.f32 %v1507, %v1619
    %1621 = vmatmul.f32.gmra.mxu0 %v1558
    %v1622 = vpop.f32.mrf.mxu0
    %v1623 = vadd.f32 %v1510, %v1622
    %1624 = vmatmul.f32.gmra.mxu0 %v1561
    %v1625 = vpop.f32.mrf.mxu0
    %v1626 = vadd.f32 %v1513, %v1625
    %1627 = vmatmul.f32.gmra.mxu0 %v1564
    %v1628 = vpop.f32.mrf.mxu0
    %v1629 = vadd.f32 %v1516, %v1628
    %1630 = vmatmul.f32.gmra.mxu0 %v1567
    %v1631 = vpop.f32.mrf.mxu0
    %v1632 = vadd.f32 %v1519, %v1631
    %1633 = vmatmul.f32.gmra.mxu0 %v1570
    %v1634 = vpop.f32.mrf.mxu0
    %v1635 = vadd.f32 %v1522, %v1634
    %1636 = vmatmul.f32.gmra.mxu0 %v1573
    %v1637 = vpop.f32.mrf.mxu0
    %v1638 = vadd.f32 %v1525, %v1637
    %1639 = vmatmul.f32.gmra.mxu0 %v1576
    %v1640 = vpop.f32.mrf.mxu0
    %v1641 = vadd.f32 %v1528, %v1640
    %1642 = vmatmul.f32.gmra.mxu0 %v1579
    %v1643 = vpop.f32.mrf.mxu0
    %v1644 = vadd.f32 %v1531, %v1643
    %1645 = vmatmul.f32.gmra.mxu0 %v1582
    %v1646 = vpop.f32.mrf.mxu0
    %v1647 = vadd.f32 %v1534, %v1646
    %1648 = vmatmul.f32.gmra.mxu0 %v1585
    %v1649 = vpop.f32.mrf.mxu0
    %v1650 = vadd.f32 %v1537, %v1649
    %1651 = vmatmul.f32.gmra.mxu0 %v1588
    %v1652 = vpop.f32.mrf.mxu0
    %v1653 = vadd.f32 %v1540, %v1652
    %1654 = vmatmul.f32.gmra.mxu0 %v1591
    %v1655 = vpop.f32.mrf.mxu0
    %v1656 = vadd.f32 %v1543, %v1655
    %1657 = vmatmul.f32.gmra.mxu0 %v1594
    %v1658 = vpop.f32.mrf.mxu0
    %v1659 = vadd.f32 %v1546, %v1658
    %1660 = vmatmul.f32.gmra.mxu0 %v1597
    %v1661 = vpop.f32.mrf.mxu0
    %v1662 = vadd.f32 %v1549, %v1661
    %1663 = vdwg.mxu0
    %s1664 = scalar_lea.vmem %s5, 1
    %v1665 = vld [vmem:[%s1664] sm:$0x1]
    %v1667 = vperm.slane %v1665, 0
    %v1669 = vadd.f32 %v1617, %v1667
    %v1670 = vadd.f32 %v1620, %v1667
    %v1671 = vadd.f32 %v1623, %v1667
    %v1672 = vadd.f32 %v1626, %v1667
    %v1673 = vadd.f32 %v1629, %v1667
    %v1674 = vadd.f32 %v1632, %v1667
    %v1675 = vadd.f32 %v1635, %v1667
    %v1676 = vadd.f32 %v1638, %v1667
    %v1677 = vadd.f32 %v1641, %v1667
    %v1678 = vadd.f32 %v1644, %v1667
    %v1679 = vadd.f32 %v1647, %v1667
    %v1680 = vadd.f32 %v1650, %v1667
    %v1681 = vadd.f32 %v1653, %v1667
    %v1682 = vadd.f32 %v1656, %v1667
    %v1683 = vadd.f32 %v1659, %v1667
    %v1684 = vadd.f32 %v1662, %v1667
    %v1685 = vmax.f32 %v1669, 0.0
    %v1686 = vmax.f32 %v1670, 0.0
    %v1687 = vmax.f32 %v1671, 0.0
    %v1688 = vmax.f32 %v1672, 0.0
    %v1689 = vmax.f32 %v1673, 0.0
    %v1690 = vmax.f32 %v1674, 0.0
    %v1691 = vmax.f32 %v1675, 0.0
    %v1692 = vmax.f32 %v1676, 0.0
    %v1693 = vmax.f32 %v1677, 0.0
    %v1694 = vmax.f32 %v1678, 0.0
    %v1695 = vmax.f32 %v1679, 0.0
    %v1696 = vmax.f32 %v1680, 0.0
    %v1697 = vmax.f32 %v1681, 0.0
    %v1698 = vmax.f32 %v1682, 0.0
    %v1699 = vmax.f32 %v1683, 0.0
    %v1700 = vmax.f32 %v1684, 0.0
    %v1701 = vrot.slane %v1685, 6
    %v1702 = vrot.slane %v1686, 6
    %v1703 = vrot.slane %v1687, 6
    %v1704 = vrot.slane %v1688, 6
    %v1705 = vrot.slane %v1689, 6
    %v1706 = vrot.slane %v1690, 6
    %v1707 = vrot.slane %v1691, 6
    %v1708 = vrot.slane %v1692, 6
    %v1709 = vrot.slane %v1693, 6
    %v1710 = vrot.slane %v1694, 6
    %v1711 = vrot.slane %v1695, 6
    %v1712 = vrot.slane %v1696, 6
    %v1713 = vrot.slane %v1697, 6
    %v1714 = vrot.slane %v1698, 6
    %v1715 = vrot.slane %v1699, 6
    %v1716 = vrot.slane %v1700, 6
    %v1717 = vsel %vm1387, %v1715, %v1716
    %v1718 = vsel %vm1387, %v1714, %v1715
    %v1719 = vsel %vm1387, %v1713, %v1714
    %v1720 = vsel %vm1387, %v1712, %v1713
    %v1721 = vsel %vm1387, %v1711, %v1712
    %v1722 = vsel %vm1387, %v1710, %v1711
    %v1723 = vsel %vm1387, %v1709, %v1710
    %v1724 = vsel %vm1387, %v1708, %v1709
    %v1725 = vsel %vm1387, %v1707, %v1708
    %v1726 = vsel %vm1387, %v1706, %v1707
    %v1727 = vsel %vm1387, %v1705, %v1706
    %v1728 = vsel %vm1387, %v1704, %v1705
    %v1729 = vsel %vm1387, %v1703, %v1704
    %v1730 = vsel %vm1387, %v1702, %v1703
    %v1731 = vsel %vm1387, %v1701, %v1702
    %v1732 = vsel %vm1387, %v1716, %v1701
    %v1733 = vmul.f32 %v1732, %v368
    %v1734 = vmul.f32 %v1731, %v369
    %v1735 = vmul.f32 %v1730, %v370
    %v1736 = vmul.f32 %v1729, %v371
    %v1737 = vmul.f32 %v1728, %v372
    %v1738 = vmul.f32 %v1727, %v373
    %v1739 = vmul.f32 %v1726, %v374
    %v1740 = vmul.f32 %v1725, %v375
    %v1741 = vmul.f32 %v1724, %v376
    %v1742 = vmul.f32 %v1723, %v377
    %v1743 = vmul.f32 %v1722, %v378
    %v1744 = vmul.f32 %v1721, %v379
    %v1745 = vmul.f32 %v1720, %v380
    %v1746 = vmul.f32 %v1719, %v381
    %v1747 = vmul.f32 %v1718, %v382
    %v1748 = vmul.f32 %v1717, %v383
    %s1749 = scalar_lea.vmem [#allocation6], 64
    %v1750 = vld [vmem:[%s1749] sm:$0xff]
    %v1751 = vld [vmem:[%s1749 + $0x8] sm:$0xff]
    %v1752 = vld [vmem:[%s1749 + $0x10] sm:$0xff]
    %v1753 = vld [vmem:[%s1749 + $0x18] sm:$0xff]
    %v1754 = vld [vmem:[%s1749 + $0x20] sm:$0xff]
    %v1755 = vld [vmem:[%s1749 + $0x28] sm:$0xff]
    %v1756 = vld [vmem:[%s1749 + $0x30] sm:$0xff]
    %v1757 = vld [vmem:[%s1749 + $0x38] sm:$0xff]
    %s1758 = scalar_lea.vmem [#allocation7], 64
    %v1759 = vld [vmem:[%s1758] sm:$0xff]
    %v1760 = vld [vmem:[%s1758 + $0x8] sm:$0xff]
    %v1761 = vld [vmem:[%s1758 + $0x10] sm:$0xff]
    %v1762 = vld [vmem:[%s1758 + $0x18] sm:$0xff]
    %v1763 = vld [vmem:[%s1758 + $0x20] sm:$0xff]
    %v1764 = vld [vmem:[%s1758 + $0x28] sm:$0xff]
    %v1765 = vld [vmem:[%s1758 + $0x30] sm:$0xff]
    %v1766 = vld [vmem:[%s1758 + $0x38] sm:$0xff]
    %v1768 = vsel %vm641, %v1685, 0
    %v1771 = vsel %vm641, %v1686, 0
    %v1774 = vsel %vm641, %v1687, 0
    %v1777 = vsel %vm641, %v1688, 0
    %v1780 = vsel %vm641, %v1689, 0
    %v1783 = vsel %vm641, %v1690, 0
    %v1786 = vsel %vm641, %v1691, 0
    %v1789 = vsel %vm641, %v1692, 0
    %v1792 = vsel %vm641, %v1693, 0
    %v1795 = vsel %vm641, %v1694, 0
    %v1798 = vsel %vm641, %v1695, 0
    %v1801 = vsel %vm641, %v1696, 0
    %v1804 = vsel %vm641, %v1697, 0
    %v1807 = vsel %vm641, %v1698, 0
    %v1810 = vsel %vm641, %v1699, 0
    %v1813 = vsel %vm641, %v1700, 0
    %1815 = vmatpush.msra.mxu0 0.0
    %1816 = vmatpush.msra.mxu0 0.0
    %1817 = vmatpush.msra.mxu0 0.0
    %1818 = vmatpush.msra.mxu0 0.0
    %1819 = vmatpush.msra.mxu0 0.0
    %1820 = vmatpush.msra.mxu0 0.0
    %1821 = vmatpush.msra.mxu0 0.0
    %1822 = vmatpush.msra.mxu0 0.0
    %1823 = vmatpush.msra.mxu0 %v1766
    %1824 = vmatpush.msra.mxu0 %v1765
    %1825 = vmatpush.msra.mxu0 %v1764
    %1826 = vmatpush.msra.mxu0 %v1763
    %1827 = vmatpush.msra.mxu0 %v1762
    %1828 = vmatpush.msra.mxu0 %v1761
    %1829 = vmatpush.msra.mxu0 %v1760
    %1830 = vmatpush.msra.mxu0 %v1759
    %1831 = vmatmul.f32.gmra.mxu0 %v1768
    %v1832 = vpop.f32.mrf.mxu0
    %v1833 = vadd.f32 0.0, %v1832
    %1834 = vmatmul.f32.gmra.mxu0 %v1771
    %v1835 = vpop.f32.mrf.mxu0
    %v1836 = vadd.f32 0.0, %v1835
    %1837 = vmatmul.f32.gmra.mxu0 %v1774
    %v1838 = vpop.f32.mrf.mxu0
    %v1839 = vadd.f32 0.0, %v1838
    %1840 = vmatmul.f32.gmra.mxu0 %v1777
    %v1841 = vpop.f32.mrf.mxu0
    %v1842 = vadd.f32 0.0, %v1841
    %1843 = vmatmul.f32.gmra.mxu0 %v1780
    %v1844 = vpop.f32.mrf.mxu0
    %v1845 = vadd.f32 0.0, %v1844
    %1846 = vmatmul.f32.gmra.mxu0 %v1783
    %v1847 = vpop.f32.mrf.mxu0
    %v1848 = vadd.f32 0.0, %v1847
    %1849 = vmatmul.f32.gmra.mxu0 %v1786
    %v1850 = vpop.f32.mrf.mxu0
    %v1851 = vadd.f32 0.0, %v1850
    %1852 = vmatmul.f32.gmra.mxu0 %v1789
    %v1853 = vpop.f32.mrf.mxu0
    %v1854 = vadd.f32 0.0, %v1853
    %1855 = vmatmul.f32.gmra.mxu0 %v1792
    %v1856 = vpop.f32.mrf.mxu0
    %v1857 = vadd.f32 0.0, %v1856
    %1858 = vmatmul.f32.gmra.mxu0 %v1795
    %v1859 = vpop.f32.mrf.mxu0
    %v1860 = vadd.f32 0.0, %v1859
    %1861 = vmatmul.f32.gmra.mxu0 %v1798
    %v1862 = vpop.f32.mrf.mxu0
    %v1863 = vadd.f32 0.0, %v1862
    %1864 = vmatmul.f32.gmra.mxu0 %v1801
    %v1865 = vpop.f32.mrf.mxu0
    %v1866 = vadd.f32 0.0, %v1865
    %1867 = vmatmul.f32.gmra.mxu0 %v1804
    %v1868 = vpop.f32.mrf.mxu0
    %v1869 = vadd.f32 0.0, %v1868
    %1870 = vmatmul.f32.gmra.mxu0 %v1807
    %v1871 = vpop.f32.mrf.mxu0
    %v1872 = vadd.f32 0.0, %v1871
    %1873 = vmatmul.f32.gmra.mxu0 %v1810
    %v1874 = vpop.f32.mrf.mxu0
    %v1875 = vadd.f32 0.0, %v1874
    %1876 = vmatmul.f32.gmra.mxu0 %v1813
    %v1877 = vpop.f32.mrf.mxu0
    %v1878 = vadd.f32 0.0, %v1877
    %1879 = vdwg.mxu0
    %v1881 = vsel %vm641, %v1733, 0
    %v1884 = vsel %vm641, %v1734, 0
    %v1887 = vsel %vm641, %v1735, 0
    %v1890 = vsel %vm641, %v1736, 0
    %v1893 = vsel %vm641, %v1737, 0
    %v1896 = vsel %vm641, %v1738, 0
    %v1899 = vsel %vm641, %v1739, 0
    %v1902 = vsel %vm641, %v1740, 0
    %v1905 = vsel %vm641, %v1741, 0
    %v1908 = vsel %vm641, %v1742, 0
    %v1911 = vsel %vm641, %v1743, 0
    %v1914 = vsel %vm641, %v1744, 0
    %v1917 = vsel %vm641, %v1745, 0
    %v1920 = vsel %vm641, %v1746, 0
    %v1923 = vsel %vm641, %v1747, 0
    %v1926 = vsel %vm641, %v1748, 0
    %1928 = vmatpush.msra.mxu0 0.0
    %1929 = vmatpush.msra.mxu0 0.0
    %1930 = vmatpush.msra.mxu0 0.0
    %1931 = vmatpush.msra.mxu0 0.0
    %1932 = vmatpush.msra.mxu0 0.0
    %1933 = vmatpush.msra.mxu0 0.0
    %1934 = vmatpush.msra.mxu0 0.0
    %1935 = vmatpush.msra.mxu0 0.0
    %1936 = vmatpush.msra.mxu0 %v1757
    %1937 = vmatpush.msra.mxu0 %v1756
    %1938 = vmatpush.msra.mxu0 %v1755
    %1939 = vmatpush.msra.mxu0 %v1754
    %1940 = vmatpush.msra.mxu0 %v1753
    %1941 = vmatpush.msra.mxu0 %v1752
    %1942 = vmatpush.msra.mxu0 %v1751
    %1943 = vmatpush.msra.mxu0 %v1750
    %1944 = vmatmul.f32.gmra.mxu0 %v1881
    %v1945 = vpop.f32.mrf.mxu0
    %v1946 = vadd.f32 %v1833, %v1945
    %1947 = vmatmul.f32.gmra.mxu0 %v1884
    %v1948 = vpop.f32.mrf.mxu0
    %v1949 = vadd.f32 %v1836, %v1948
    %1950 = vmatmul.f32.gmra.mxu0 %v1887
    %v1951 = vpop.f32.mrf.mxu0
    %v1952 = vadd.f32 %v1839, %v1951
    %1953 = vmatmul.f32.gmra.mxu0 %v1890
    %v1954 = vpop.f32.mrf.mxu0
    %v1955 = vadd.f32 %v1842, %v1954
    %1956 = vmatmul.f32.gmra.mxu0 %v1893
    %v1957 = vpop.f32.mrf.mxu0
    %v1958 = vadd.f32 %v1845, %v1957
    %1959 = vmatmul.f32.gmra.mxu0 %v1896
    %v1960 = vpop.f32.mrf.mxu0
    %v1961 = vadd.f32 %v1848, %v1960
    %1962 = vmatmul.f32.gmra.mxu0 %v1899
    %v1963 = vpop.f32.mrf.mxu0
    %v1964 = vadd.f32 %v1851, %v1963
    %1965 = vmatmul.f32.gmra.mxu0 %v1902
    %v1966 = vpop.f32.mrf.mxu0
    %v1967 = vadd.f32 %v1854, %v1966
    %1968 = vmatmul.f32.gmra.mxu0 %v1905
    %v1969 = vpop.f32.mrf.mxu0
    %v1970 = vadd.f32 %v1857, %v1969
    %1971 = vmatmul.f32.gmra.mxu0 %v1908
    %v1972 = vpop.f32.mrf.mxu0
    %v1973 = vadd.f32 %v1860, %v1972
    %1974 = vmatmul.f32.gmra.mxu0 %v1911
    %v1975 = vpop.f32.mrf.mxu0
    %v1976 = vadd.f32 %v1863, %v1975
    %1977 = vmatmul.f32.gmra.mxu0 %v1914
    %v1978 = vpop.f32.mrf.mxu0
    %v1979 = vadd.f32 %v1866, %v1978
    %1980 = vmatmul.f32.gmra.mxu0 %v1917
    %v1981 = vpop.f32.mrf.mxu0
    %v1982 = vadd.f32 %v1869, %v1981
    %1983 = vmatmul.f32.gmra.mxu0 %v1920
    %v1984 = vpop.f32.mrf.mxu0
    %v1985 = vadd.f32 %v1872, %v1984
    %1986 = vmatmul.f32.gmra.mxu0 %v1923
    %v1987 = vpop.f32.mrf.mxu0
    %v1988 = vadd.f32 %v1875, %v1987
    %1989 = vmatmul.f32.gmra.mxu0 %v1926
    %v1990 = vpop.f32.mrf.mxu0
    %v1991 = vadd.f32 %v1878, %v1990
    %1992 = vdwg.mxu0
    %s1993 = scalar_lea.vmem %s8, 1
    %v1994 = vld [vmem:[%s1993] sm:$0x1]
    %v1996 = vperm.slane %v1994, 0
    %v1998 = vadd.f32 %v1946, %v1996
    %v1999 = vadd.f32 %v1949, %v1996
    %v2000 = vadd.f32 %v1952, %v1996
    %v2001 = vadd.f32 %v1955, %v1996
    %v2002 = vadd.f32 %v1958, %v1996
    %v2003 = vadd.f32 %v1961, %v1996
    %v2004 = vadd.f32 %v1964, %v1996
    %v2005 = vadd.f32 %v1967, %v1996
    %v2006 = vadd.f32 %v1970, %v1996
    %v2007 = vadd.f32 %v1973, %v1996
    %v2008 = vadd.f32 %v1976, %v1996
    %v2009 = vadd.f32 %v1979, %v1996
    %v2010 = vadd.f32 %v1982, %v1996
    %v2011 = vadd.f32 %v1985, %v1996
    %v2012 = vadd.f32 %v1988, %v1996
    %v2013 = vadd.f32 %v1991, %v1996
    %v2014 = vmax.f32 %v1998, 0.0
    %v2015 = vmax.f32 %v1999, 0.0
    %v2016 = vmax.f32 %v2000, 0.0
    %v2017 = vmax.f32 %v2001, 0.0
    %v2018 = vmax.f32 %v2002, 0.0
    %v2019 = vmax.f32 %v2003, 0.0
    %v2020 = vmax.f32 %v2004, 0.0
    %v2021 = vmax.f32 %v2005, 0.0
    %v2022 = vmax.f32 %v2006, 0.0
    %v2023 = vmax.f32 %v2007, 0.0
    %v2024 = vmax.f32 %v2008, 0.0
    %v2025 = vmax.f32 %v2009, 0.0
    %v2026 = vmax.f32 %v2010, 0.0
    %v2027 = vmax.f32 %v2011, 0.0
    %v2028 = vmax.f32 %v2012, 0.0
    %v2029 = vmax.f32 %v2013, 0.0
    %v2030 = vadd.f32 %v1230, %v2014
    %v2031 = vadd.f32 %v1231, %v2015
    %v2032 = vadd.f32 %v1232, %v2016
    %v2033 = vadd.f32 %v1233, %v2017
    %v2034 = vadd.f32 %v1234, %v2018
    %v2035 = vadd.f32 %v1235, %v2019
    %v2036 = vadd.f32 %v1236, %v2020
    %v2037 = vadd.f32 %v1237, %v2021
    %v2038 = vadd.f32 %v1238, %v2022
    %v2039 = vadd.f32 %v1239, %v2023
    %v2040 = vadd.f32 %v1240, %v2024
    %v2041 = vadd.f32 %v1241, %v2025
    %v2042 = vadd.f32 %v1242, %v2026
    %v2043 = vadd.f32 %v1243, %v2027
    %v2044 = vadd.f32 %v1244, %v2028
    %v2045 = vadd.f32 %v1245, %v2029
    %s2046 = scalar_lea.vmem [#allocation9], 64
    %v2047 = vld [vmem:[%s2046] sm:$0xff]
    %v2048 = vld [vmem:[%s2046 + $0x8] sm:$0xff]
    %v2049 = vld [vmem:[%s2046 + $0x10] sm:$0xff]
    %v2050 = vld [vmem:[%s2046 + $0x18] sm:$0xff]
    %v2051 = vld [vmem:[%s2046 + $0x20] sm:$0xff]
    %v2052 = vld [vmem:[%s2046 + $0x28] sm:$0xff]
    %v2053 = vld [vmem:[%s2046 + $0x30] sm:$0xff]
    %v2054 = vld [vmem:[%s2046 + $0x38] sm:$0xff]
    %s2055 = scalar_lea.vmem %s10, 1
    %v2056 = vld [vmem:[%s2055] sm:$0x1]
    %v2058 = vperm.slane %v2056, 0
    %v2061 = vsel %vm641, %v2014, 0
    %v2064 = vsel %vm641, %v2015, 0
    %v2067 = vsel %vm641, %v2016, 0
    %v2070 = vsel %vm641, %v2017, 0
    %v2073 = vsel %vm641, %v2018, 0
    %v2076 = vsel %vm641, %v2019, 0
    %v2079 = vsel %vm641, %v2020, 0
    %v2082 = vsel %vm641, %v2021, 0
    %v2085 = vsel %vm641, %v2022, 0
    %v2088 = vsel %vm641, %v2023, 0
    %v2091 = vsel %vm641, %v2024, 0
    %v2094 = vsel %vm641, %v2025, 0
    %v2097 = vsel %vm641, %v2026, 0
    %v2100 = vsel %vm641, %v2027, 0
    %v2103 = vsel %vm641, %v2028, 0
    %v2106 = vsel %vm641, %v2029, 0
    %2108 = vmatpush.msra.mxu0 0.0
    %2109 = vmatpush.msra.mxu0 0.0
    %2110 = vmatpush.msra.mxu0 0.0
    %2111 = vmatpush.msra.mxu0 0.0
    %2112 = vmatpush.msra.mxu0 0.0
    %2113 = vmatpush.msra.mxu0 0.0
    %2114 = vmatpush.msra.mxu0 0.0
    %2115 = vmatpush.msra.mxu0 0.0
    %2116 = vmatpush.msra.mxu0 %v2054
    %2117 = vmatpush.msra.mxu0 %v2053
    %2118 = vmatpush.msra.mxu0 %v2052
    %2119 = vmatpush.msra.mxu0 %v2051
    %2120 = vmatpush.msra.mxu0 %v2050
    %2121 = vmatpush.msra.mxu0 %v2049
    %2122 = vmatpush.msra.mxu0 %v2048
    %2123 = vmatpush.msra.mxu0 %v2047
    %2124 = vmatmul.f32.gmra.mxu0 %v2061
    %v2125 = vpop.f32.mrf.mxu0
    %v2126 = vadd.f32 %v2058, %v2125
    %2127 = vmatmul.f32.gmra.mxu0 %v2064
    %v2128 = vpop.f32.mrf.mxu0
    %v2129 = vadd.f32 %v2058, %v2128
    %2130 = vmatmul.f32.gmra.mxu0 %v2067
    %v2131 = vpop.f32.mrf.mxu0
    %v2132 = vadd.f32 %v2058, %v2131
    %2133 = vmatmul.f32.gmra.mxu0 %v2070
    %v2134 = vpop.f32.mrf.mxu0
    %v2135 = vadd.f32 %v2058, %v2134
    %2136 = vmatmul.f32.gmra.mxu0 %v2073
    %v2137 = vpop.f32.mrf.mxu0
    %v2138 = vadd.f32 %v2058, %v2137
    %2139 = vmatmul.f32.gmra.mxu0 %v2076
    %v2140 = vpop.f32.mrf.mxu0
    %v2141 = vadd.f32 %v2058, %v2140
    %2142 = vmatmul.f32.gmra.mxu0 %v2079
    %v2143 = vpop.f32.mrf.mxu0
    %v2144 = vadd.f32 %v2058, %v2143
    %2145 = vmatmul.f32.gmra.mxu0 %v2082
    %v2146 = vpop.f32.mrf.mxu0
    %v2147 = vadd.f32 %v2058, %v2146
    %2148 = vmatmul.f32.gmra.mxu0 %v2085
    %v2149 = vpop.f32.mrf.mxu0
    %v2150 = vadd.f32 %v2058, %v2149
    %2151 = vmatmul.f32.gmra.mxu0 %v2088
    %v2152 = vpop.f32.mrf.mxu0
    %v2153 = vadd.f32 %v2058, %v2152
    %2154 = vmatmul.f32.gmra.mxu0 %v2091
    %v2155 = vpop.f32.mrf.mxu0
    %v2156 = vadd.f32 %v2058, %v2155
    %2157 = vmatmul.f32.gmra.mxu0 %v2094
    %v2158 = vpop.f32.mrf.mxu0
    %v2159 = vadd.f32 %v2058, %v2158
    %2160 = vmatmul.f32.gmra.mxu0 %v2097
    %v2161 = vpop.f32.mrf.mxu0
    %v2162 = vadd.f32 %v2058, %v2161
    %2163 = vmatmul.f32.gmra.mxu0 %v2100
    %v2164 = vpop.f32.mrf.mxu0
    %v2165 = vadd.f32 %v2058, %v2164
    %2166 = vmatmul.f32.gmra.mxu0 %v2103
    %v2167 = vpop.f32.mrf.mxu0
    %v2168 = vadd.f32 %v2058, %v2167
    %2169 = vmatmul.f32.gmra.mxu0 %v2106
    %v2170 = vpop.f32.mrf.mxu0
    %v2171 = vadd.f32 %v2058, %v2170
    %2172 = vdwg.mxu0
    %v2173 = vrot.slane %v2126, 4
    %v2174 = vrot.slane %v2129, 4
    %v2175 = vrot.slane %v2132, 4
    %v2176 = vrot.slane %v2135, 4
    %v2177 = vrot.slane %v2138, 4
    %v2178 = vrot.slane %v2141, 4
    %v2179 = vrot.slane %v2144, 4
    %v2180 = vrot.slane %v2147, 4
    %v2181 = vrot.slane %v2150, 4
    %v2182 = vrot.slane %v2153, 4
    %v2183 = vrot.slane %v2156, 4
    %v2184 = vrot.slane %v2159, 4
    %v2185 = vrot.slane %v2162, 4
    %v2186 = vrot.slane %v2165, 4
    %v2187 = vrot.slane %v2168, 4
    %v2188 = vrot.slane %v2171, 4
    %vm2189 = vcmp.lt.s32.totalorder %v256, 4
    %v2190 = vsel %vm2189, %v2187, %v2188
    %v2191 = vsel %vm2189, %v2186, %v2187
    %v2192 = vsel %vm2189, %v2185, %v2186
    %v2193 = vsel %vm2189, %v2184, %v2185
    %v2194 = vsel %vm2189, %v2183, %v2184
    %v2195 = vsel %vm2189, %v2182, %v2183
    %v2196 = vsel %vm2189, %v2181, %v2182
    %v2197 = vsel %vm2189, %v2180, %v2181
    %v2198 = vsel %vm2189, %v2179, %v2180
    %v2199 = vsel %vm2189, %v2178, %v2179
    %v2200 = vsel %vm2189, %v2177, %v2178
    %v2201 = vsel %vm2189, %v2176, %v2177
    %v2202 = vsel %vm2189, %v2175, %v2176
    %v2203 = vsel %vm2189, %v2174, %v2175
    %v2204 = vsel %vm2189, %v2173, %v2174
    %v2205 = vsel %vm2189, %v2188, %v2173
    %v2206 = vmul.f32 %v2205, %v416
    %v2207 = vmul.f32 %v2204, %v417
    %v2208 = vmul.f32 %v2203, %v418
    %v2209 = vmul.f32 %v2202, %v419
    %v2210 = vmul.f32 %v2201, %v420
    %v2211 = vmul.f32 %v2200, %v421
    %v2212 = vmul.f32 %v2199, %v422
    %v2213 = vmul.f32 %v2198, %v423
    %v2214 = vmul.f32 %v2197, %v424
    %v2215 = vmul.f32 %v2196, %v425
    %v2216 = vmul.f32 %v2195, %v426
    %v2217 = vmul.f32 %v2194, %v427
    %v2218 = vmul.f32 %v2193, %v428
    %v2219 = vmul.f32 %v2192, %v429
    %v2220 = vmul.f32 %v2191, %v430
    %v2221 = vmul.f32 %v2190, %v431
    %s2222 = scalar_lea.vmem [#allocation2], 128
    %v2223 = vld [vmem:[%s2222] sm:$0xff]
    %v2224 = vld [vmem:[%s2222 + $0x8] sm:$0xff]
    %v2225 = vld [vmem:[%s2222 + $0x10] sm:$0xff]
    %v2226 = vld [vmem:[%s2222 + $0x18] sm:$0xff]
    %v2227 = vld [vmem:[%s2222 + $0x20] sm:$0xff]
    %v2228 = vld [vmem:[%s2222 + $0x28] sm:$0xff]
    %v2229 = vld [vmem:[%s2222 + $0x30] sm:$0xff]
    %v2230 = vld [vmem:[%s2222 + $0x38] sm:$0xff]
    %s2231 = scalar_lea.vmem [#allocation4], 128
    %v2232 = vld [vmem:[%s2231] sm:$0xff]
    %v2233 = vld [vmem:[%s2231 + $0x8] sm:$0xff]
    %v2234 = vld [vmem:[%s2231 + $0x10] sm:$0xff]
    %v2235 = vld [vmem:[%s2231 + $0x18] sm:$0xff]
    %v2236 = vld [vmem:[%s2231 + $0x20] sm:$0xff]
    %v2237 = vld [vmem:[%s2231 + $0x28] sm:$0xff]
    %v2238 = vld [vmem:[%s2231 + $0x30] sm:$0xff]
    %v2239 = vld [vmem:[%s2231 + $0x38] sm:$0xff]
    %v2241 = vsel %vm641, %v2126, 0
    %v2244 = vsel %vm641, %v2129, 0
    %v2247 = vsel %vm641, %v2132, 0
    %v2250 = vsel %vm641, %v2135, 0
    %v2253 = vsel %vm641, %v2138, 0
    %v2256 = vsel %vm641, %v2141, 0
    %v2259 = vsel %vm641, %v2144, 0
    %v2262 = vsel %vm641, %v2147, 0
    %v2265 = vsel %vm641, %v2150, 0
    %v2268 = vsel %vm641, %v2153, 0
    %v2271 = vsel %vm641, %v2156, 0
    %v2274 = vsel %vm641, %v2159, 0
    %v2277 = vsel %vm641, %v2162, 0
    %v2280 = vsel %vm641, %v2165, 0
    %v2283 = vsel %vm641, %v2168, 0
    %v2286 = vsel %vm641, %v2171, 0
    %2288 = vmatpush.msra.mxu0 0.0
    %2289 = vmatpush.msra.mxu0 0.0
    %2290 = vmatpush.msra.mxu0 0.0
    %2291 = vmatpush.msra.mxu0 0.0
    %2292 = vmatpush.msra.mxu0 0.0
    %2293 = vmatpush.msra.mxu0 0.0
    %2294 = vmatpush.msra.mxu0 0.0
    %2295 = vmatpush.msra.mxu0 0.0
    %2296 = vmatpush.msra.mxu0 %v2239
    %2297 = vmatpush.msra.mxu0 %v2238
    %2298 = vmatpush.msra.mxu0 %v2237
    %2299 = vmatpush.msra.mxu0 %v2236
    %2300 = vmatpush.msra.mxu0 %v2235
    %2301 = vmatpush.msra.mxu0 %v2234
    %2302 = vmatpush.msra.mxu0 %v2233
    %2303 = vmatpush.msra.mxu0 %v2232
    %2304 = vmatmul.f32.gmra.mxu0 %v2241
    %v2305 = vpop.f32.mrf.mxu0
    %v2306 = vadd.f32 0.0, %v2305
    %2307 = vmatmul.f32.gmra.mxu0 %v2244
    %v2308 = vpop.f32.mrf.mxu0
    %v2309 = vadd.f32 0.0, %v2308
    %2310 = vmatmul.f32.gmra.mxu0 %v2247
    %v2311 = vpop.f32.mrf.mxu0
    %v2312 = vadd.f32 0.0, %v2311
    %2313 = vmatmul.f32.gmra.mxu0 %v2250
    %v2314 = vpop.f32.mrf.mxu0
    %v2315 = vadd.f32 0.0, %v2314
    %2316 = vmatmul.f32.gmra.mxu0 %v2253
    %v2317 = vpop.f32.mrf.mxu0
    %v2318 = vadd.f32 0.0, %v2317
    %2319 = vmatmul.f32.gmra.mxu0 %v2256
    %v2320 = vpop.f32.mrf.mxu0
    %v2321 = vadd.f32 0.0, %v2320
    %2322 = vmatmul.f32.gmra.mxu0 %v2259
    %v2323 = vpop.f32.mrf.mxu0
    %v2324 = vadd.f32 0.0, %v2323
    %2325 = vmatmul.f32.gmra.mxu0 %v2262
    %v2326 = vpop.f32.mrf.mxu0
    %v2327 = vadd.f32 0.0, %v2326
    %2328 = vmatmul.f32.gmra.mxu0 %v2265
    %v2329 = vpop.f32.mrf.mxu0
    %v2330 = vadd.f32 0.0, %v2329
    %2331 = vmatmul.f32.gmra.mxu0 %v2268
    %v2332 = vpop.f32.mrf.mxu0
    %v2333 = vadd.f32 0.0, %v2332
    %2334 = vmatmul.f32.gmra.mxu0 %v2271
    %v2335 = vpop.f32.mrf.mxu0
    %v2336 = vadd.f32 0.0, %v2335
    %2337 = vmatmul.f32.gmra.mxu0 %v2274
    %v2338 = vpop.f32.mrf.mxu0
    %v2339 = vadd.f32 0.0, %v2338
    %2340 = vmatmul.f32.gmra.mxu0 %v2277
    %v2341 = vpop.f32.mrf.mxu0
    %v2342 = vadd.f32 0.0, %v2341
    %2343 = vmatmul.f32.gmra.mxu0 %v2280
    %v2344 = vpop.f32.mrf.mxu0
    %v2345 = vadd.f32 0.0, %v2344
    %2346 = vmatmul.f32.gmra.mxu0 %v2283
    %v2347 = vpop.f32.mrf.mxu0
    %v2348 = vadd.f32 0.0, %v2347
    %2349 = vmatmul.f32.gmra.mxu0 %v2286
    %v2350 = vpop.f32.mrf.mxu0
    %v2351 = vadd.f32 0.0, %v2350
    %2352 = vdwg.mxu0
    %v2354 = vsel %vm641, %v2206, 0
    %v2357 = vsel %vm641, %v2207, 0
    %v2360 = vsel %vm641, %v2208, 0
    %v2363 = vsel %vm641, %v2209, 0
    %v2366 = vsel %vm641, %v2210, 0
    %v2369 = vsel %vm641, %v2211, 0
    %v2372 = vsel %vm641, %v2212, 0
    %v2375 = vsel %vm641, %v2213, 0
    %v2378 = vsel %vm641, %v2214, 0
    %v2381 = vsel %vm641, %v2215, 0
    %v2384 = vsel %vm641, %v2216, 0
    %v2387 = vsel %vm641, %v2217, 0
    %v2390 = vsel %vm641, %v2218, 0
    %v2393 = vsel %vm641, %v2219, 0
    %v2396 = vsel %vm641, %v2220, 0
    %v2399 = vsel %vm641, %v2221, 0
    %2401 = vmatpush.msra.mxu0 0.0
    %2402 = vmatpush.msra.mxu0 0.0
    %2403 = vmatpush.msra.mxu0 0.0
    %2404 = vmatpush.msra.mxu0 0.0
    %2405 = vmatpush.msra.mxu0 0.0
    %2406 = vmatpush.msra.mxu0 0.0
    %2407 = vmatpush.msra.mxu0 0.0
    %2408 = vmatpush.msra.mxu0 0.0
    %2409 = vmatpush.msra.mxu0 %v2230
    %2410 = vmatpush.msra.mxu0 %v2229
    %2411 = vmatpush.msra.mxu0 %v2228
    %2412 = vmatpush.msra.mxu0 %v2227
    %2413 = vmatpush.msra.mxu0 %v2226
    %2414 = vmatpush.msra.mxu0 %v2225
    %2415 = vmatpush.msra.mxu0 %v2224
    %2416 = vmatpush.msra.mxu0 %v2223
    %2417 = vmatmul.f32.gmra.mxu0 %v2354
    %v2418 = vpop.f32.mrf.mxu0
    %v2419 = vadd.f32 %v2306, %v2418
    %2420 = vmatmul.f32.gmra.mxu0 %v2357
    %v2421 = vpop.f32.mrf.mxu0
    %v2422 = vadd.f32 %v2309, %v2421
    %2423 = vmatmul.f32.gmra.mxu0 %v2360
    %v2424 = vpop.f32.mrf.mxu0
    %v2425 = vadd.f32 %v2312, %v2424
    %2426 = vmatmul.f32.gmra.mxu0 %v2363
    %v2427 = vpop.f32.mrf.mxu0
    %v2428 = vadd.f32 %v2315, %v2427
    %2429 = vmatmul.f32.gmra.mxu0 %v2366
    %v2430 = vpop.f32.mrf.mxu0
    %v2431 = vadd.f32 %v2318, %v2430
    %2432 = vmatmul.f32.gmra.mxu0 %v2369
    %v2433 = vpop.f32.mrf.mxu0
    %v2434 = vadd.f32 %v2321, %v2433
    %2435 = vmatmul.f32.gmra.mxu0 %v2372
    %v2436 = vpop.f32.mrf.mxu0
    %v2437 = vadd.f32 %v2324, %v2436
    %2438 = vmatmul.f32.gmra.mxu0 %v2375
    %v2439 = vpop.f32.mrf.mxu0
    %v2440 = vadd.f32 %v2327, %v2439
    %2441 = vmatmul.f32.gmra.mxu0 %v2378
    %v2442 = vpop.f32.mrf.mxu0
    %v2443 = vadd.f32 %v2330, %v2442
    %2444 = vmatmul.f32.gmra.mxu0 %v2381
    %v2445 = vpop.f32.mrf.mxu0
    %v2446 = vadd.f32 %v2333, %v2445
    %2447 = vmatmul.f32.gmra.mxu0 %v2384
    %v2448 = vpop.f32.mrf.mxu0
    %v2449 = vadd.f32 %v2336, %v2448
    %2450 = vmatmul.f32.gmra.mxu0 %v2387
    %v2451 = vpop.f32.mrf.mxu0
    %v2452 = vadd.f32 %v2339, %v2451
    %2453 = vmatmul.f32.gmra.mxu0 %v2390
    %v2454 = vpop.f32.mrf.mxu0
    %v2455 = vadd.f32 %v2342, %v2454
    %2456 = vmatmul.f32.gmra.mxu0 %v2393
    %v2457 = vpop.f32.mrf.mxu0
    %v2458 = vadd.f32 %v2345, %v2457
    %2459 = vmatmul.f32.gmra.mxu0 %v2396
    %v2460 = vpop.f32.mrf.mxu0
    %v2461 = vadd.f32 %v2348, %v2460
    %2462 = vmatmul.f32.gmra.mxu0 %v2399
    %v2463 = vpop.f32.mrf.mxu0
    %v2464 = vadd.f32 %v2351, %v2463
    %2465 = vdwg.mxu0
    %s2466 = scalar_lea.vmem %s5, 2
    %v2467 = vld [vmem:[%s2466] sm:$0x1]
    %v2469 = vperm.slane %v2467, 0
    %v2471 = vadd.f32 %v2419, %v2469
    %v2472 = vadd.f32 %v2422, %v2469
    %v2473 = vadd.f32 %v2425, %v2469
    %v2474 = vadd.f32 %v2428, %v2469
    %v2475 = vadd.f32 %v2431, %v2469
    %v2476 = vadd.f32 %v2434, %v2469
    %v2477 = vadd.f32 %v2437, %v2469
    %v2478 = vadd.f32 %v2440, %v2469
    %v2479 = vadd.f32 %v2443, %v2469
    %v2480 = vadd.f32 %v2446, %v2469
    %v2481 = vadd.f32 %v2449, %v2469
    %v2482 = vadd.f32 %v2452, %v2469
    %v2483 = vadd.f32 %v2455, %v2469
    %v2484 = vadd.f32 %v2458, %v2469
    %v2485 = vadd.f32 %v2461, %v2469
    %v2486 = vadd.f32 %v2464, %v2469
    %v2487 = vmax.f32 %v2471, 0.0
    %v2488 = vmax.f32 %v2472, 0.0
    %v2489 = vmax.f32 %v2473, 0.0
    %v2490 = vmax.f32 %v2474, 0.0
    %v2491 = vmax.f32 %v2475, 0.0
    %v2492 = vmax.f32 %v2476, 0.0
    %v2493 = vmax.f32 %v2477, 0.0
    %v2494 = vmax.f32 %v2478, 0.0
    %v2495 = vmax.f32 %v2479, 0.0
    %v2496 = vmax.f32 %v2480, 0.0
    %v2497 = vmax.f32 %v2481, 0.0
    %v2498 = vmax.f32 %v2482, 0.0
    %v2499 = vmax.f32 %v2483, 0.0
    %v2500 = vmax.f32 %v2484, 0.0
    %v2501 = vmax.f32 %v2485, 0.0
    %v2502 = vmax.f32 %v2486, 0.0
    %v2503 = vrot.slane %v2487, 4
    %v2504 = vrot.slane %v2488, 4
    %v2505 = vrot.slane %v2489, 4
    %v2506 = vrot.slane %v2490, 4
    %v2507 = vrot.slane %v2491, 4
    %v2508 = vrot.slane %v2492, 4
    %v2509 = vrot.slane %v2493, 4
    %v2510 = vrot.slane %v2494, 4
    %v2511 = vrot.slane %v2495, 4
    %v2512 = vrot.slane %v2496, 4
    %v2513 = vrot.slane %v2497, 4
    %v2514 = vrot.slane %v2498, 4
    %v2515 = vrot.slane %v2499, 4
    %v2516 = vrot.slane %v2500, 4
    %v2517 = vrot.slane %v2501, 4
    %v2518 = vrot.slane %v2502, 4
    %v2519 = vsel %vm2189, %v2517, %v2518
    %v2520 = vsel %vm2189, %v2516, %v2517
    %v2521 = vsel %vm2189, %v2515, %v2516
    %v2522 = vsel %vm2189, %v2514, %v2515
    %v2523 = vsel %vm2189, %v2513, %v2514
    %v2524 = vsel %vm2189, %v2512, %v2513
    %v2525 = vsel %vm2189, %v2511, %v2512
    %v2526 = vsel %vm2189, %v2510, %v2511
    %v2527 = vsel %vm2189, %v2509, %v2510
    %v2528 = vsel %vm2189, %v2508, %v2509
    %v2529 = vsel %vm2189, %v2507, %v2508
    %v2530 = vsel %vm2189, %v2506, %v2507
    %v2531 = vsel %vm2189, %v2505, %v2506
    %v2532 = vsel %vm2189, %v2504, %v2505
    %v2533 = vsel %vm2189, %v2503, %v2504
    %v2534 = vsel %vm2189, %v2518, %v2503
    %v2535 = vmul.f32 %v2534, %v416
    %v2536 = vmul.f32 %v2533, %v417
    %v2537 = vmul.f32 %v2532, %v418
    %v2538 = vmul.f32 %v2531, %v419
    %v2539 = vmul.f32 %v2530, %v420
    %v2540 = vmul.f32 %v2529, %v421
    %v2541 = vmul.f32 %v2528, %v422
    %v2542 = vmul.f32 %v2527, %v423
    %v2543 = vmul.f32 %v2526, %v424
    %v2544 = vmul.f32 %v2525, %v425
    %v2545 = vmul.f32 %v2524, %v426
    %v2546 = vmul.f32 %v2523, %v427
    %v2547 = vmul.f32 %v2522, %v428
    %v2548 = vmul.f32 %v2521, %v429
    %v2549 = vmul.f32 %v2520, %v430
    %v2550 = vmul.f32 %v2519, %v431
    %s2551 = scalar_lea.vmem [#allocation6], 128
    %v2552 = vld [vmem:[%s2551] sm:$0xff]
    %v2553 = vld [vmem:[%s2551 + $0x8] sm:$0xff]
    %v2554 = vld [vmem:[%s2551 + $0x10] sm:$0xff]
    %v2555 = vld [vmem:[%s2551 + $0x18] sm:$0xff]
    %v2556 = vld [vmem:[%s2551 + $0x20] sm:$0xff]
    %v2557 = vld [vmem:[%s2551 + $0x28] sm:$0xff]
    %v2558 = vld [vmem:[%s2551 + $0x30] sm:$0xff]
    %v2559 = vld [vmem:[%s2551 + $0x38] sm:$0xff]
    %s2560 = scalar_lea.vmem [#allocation7], 128
    %v2561 = vld [vmem:[%s2560] sm:$0xff]
    %v2562 = vld [vmem:[%s2560 + $0x8] sm:$0xff]
    %v2563 = vld [vmem:[%s2560 + $0x10] sm:$0xff]
    %v2564 = vld [vmem:[%s2560 + $0x18] sm:$0xff]
    %v2565 = vld [vmem:[%s2560 + $0x20] sm:$0xff]
    %v2566 = vld [vmem:[%s2560 + $0x28] sm:$0xff]
    %v2567 = vld [vmem:[%s2560 + $0x30] sm:$0xff]
    %v2568 = vld [vmem:[%s2560 + $0x38] sm:$0xff]
    %v2570 = vsel %vm641, %v2487, 0
    %v2573 = vsel %vm641, %v2488, 0
    %v2576 = vsel %vm641, %v2489, 0
    %v2579 = vsel %vm641, %v2490, 0
    %v2582 = vsel %vm641, %v2491, 0
    %v2585 = vsel %vm641, %v2492, 0
    %v2588 = vsel %vm641, %v2493, 0
    %v2591 = vsel %vm641, %v2494, 0
    %v2594 = vsel %vm641, %v2495, 0
    %v2597 = vsel %vm641, %v2496, 0
    %v2600 = vsel %vm641, %v2497, 0
    %v2603 = vsel %vm641, %v2498, 0
    %v2606 = vsel %vm641, %v2499, 0
    %v2609 = vsel %vm641, %v2500, 0
    %v2612 = vsel %vm641, %v2501, 0
    %v2615 = vsel %vm641, %v2502, 0
    %2617 = vmatpush.msra.mxu0 0.0
    %2618 = vmatpush.msra.mxu0 0.0
    %2619 = vmatpush.msra.mxu0 0.0
    %2620 = vmatpush.msra.mxu0 0.0
    %2621 = vmatpush.msra.mxu0 0.0
    %2622 = vmatpush.msra.mxu0 0.0
    %2623 = vmatpush.msra.mxu0 0.0
    %2624 = vmatpush.msra.mxu0 0.0
    %2625 = vmatpush.msra.mxu0 %v2568
    %2626 = vmatpush.msra.mxu0 %v2567
    %2627 = vmatpush.msra.mxu0 %v2566
    %2628 = vmatpush.msra.mxu0 %v2565
    %2629 = vmatpush.msra.mxu0 %v2564
    %2630 = vmatpush.msra.mxu0 %v2563
    %2631 = vmatpush.msra.mxu0 %v2562
    %2632 = vmatpush.msra.mxu0 %v2561
    %2633 = vmatmul.f32.gmra.mxu0 %v2570
    %v2634 = vpop.f32.mrf.mxu0
    %v2635 = vadd.f32 0.0, %v2634
    %2636 = vmatmul.f32.gmra.mxu0 %v2573
    %v2637 = vpop.f32.mrf.mxu0
    %v2638 = vadd.f32 0.0, %v2637
    %2639 = vmatmul.f32.gmra.mxu0 %v2576
    %v2640 = vpop.f32.mrf.mxu0
    %v2641 = vadd.f32 0.0, %v2640
    %2642 = vmatmul.f32.gmra.mxu0 %v2579
    %v2643 = vpop.f32.mrf.mxu0
    %v2644 = vadd.f32 0.0, %v2643
    %2645 = vmatmul.f32.gmra.mxu0 %v2582
    %v2646 = vpop.f32.mrf.mxu0
    %v2647 = vadd.f32 0.0, %v2646
    %2648 = vmatmul.f32.gmra.mxu0 %v2585
    %v2649 = vpop.f32.mrf.mxu0
    %v2650 = vadd.f32 0.0, %v2649
    %2651 = vmatmul.f32.gmra.mxu0 %v2588
    %v2652 = vpop.f32.mrf.mxu0
    %v2653 = vadd.f32 0.0, %v2652
    %2654 = vmatmul.f32.gmra.mxu0 %v2591
    %v2655 = vpop.f32.mrf.mxu0
    %v2656 = vadd.f32 0.0, %v2655
    %2657 = vmatmul.f32.gmra.mxu0 %v2594
    %v2658 = vpop.f32.mrf.mxu0
    %v2659 = vadd.f32 0.0, %v2658
    %2660 = vmatmul.f32.gmra.mxu0 %v2597
    %v2661 = vpop.f32.mrf.mxu0
    %v2662 = vadd.f32 0.0, %v2661
    %2663 = vmatmul.f32.gmra.mxu0 %v2600
    %v2664 = vpop.f32.mrf.mxu0
    %v2665 = vadd.f32 0.0, %v2664
    %2666 = vmatmul.f32.gmra.mxu0 %v2603
    %v2667 = vpop.f32.mrf.mxu0
    %v2668 = vadd.f32 0.0, %v2667
    %2669 = vmatmul.f32.gmra.mxu0 %v2606
    %v2670 = vpop.f32.mrf.mxu0
    %v2671 = vadd.f32 0.0, %v2670
    %2672 = vmatmul.f32.gmra.mxu0 %v2609
    %v2673 = vpop.f32.mrf.mxu0
    %v2674 = vadd.f32 0.0, %v2673
    %2675 = vmatmul.f32.gmra.mxu0 %v2612
    %v2676 = vpop.f32.mrf.mxu0
    %v2677 = vadd.f32 0.0, %v2676
    %2678 = vmatmul.f32.gmra.mxu0 %v2615
    %v2679 = vpop.f32.mrf.mxu0
    %v2680 = vadd.f32 0.0, %v2679
    %2681 = vdwg.mxu0
    %v2683 = vsel %vm641, %v2535, 0
    %v2686 = vsel %vm641, %v2536, 0
    %v2689 = vsel %vm641, %v2537, 0
    %v2692 = vsel %vm641, %v2538, 0
    %v2695 = vsel %vm641, %v2539, 0
    %v2698 = vsel %vm641, %v2540, 0
    %v2701 = vsel %vm641, %v2541, 0
    %v2704 = vsel %vm641, %v2542, 0
    %v2707 = vsel %vm641, %v2543, 0
    %v2710 = vsel %vm641, %v2544, 0
    %v2713 = vsel %vm641, %v2545, 0
    %v2716 = vsel %vm641, %v2546, 0
    %v2719 = vsel %vm641, %v2547, 0
    %v2722 = vsel %vm641, %v2548, 0
    %v2725 = vsel %vm641, %v2549, 0
    %v2728 = vsel %vm641, %v2550, 0
    %2730 = vmatpush.msra.mxu0 0.0
    %2731 = vmatpush.msra.mxu0 0.0
    %2732 = vmatpush.msra.mxu0 0.0
    %2733 = vmatpush.msra.mxu0 0.0
    %2734 = vmatpush.msra.mxu0 0.0
    %2735 = vmatpush.msra.mxu0 0.0
    %2736 = vmatpush.msra.mxu0 0.0
    %2737 = vmatpush.msra.mxu0 0.0
    %2738 = vmatpush.msra.mxu0 %v2559
    %2739 = vmatpush.msra.mxu0 %v2558
    %2740 = vmatpush.msra.mxu0 %v2557
    %2741 = vmatpush.msra.mxu0 %v2556
    %2742 = vmatpush.msra.mxu0 %v2555
    %2743 = vmatpush.msra.mxu0 %v2554
    %2744 = vmatpush.msra.mxu0 %v2553
    %2745 = vmatpush.msra.mxu0 %v2552
    %2746 = vmatmul.f32.gmra.mxu0 %v2683
    %v2747 = vpop.f32.mrf.mxu0
    %v2748 = vadd.f32 %v2635, %v2747
    %2749 = vmatmul.f32.gmra.mxu0 %v2686
    %v2750 = vpop.f32.mrf.mxu0
    %v2751 = vadd.f32 %v2638, %v2750
    %2752 = vmatmul.f32.gmra.mxu0 %v2689
    %v2753 = vpop.f32.mrf.mxu0
    %v2754 = vadd.f32 %v2641, %v2753
    %2755 = vmatmul.f32.gmra.mxu0 %v2692
    %v2756 = vpop.f32.mrf.mxu0
    %v2757 = vadd.f32 %v2644, %v2756
    %2758 = vmatmul.f32.gmra.mxu0 %v2695
    %v2759 = vpop.f32.mrf.mxu0
    %v2760 = vadd.f32 %v2647, %v2759
    %2761 = vmatmul.f32.gmra.mxu0 %v2698
    %v2762 = vpop.f32.mrf.mxu0
    %v2763 = vadd.f32 %v2650, %v2762
    %2764 = vmatmul.f32.gmra.mxu0 %v2701
    %v2765 = vpop.f32.mrf.mxu0
    %v2766 = vadd.f32 %v2653, %v2765
    %2767 = vmatmul.f32.gmra.mxu0 %v2704
    %v2768 = vpop.f32.mrf.mxu0
    %v2769 = vadd.f32 %v2656, %v2768
    %2770 = vmatmul.f32.gmra.mxu0 %v2707
    %v2771 = vpop.f32.mrf.mxu0
    %v2772 = vadd.f32 %v2659, %v2771
    %2773 = vmatmul.f32.gmra.mxu0 %v2710
    %v2774 = vpop.f32.mrf.mxu0
    %v2775 = vadd.f32 %v2662, %v2774
    %2776 = vmatmul.f32.gmra.mxu0 %v2713
    %v2777 = vpop.f32.mrf.mxu0
    %v2778 = vadd.f32 %v2665, %v2777
    %2779 = vmatmul.f32.gmra.mxu0 %v2716
    %v2780 = vpop.f32.mrf.mxu0
    %v2781 = vadd.f32 %v2668, %v2780
    %2782 = vmatmul.f32.gmra.mxu0 %v2719
    %v2783 = vpop.f32.mrf.mxu0
    %v2784 = vadd.f32 %v2671, %v2783
    %2785 = vmatmul.f32.gmra.mxu0 %v2722
    %v2786 = vpop.f32.mrf.mxu0
    %v2787 = vadd.f32 %v2674, %v2786
    %2788 = vmatmul.f32.gmra.mxu0 %v2725
    %v2789 = vpop.f32.mrf.mxu0
    %v2790 = vadd.f32 %v2677, %v2789
    %2791 = vmatmul.f32.gmra.mxu0 %v2728
    %v2792 = vpop.f32.mrf.mxu0
    %v2793 = vadd.f32 %v2680, %v2792
    %2794 = vdwg.mxu0
    %s2795 = scalar_lea.vmem %s8, 2
    %v2796 = vld [vmem:[%s2795] sm:$0x1]
    %v2798 = vperm.slane %v2796, 0
    %v2800 = vadd.f32 %v2748, %v2798
    %v2801 = vadd.f32 %v2751, %v2798
    %v2802 = vadd.f32 %v2754, %v2798
    %v2803 = vadd.f32 %v2757, %v2798
    %v2804 = vadd.f32 %v2760, %v2798
    %v2805 = vadd.f32 %v2763, %v2798
    %v2806 = vadd.f32 %v2766, %v2798
    %v2807 = vadd.f32 %v2769, %v2798
    %v2808 = vadd.f32 %v2772, %v2798
    %v2809 = vadd.f32 %v2775, %v2798
    %v2810 = vadd.f32 %v2778, %v2798
    %v2811 = vadd.f32 %v2781, %v2798
    %v2812 = vadd.f32 %v2784, %v2798
    %v2813 = vadd.f32 %v2787, %v2798
    %v2814 = vadd.f32 %v2790, %v2798
    %v2815 = vadd.f32 %v2793, %v2798
    %v2816 = vmax.f32 %v2800, 0.0
    %v2817 = vmax.f32 %v2801, 0.0
    %v2818 = vmax.f32 %v2802, 0.0
    %v2819 = vmax.f32 %v2803, 0.0
    %v2820 = vmax.f32 %v2804, 0.0
    %v2821 = vmax.f32 %v2805, 0.0
    %v2822 = vmax.f32 %v2806, 0.0
    %v2823 = vmax.f32 %v2807, 0.0
    %v2824 = vmax.f32 %v2808, 0.0
    %v2825 = vmax.f32 %v2809, 0.0
    %v2826 = vmax.f32 %v2810, 0.0
    %v2827 = vmax.f32 %v2811, 0.0
    %v2828 = vmax.f32 %v2812, 0.0
    %v2829 = vmax.f32 %v2813, 0.0
    %v2830 = vmax.f32 %v2814, 0.0
    %v2831 = vmax.f32 %v2815, 0.0
    %v2832 = vadd.f32 %v2030, %v2816
    %v2833 = vadd.f32 %v2031, %v2817
    %v2834 = vadd.f32 %v2032, %v2818
    %v2835 = vadd.f32 %v2033, %v2819
    %v2836 = vadd.f32 %v2034, %v2820
    %v2837 = vadd.f32 %v2035, %v2821
    %v2838 = vadd.f32 %v2036, %v2822
    %v2839 = vadd.f32 %v2037, %v2823
    %v2840 = vadd.f32 %v2038, %v2824
    %v2841 = vadd.f32 %v2039, %v2825
    %v2842 = vadd.f32 %v2040, %v2826
    %v2843 = vadd.f32 %v2041, %v2827
    %v2844 = vadd.f32 %v2042, %v2828
    %v2845 = vadd.f32 %v2043, %v2829
    %v2846 = vadd.f32 %v2044, %v2830
    %v2847 = vadd.f32 %v2045, %v2831
    %s2848 = scalar_lea.vmem [#allocation9], 128
    %v2849 = vld [vmem:[%s2848] sm:$0xff]
    %v2850 = vld [vmem:[%s2848 + $0x8] sm:$0xff]
    %v2851 = vld [vmem:[%s2848 + $0x10] sm:$0xff]
    %v2852 = vld [vmem:[%s2848 + $0x18] sm:$0xff]
    %v2853 = vld [vmem:[%s2848 + $0x20] sm:$0xff]
    %v2854 = vld [vmem:[%s2848 + $0x28] sm:$0xff]
    %v2855 = vld [vmem:[%s2848 + $0x30] sm:$0xff]
    %v2856 = vld [vmem:[%s2848 + $0x38] sm:$0xff]
    %s2857 = scalar_lea.vmem %s10, 2
    %v2858 = vld [vmem:[%s2857] sm:$0x1]
    %v2860 = vperm.slane %v2858, 0
    %v2863 = vsel %vm641, %v2816, 0
    %v2866 = vsel %vm641, %v2817, 0
    %v2869 = vsel %vm641, %v2818, 0
    %v2872 = vsel %vm641, %v2819, 0
    %v2875 = vsel %vm641, %v2820, 0
    %v2878 = vsel %vm641, %v2821, 0
    %v2881 = vsel %vm641, %v2822, 0
    %v2884 = vsel %vm641, %v2823, 0
    %v2887 = vsel %vm641, %v2824, 0
    %v2890 = vsel %vm641, %v2825, 0
    %v2893 = vsel %vm641, %v2826, 0
    %v2896 = vsel %vm641, %v2827, 0
    %v2899 = vsel %vm641, %v2828, 0
    %v2902 = vsel %vm641, %v2829, 0
    %v2905 = vsel %vm641, %v2830, 0
    %v2908 = vsel %vm641, %v2831, 0
    %2910 = vmatpush.msra.mxu0 0.0
    %2911 = vmatpush.msra.mxu0 0.0
    %2912 = vmatpush.msra.mxu0 0.0
    %2913 = vmatpush.msra.mxu0 0.0
    %2914 = vmatpush.msra.mxu0 0.0
    %2915 = vmatpush.msra.mxu0 0.0
    %2916 = vmatpush.msra.mxu0 0.0
    %2917 = vmatpush.msra.mxu0 0.0
    %2918 = vmatpush.msra.mxu0 %v2856
    %2919 = vmatpush.msra.mxu0 %v2855
    %2920 = vmatpush.msra.mxu0 %v2854
    %2921 = vmatpush.msra.mxu0 %v2853
    %2922 = vmatpush.msra.mxu0 %v2852
    %2923 = vmatpush.msra.mxu0 %v2851
    %2924 = vmatpush.msra.mxu0 %v2850
    %2925 = vmatpush.msra.mxu0 %v2849
    %2926 = vmatmul.f32.gmra.mxu0 %v2863
    %v2927 = vpop.f32.mrf.mxu0
    %v2928 = vadd.f32 %v2860, %v2927
    %2929 = vmatmul.f32.gmra.mxu0 %v2866
    %v2930 = vpop.f32.mrf.mxu0
    %v2931 = vadd.f32 %v2860, %v2930
    %2932 = vmatmul.f32.gmra.mxu0 %v2869
    %v2933 = vpop.f32.mrf.mxu0
    %v2934 = vadd.f32 %v2860, %v2933
    %2935 = vmatmul.f32.gmra.mxu0 %v2872
    %v2936 = vpop.f32.mrf.mxu0
    %v2937 = vadd.f32 %v2860, %v2936
    %2938 = vmatmul.f32.gmra.mxu0 %v2875
    %v2939 = vpop.f32.mrf.mxu0
    %v2940 = vadd.f32 %v2860, %v2939
    %2941 = vmatmul.f32.gmra.mxu0 %v2878
    %v2942 = vpop.f32.mrf.mxu0
    %v2943 = vadd.f32 %v2860, %v2942
    %2944 = vmatmul.f32.gmra.mxu0 %v2881
    %v2945 = vpop.f32.mrf.mxu0
    %v2946 = vadd.f32 %v2860, %v2945
    %2947 = vmatmul.f32.gmra.mxu0 %v2884
    %v2948 = vpop.f32.mrf.mxu0
    %v2949 = vadd.f32 %v2860, %v2948
    %2950 = vmatmul.f32.gmra.mxu0 %v2887
    %v2951 = vpop.f32.mrf.mxu0
    %v2952 = vadd.f32 %v2860, %v2951
    %2953 = vmatmul.f32.gmra.mxu0 %v2890
    %v2954 = vpop.f32.mrf.mxu0
    %v2955 = vadd.f32 %v2860, %v2954
    %2956 = vmatmul.f32.gmra.mxu0 %v2893
    %v2957 = vpop.f32.mrf.mxu0
    %v2958 = vadd.f32 %v2860, %v2957
    %2959 = vmatmul.f32.gmra.mxu0 %v2896
    %v2960 = vpop.f32.mrf.mxu0
    %v2961 = vadd.f32 %v2860, %v2960
    %2962 = vmatmul.f32.gmra.mxu0 %v2899
    %v2963 = vpop.f32.mrf.mxu0
    %v2964 = vadd.f32 %v2860, %v2963
    %2965 = vmatmul.f32.gmra.mxu0 %v2902
    %v2966 = vpop.f32.mrf.mxu0
    %v2967 = vadd.f32 %v2860, %v2966
    %2968 = vmatmul.f32.gmra.mxu0 %v2905
    %v2969 = vpop.f32.mrf.mxu0
    %v2970 = vadd.f32 %v2860, %v2969
    %2971 = vmatmul.f32.gmra.mxu0 %v2908
    %v2972 = vpop.f32.mrf.mxu0
    %v2973 = vadd.f32 %v2860, %v2972
    %2974 = vdwg.mxu0
    %v2975 = vmul.f32 %v2973, %v464
    %v2976 = vmul.f32 %v2928, %v465
    %v2977 = vmul.f32 %v2931, %v466
    %v2978 = vmul.f32 %v2934, %v467
    %v2979 = vmul.f32 %v2937, %v468
    %v2980 = vmul.f32 %v2940, %v469
    %v2981 = vmul.f32 %v2943, %v470
    %v2982 = vmul.f32 %v2946, %v471
    %v2983 = vmul.f32 %v2949, %v472
    %v2984 = vmul.f32 %v2952, %v473
    %v2985 = vmul.f32 %v2955, %v474
    %v2986 = vmul.f32 %v2958, %v475
    %v2987 = vmul.f32 %v2961, %v476
    %v2988 = vmul.f32 %v2964, %v477
    %v2989 = vmul.f32 %v2967, %v478
    %v2990 = vmul.f32 %v2970, %v479
    %s2991 = scalar_lea.vmem [#allocation2], 192
    %v2992 = vld [vmem:[%s2991] sm:$0xff]
    %v2993 = vld [vmem:[%s2991 + $0x8] sm:$0xff]
    %v2994 = vld [vmem:[%s2991 + $0x10] sm:$0xff]
    %v2995 = vld [vmem:[%s2991 + $0x18] sm:$0xff]
    %v2996 = vld [vmem:[%s2991 + $0x20] sm:$0xff]
    %v2997 = vld [vmem:[%s2991 + $0x28] sm:$0xff]
    %v2998 = vld [vmem:[%s2991 + $0x30] sm:$0xff]
    %v2999 = vld [vmem:[%s2991 + $0x38] sm:$0xff]
    %s3000 = scalar_lea.vmem [#allocation4], 192
    %v3001 = vld [vmem:[%s3000] sm:$0xff]
    %v3002 = vld [vmem:[%s3000 + $0x8] sm:$0xff]
    %v3003 = vld [vmem:[%s3000 + $0x10] sm:$0xff]
    %v3004 = vld [vmem:[%s3000 + $0x18] sm:$0xff]
    %v3005 = vld [vmem:[%s3000 + $0x20] sm:$0xff]
    %v3006 = vld [vmem:[%s3000 + $0x28] sm:$0xff]
    %v3007 = vld [vmem:[%s3000 + $0x30] sm:$0xff]
    %v3008 = vld [vmem:[%s3000 + $0x38] sm:$0xff]
    %v3010 = vsel %vm641, %v2928, 0
    %v3013 = vsel %vm641, %v2931, 0
    %v3016 = vsel %vm641, %v2934, 0
    %v3019 = vsel %vm641, %v2937, 0
    %v3022 = vsel %vm641, %v2940, 0
    %v3025 = vsel %vm641, %v2943, 0
    %v3028 = vsel %vm641, %v2946, 0
    %v3031 = vsel %vm641, %v2949, 0
    %v3034 = vsel %vm641, %v2952, 0
    %v3037 = vsel %vm641, %v2955, 0
    %v3040 = vsel %vm641, %v2958, 0
    %v3043 = vsel %vm641, %v2961, 0
    %v3046 = vsel %vm641, %v2964, 0
    %v3049 = vsel %vm641, %v2967, 0
    %v3052 = vsel %vm641, %v2970, 0
    %v3055 = vsel %vm641, %v2973, 0
    %3057 = vmatpush.msra.mxu0 0.0
    %3058 = vmatpush.msra.mxu0 0.0
    %3059 = vmatpush.msra.mxu0 0.0
    %3060 = vmatpush.msra.mxu0 0.0
    %3061 = vmatpush.msra.mxu0 0.0
    %3062 = vmatpush.msra.mxu0 0.0
    %3063 = vmatpush.msra.mxu0 0.0
    %3064 = vmatpush.msra.mxu0 0.0
    %3065 = vmatpush.msra.mxu0 %v3008
    %3066 = vmatpush.msra.mxu0 %v3007
    %3067 = vmatpush.msra.mxu0 %v3006
    %3068 = vmatpush.msra.mxu0 %v3005
    %3069 = vmatpush.msra.mxu0 %v3004
    %3070 = vmatpush.msra.mxu0 %v3003
    %3071 = vmatpush.msra.mxu0 %v3002
    %3072 = vmatpush.msra.mxu0 %v3001
    %3073 = vmatmul.f32.gmra.mxu0 %v3010
    %v3074 = vpop.f32.mrf.mxu0
    %v3075 = vadd.f32 0.0, %v3074
    %3076 = vmatmul.f32.gmra.mxu0 %v3013
    %v3077 = vpop.f32.mrf.mxu0
    %v3078 = vadd.f32 0.0, %v3077
    %3079 = vmatmul.f32.gmra.mxu0 %v3016
    %v3080 = vpop.f32.mrf.mxu0
    %v3081 = vadd.f32 0.0, %v3080
    %3082 = vmatmul.f32.gmra.mxu0 %v3019
    %v3083 = vpop.f32.mrf.mxu0
    %v3084 = vadd.f32 0.0, %v3083
    %3085 = vmatmul.f32.gmra.mxu0 %v3022
    %v3086 = vpop.f32.mrf.mxu0
    %v3087 = vadd.f32 0.0, %v3086
    %3088 = vmatmul.f32.gmra.mxu0 %v3025
    %v3089 = vpop.f32.mrf.mxu0
    %v3090 = vadd.f32 0.0, %v3089
    %3091 = vmatmul.f32.gmra.mxu0 %v3028
    %v3092 = vpop.f32.mrf.mxu0
    %v3093 = vadd.f32 0.0, %v3092
    %3094 = vmatmul.f32.gmra.mxu0 %v3031
    %v3095 = vpop.f32.mrf.mxu0
    %v3096 = vadd.f32 0.0, %v3095
    %3097 = vmatmul.f32.gmra.mxu0 %v3034
    %v3098 = vpop.f32.mrf.mxu0
    %v3099 = vadd.f32 0.0, %v3098
    %3100 = vmatmul.f32.gmra.mxu0 %v3037
    %v3101 = vpop.f32.mrf.mxu0
    %v3102 = vadd.f32 0.0, %v3101
    %3103 = vmatmul.f32.gmra.mxu0 %v3040
    %v3104 = vpop.f32.mrf.mxu0
    %v3105 = vadd.f32 0.0, %v3104
    %3106 = vmatmul.f32.gmra.mxu0 %v3043
    %v3107 = vpop.f32.mrf.mxu0
    %v3108 = vadd.f32 0.0, %v3107
    %3109 = vmatmul.f32.gmra.mxu0 %v3046
    %v3110 = vpop.f32.mrf.mxu0
    %v3111 = vadd.f32 0.0, %v3110
    %3112 = vmatmul.f32.gmra.mxu0 %v3049
    %v3113 = vpop.f32.mrf.mxu0
    %v3114 = vadd.f32 0.0, %v3113
    %3115 = vmatmul.f32.gmra.mxu0 %v3052
    %v3116 = vpop.f32.mrf.mxu0
    %v3117 = vadd.f32 0.0, %v3116
    %3118 = vmatmul.f32.gmra.mxu0 %v3055
    %v3119 = vpop.f32.mrf.mxu0
    %v3120 = vadd.f32 0.0, %v3119
    %3121 = vdwg.mxu0
    %v3123 = vsel %vm641, %v2975, 0
    %v3126 = vsel %vm641, %v2976, 0
    %v3129 = vsel %vm641, %v2977, 0
    %v3132 = vsel %vm641, %v2978, 0
    %v3135 = vsel %vm641, %v2979, 0
    %v3138 = vsel %vm641, %v2980, 0
    %v3141 = vsel %vm641, %v2981, 0
    %v3144 = vsel %vm641, %v2982, 0
    %v3147 = vsel %vm641, %v2983, 0
    %v3150 = vsel %vm641, %v2984, 0
    %v3153 = vsel %vm641, %v2985, 0
    %v3156 = vsel %vm641, %v2986, 0
    %v3159 = vsel %vm641, %v2987, 0
    %v3162 = vsel %vm641, %v2988, 0
    %v3165 = vsel %vm641, %v2989, 0
    %v3168 = vsel %vm641, %v2990, 0
    %3170 = vmatpush.msra.mxu0 0.0
    %3171 = vmatpush.msra.mxu0 0.0
    %3172 = vmatpush.msra.mxu0 0.0
    %3173 = vmatpush.msra.mxu0 0.0
    %3174 = vmatpush.msra.mxu0 0.0
    %3175 = vmatpush.msra.mxu0 0.0
    %3176 = vmatpush.msra.mxu0 0.0
    %3177 = vmatpush.msra.mxu0 0.0
    %3178 = vmatpush.msra.mxu0 %v2999
    %3179 = vmatpush.msra.mxu0 %v2998
    %3180 = vmatpush.msra.mxu0 %v2997
    %3181 = vmatpush.msra.mxu0 %v2996
    %3182 = vmatpush.msra.mxu0 %v2995
    %3183 = vmatpush.msra.mxu0 %v2994
    %3184 = vmatpush.msra.mxu0 %v2993
    %3185 = vmatpush.msra.mxu0 %v2992
    %3186 = vmatmul.f32.gmra.mxu0 %v3123
    %v3187 = vpop.f32.mrf.mxu0
    %v3188 = vadd.f32 %v3075, %v3187
    %3189 = vmatmul.f32.gmra.mxu0 %v3126
    %v3190 = vpop.f32.mrf.mxu0
    %v3191 = vadd.f32 %v3078, %v3190
    %3192 = vmatmul.f32.gmra.mxu0 %v3129
    %v3193 = vpop.f32.mrf.mxu0
    %v3194 = vadd.f32 %v3081, %v3193
    %3195 = vmatmul.f32.gmra.mxu0 %v3132
    %v3196 = vpop.f32.mrf.mxu0
    %v3197 = vadd.f32 %v3084, %v3196
    %3198 = vmatmul.f32.gmra.mxu0 %v3135
    %v3199 = vpop.f32.mrf.mxu0
    %v3200 = vadd.f32 %v3087, %v3199
    %3201 = vmatmul.f32.gmra.mxu0 %v3138
    %v3202 = vpop.f32.mrf.mxu0
    %v3203 = vadd.f32 %v3090, %v3202
    %3204 = vmatmul.f32.gmra.mxu0 %v3141
    %v3205 = vpop.f32.mrf.mxu0
    %v3206 = vadd.f32 %v3093, %v3205
    %3207 = vmatmul.f32.gmra.mxu0 %v3144
    %v3208 = vpop.f32.mrf.mxu0
    %v3209 = vadd.f32 %v3096, %v3208
    %3210 = vmatmul.f32.gmra.mxu0 %v3147
    %v3211 = vpop.f32.mrf.mxu0
    %v3212 = vadd.f32 %v3099, %v3211
    %3213 = vmatmul.f32.gmra.mxu0 %v3150
    %v3214 = vpop.f32.mrf.mxu0
    %v3215 = vadd.f32 %v3102, %v3214
    %3216 = vmatmul.f32.gmra.mxu0 %v3153
    %v3217 = vpop.f32.mrf.mxu0
    %v3218 = vadd.f32 %v3105, %v3217
    %3219 = vmatmul.f32.gmra.mxu0 %v3156
    %v3220 = vpop.f32.mrf.mxu0
    %v3221 = vadd.f32 %v3108, %v3220
    %3222 = vmatmul.f32.gmra.mxu0 %v3159
    %v3223 = vpop.f32.mrf.mxu0
    %v3224 = vadd.f32 %v3111, %v3223
    %3225 = vmatmul.f32.gmra.mxu0 %v3162
    %v3226 = vpop.f32.mrf.mxu0
    %v3227 = vadd.f32 %v3114, %v3226
    %3228 = vmatmul.f32.gmra.mxu0 %v3165
    %v3229 = vpop.f32.mrf.mxu0
    %v3230 = vadd.f32 %v3117, %v3229
    %3231 = vmatmul.f32.gmra.mxu0 %v3168
    %v3232 = vpop.f32.mrf.mxu0
    %v3233 = vadd.f32 %v3120, %v3232
    %3234 = vdwg.mxu0
    %s3235 = scalar_lea.vmem %s5, 3
    %v3236 = vld [vmem:[%s3235] sm:$0x1]
    %v3238 = vperm.slane %v3236, 0
    %v3240 = vadd.f32 %v3188, %v3238
    %v3241 = vadd.f32 %v3191, %v3238
    %v3242 = vadd.f32 %v3194, %v3238
    %v3243 = vadd.f32 %v3197, %v3238
    %v3244 = vadd.f32 %v3200, %v3238
    %v3245 = vadd.f32 %v3203, %v3238
    %v3246 = vadd.f32 %v3206, %v3238
    %v3247 = vadd.f32 %v3209, %v3238
    %v3248 = vadd.f32 %v3212, %v3238
    %v3249 = vadd.f32 %v3215, %v3238
    %v3250 = vadd.f32 %v3218, %v3238
    %v3251 = vadd.f32 %v3221, %v3238
    %v3252 = vadd.f32 %v3224, %v3238
    %v3253 = vadd.f32 %v3227, %v3238
    %v3254 = vadd.f32 %v3230, %v3238
    %v3255 = vadd.f32 %v3233, %v3238
    %v3256 = vmax.f32 %v3240, 0.0
    %v3257 = vmax.f32 %v3241, 0.0
    %v3258 = vmax.f32 %v3242, 0.0
    %v3259 = vmax.f32 %v3243, 0.0
    %v3260 = vmax.f32 %v3244, 0.0
    %v3261 = vmax.f32 %v3245, 0.0
    %v3262 = vmax.f32 %v3246, 0.0
    %v3263 = vmax.f32 %v3247, 0.0
    %v3264 = vmax.f32 %v3248, 0.0
    %v3265 = vmax.f32 %v3249, 0.0
    %v3266 = vmax.f32 %v3250, 0.0
    %v3267 = vmax.f32 %v3251, 0.0
    %v3268 = vmax.f32 %v3252, 0.0
    %v3269 = vmax.f32 %v3253, 0.0
    %v3270 = vmax.f32 %v3254, 0.0
    %v3271 = vmax.f32 %v3255, 0.0
    %v3272 = vmul.f32 %v3271, %v464
    %v3273 = vmul.f32 %v3256, %v465
    %v3274 = vmul.f32 %v3257, %v466
    %v3275 = vmul.f32 %v3258, %v467
    %v3276 = vmul.f32 %v3259, %v468
    %v3277 = vmul.f32 %v3260, %v469
    %v3278 = vmul.f32 %v3261, %v470
    %v3279 = vmul.f32 %v3262, %v471
    %v3280 = vmul.f32 %v3263, %v472
    %v3281 = vmul.f32 %v3264, %v473
    %v3282 = vmul.f32 %v3265, %v474
    %v3283 = vmul.f32 %v3266, %v475
    %v3284 = vmul.f32 %v3267, %v476
    %v3285 = vmul.f32 %v3268, %v477
    %v3286 = vmul.f32 %v3269, %v478
    %v3287 = vmul.f32 %v3270, %v479
    %s3288 = scalar_lea.vmem [#allocation6], 192
    %v3289 = vld [vmem:[%s3288] sm:$0xff]
    %v3290 = vld [vmem:[%s3288 + $0x8] sm:$0xff]
    %v3291 = vld [vmem:[%s3288 + $0x10] sm:$0xff]
    %v3292 = vld [vmem:[%s3288 + $0x18] sm:$0xff]
    %v3293 = vld [vmem:[%s3288 + $0x20] sm:$0xff]
    %v3294 = vld [vmem:[%s3288 + $0x28] sm:$0xff]
    %v3295 = vld [vmem:[%s3288 + $0x30] sm:$0xff]
    %v3296 = vld [vmem:[%s3288 + $0x38] sm:$0xff]
    %s3297 = scalar_lea.vmem [#allocation7], 192
    %v3298 = vld [vmem:[%s3297] sm:$0xff]
    %v3299 = vld [vmem:[%s3297 + $0x8] sm:$0xff]
    %v3300 = vld [vmem:[%s3297 + $0x10] sm:$0xff]
    %v3301 = vld [vmem:[%s3297 + $0x18] sm:$0xff]
    %v3302 = vld [vmem:[%s3297 + $0x20] sm:$0xff]
    %v3303 = vld [vmem:[%s3297 + $0x28] sm:$0xff]
    %v3304 = vld [vmem:[%s3297 + $0x30] sm:$0xff]
    %v3305 = vld [vmem:[%s3297 + $0x38] sm:$0xff]
    %v3307 = vsel %vm641, %v3256, 0
    %v3310 = vsel %vm641, %v3257, 0
    %v3313 = vsel %vm641, %v3258, 0
    %v3316 = vsel %vm641, %v3259, 0
    %v3319 = vsel %vm641, %v3260, 0
    %v3322 = vsel %vm641, %v3261, 0
    %v3325 = vsel %vm641, %v3262, 0
    %v3328 = vsel %vm641, %v3263, 0
    %v3331 = vsel %vm641, %v3264, 0
    %v3334 = vsel %vm641, %v3265, 0
    %v3337 = vsel %vm641, %v3266, 0
    %v3340 = vsel %vm641, %v3267, 0
    %v3343 = vsel %vm641, %v3268, 0
    %v3346 = vsel %vm641, %v3269, 0
    %v3349 = vsel %vm641, %v3270, 0
    %v3352 = vsel %vm641, %v3271, 0
    %3354 = vmatpush.msra.mxu0 0.0
    %3355 = vmatpush.msra.mxu0 0.0
    %3356 = vmatpush.msra.mxu0 0.0
    %3357 = vmatpush.msra.mxu0 0.0
    %3358 = vmatpush.msra.mxu0 0.0
    %3359 = vmatpush.msra.mxu0 0.0
    %3360 = vmatpush.msra.mxu0 0.0
    %3361 = vmatpush.msra.mxu0 0.0
    %3362 = vmatpush.msra.mxu0 %v3305
    %3363 = vmatpush.msra.mxu0 %v3304
    %3364 = vmatpush.msra.mxu0 %v3303
    %3365 = vmatpush.msra.mxu0 %v3302
    %3366 = vmatpush.msra.mxu0 %v3301
    %3367 = vmatpush.msra.mxu0 %v3300
    %3368 = vmatpush.msra.mxu0 %v3299
    %3369 = vmatpush.msra.mxu0 %v3298
    %3370 = vmatmul.f32.gmra.mxu0 %v3307
    %v3371 = vpop.f32.mrf.mxu0
    %v3372 = vadd.f32 0.0, %v3371
    %3373 = vmatmul.f32.gmra.mxu0 %v3310
    %v3374 = vpop.f32.mrf.mxu0
    %v3375 = vadd.f32 0.0, %v3374
    %3376 = vmatmul.f32.gmra.mxu0 %v3313
    %v3377 = vpop.f32.mrf.mxu0
    %v3378 = vadd.f32 0.0, %v3377
    %3379 = vmatmul.f32.gmra.mxu0 %v3316
    %v3380 = vpop.f32.mrf.mxu0
    %v3381 = vadd.f32 0.0, %v3380
    %3382 = vmatmul.f32.gmra.mxu0 %v3319
    %v3383 = vpop.f32.mrf.mxu0
    %v3384 = vadd.f32 0.0, %v3383
    %3385 = vmatmul.f32.gmra.mxu0 %v3322
    %v3386 = vpop.f32.mrf.mxu0
    %v3387 = vadd.f32 0.0, %v3386
    %3388 = vmatmul.f32.gmra.mxu0 %v3325
    %v3389 = vpop.f32.mrf.mxu0
    %v3390 = vadd.f32 0.0, %v3389
    %3391 = vmatmul.f32.gmra.mxu0 %v3328
    %v3392 = vpop.f32.mrf.mxu0
    %v3393 = vadd.f32 0.0, %v3392
    %3394 = vmatmul.f32.gmra.mxu0 %v3331
    %v3395 = vpop.f32.mrf.mxu0
    %v3396 = vadd.f32 0.0, %v3395
    %3397 = vmatmul.f32.gmra.mxu0 %v3334
    %v3398 = vpop.f32.mrf.mxu0
    %v3399 = vadd.f32 0.0, %v3398
    %3400 = vmatmul.f32.gmra.mxu0 %v3337
    %v3401 = vpop.f32.mrf.mxu0
    %v3402 = vadd.f32 0.0, %v3401
    %3403 = vmatmul.f32.gmra.mxu0 %v3340
    %v3404 = vpop.f32.mrf.mxu0
    %v3405 = vadd.f32 0.0, %v3404
    %3406 = vmatmul.f32.gmra.mxu0 %v3343
    %v3407 = vpop.f32.mrf.mxu0
    %v3408 = vadd.f32 0.0, %v3407
    %3409 = vmatmul.f32.gmra.mxu0 %v3346
    %v3410 = vpop.f32.mrf.mxu0
    %v3411 = vadd.f32 0.0, %v3410
    %3412 = vmatmul.f32.gmra.mxu0 %v3349
    %v3413 = vpop.f32.mrf.mxu0
    %v3414 = vadd.f32 0.0, %v3413
    %3415 = vmatmul.f32.gmra.mxu0 %v3352
    %v3416 = vpop.f32.mrf.mxu0
    %v3417 = vadd.f32 0.0, %v3416
    %3418 = vdwg.mxu0
    %v3420 = vsel %vm641, %v3272, 0
    %v3423 = vsel %vm641, %v3273, 0
    %v3426 = vsel %vm641, %v3274, 0
    %v3429 = vsel %vm641, %v3275, 0
    %v3432 = vsel %vm641, %v3276, 0
    %v3435 = vsel %vm641, %v3277, 0
    %v3438 = vsel %vm641, %v3278, 0
    %v3441 = vsel %vm641, %v3279, 0
    %v3444 = vsel %vm641, %v3280, 0
    %v3447 = vsel %vm641, %v3281, 0
    %v3450 = vsel %vm641, %v3282, 0
    %v3453 = vsel %vm641, %v3283, 0
    %v3456 = vsel %vm641, %v3284, 0
    %v3459 = vsel %vm641, %v3285, 0
    %v3462 = vsel %vm641, %v3286, 0
    %v3465 = vsel %vm641, %v3287, 0
    %3467 = vmatpush.msra.mxu0 0.0
    %3468 = vmatpush.msra.mxu0 0.0
    %3469 = vmatpush.msra.mxu0 0.0
    %3470 = vmatpush.msra.mxu0 0.0
    %3471 = vmatpush.msra.mxu0 0.0
    %3472 = vmatpush.msra.mxu0 0.0
    %3473 = vmatpush.msra.mxu0 0.0
    %3474 = vmatpush.msra.mxu0 0.0
    %3475 = vmatpush.msra.mxu0 %v3296
    %3476 = vmatpush.msra.mxu0 %v3295
    %3477 = vmatpush.msra.mxu0 %v3294
    %3478 = vmatpush.msra.mxu0 %v3293
    %3479 = vmatpush.msra.mxu0 %v3292
    %3480 = vmatpush.msra.mxu0 %v3291
    %3481 = vmatpush.msra.mxu0 %v3290
    %3482 = vmatpush.msra.mxu0 %v3289
    %3483 = vmatmul.f32.gmra.mxu0 %v3420
    %v3484 = vpop.f32.mrf.mxu0
    %v3485 = vadd.f32 %v3372, %v3484
    %3486 = vmatmul.f32.gmra.mxu0 %v3423
    %v3487 = vpop.f32.mrf.mxu0
    %v3488 = vadd.f32 %v3375, %v3487
    %3489 = vmatmul.f32.gmra.mxu0 %v3426
    %v3490 = vpop.f32.mrf.mxu0
    %v3491 = vadd.f32 %v3378, %v3490
    %3492 = vmatmul.f32.gmra.mxu0 %v3429
    %v3493 = vpop.f32.mrf.mxu0
    %v3494 = vadd.f32 %v3381, %v3493
    %3495 = vmatmul.f32.gmra.mxu0 %v3432
    %v3496 = vpop.f32.mrf.mxu0
    %v3497 = vadd.f32 %v3384, %v3496
    %3498 = vmatmul.f32.gmra.mxu0 %v3435
    %v3499 = vpop.f32.mrf.mxu0
    %v3500 = vadd.f32 %v3387, %v3499
    %3501 = vmatmul.f32.gmra.mxu0 %v3438
    %v3502 = vpop.f32.mrf.mxu0
    %v3503 = vadd.f32 %v3390, %v3502
    %3504 = vmatmul.f32.gmra.mxu0 %v3441
    %v3505 = vpop.f32.mrf.mxu0
    %v3506 = vadd.f32 %v3393, %v3505
    %3507 = vmatmul.f32.gmra.mxu0 %v3444
    %v3508 = vpop.f32.mrf.mxu0
    %v3509 = vadd.f32 %v3396, %v3508
    %3510 = vmatmul.f32.gmra.mxu0 %v3447
    %v3511 = vpop.f32.mrf.mxu0
    %v3512 = vadd.f32 %v3399, %v3511
    %3513 = vmatmul.f32.gmra.mxu0 %v3450
    %v3514 = vpop.f32.mrf.mxu0
    %v3515 = vadd.f32 %v3402, %v3514
    %3516 = vmatmul.f32.gmra.mxu0 %v3453
    %v3517 = vpop.f32.mrf.mxu0
    %v3518 = vadd.f32 %v3405, %v3517
    %3519 = vmatmul.f32.gmra.mxu0 %v3456
    %v3520 = vpop.f32.mrf.mxu0
    %v3521 = vadd.f32 %v3408, %v3520
    %3522 = vmatmul.f32.gmra.mxu0 %v3459
    %v3523 = vpop.f32.mrf.mxu0
    %v3524 = vadd.f32 %v3411, %v3523
    %3525 = vmatmul.f32.gmra.mxu0 %v3462
    %v3526 = vpop.f32.mrf.mxu0
    %v3527 = vadd.f32 %v3414, %v3526
    %3528 = vmatmul.f32.gmra.mxu0 %v3465
    %v3529 = vpop.f32.mrf.mxu0
    %v3530 = vadd.f32 %v3417, %v3529
    %3531 = vdwg.mxu0
    %s3532 = scalar_lea.vmem %s8, 3
    %v3533 = vld [vmem:[%s3532] sm:$0x1]
    %v3535 = vperm.slane %v3533, 0
    %v3537 = vadd.f32 %v3485, %v3535
    %v3538 = vadd.f32 %v3488, %v3535
    %v3539 = vadd.f32 %v3491, %v3535
    %v3540 = vadd.f32 %v3494, %v3535
    %v3541 = vadd.f32 %v3497, %v3535
    %v3542 = vadd.f32 %v3500, %v3535
    %v3543 = vadd.f32 %v3503, %v3535
    %v3544 = vadd.f32 %v3506, %v3535
    %v3545 = vadd.f32 %v3509, %v3535
    %v3546 = vadd.f32 %v3512, %v3535
    %v3547 = vadd.f32 %v3515, %v3535
    %v3548 = vadd.f32 %v3518, %v3535
    %v3549 = vadd.f32 %v3521, %v3535
    %v3550 = vadd.f32 %v3524, %v3535
    %v3551 = vadd.f32 %v3527, %v3535
    %v3552 = vadd.f32 %v3530, %v3535
    %v3553 = vmax.f32 %v3537, 0.0
    %v3554 = vmax.f32 %v3538, 0.0
    %v3555 = vmax.f32 %v3539, 0.0
    %v3556 = vmax.f32 %v3540, 0.0
    %v3557 = vmax.f32 %v3541, 0.0
    %v3558 = vmax.f32 %v3542, 0.0
    %v3559 = vmax.f32 %v3543, 0.0
    %v3560 = vmax.f32 %v3544, 0.0
    %v3561 = vmax.f32 %v3545, 0.0
    %v3562 = vmax.f32 %v3546, 0.0
    %v3563 = vmax.f32 %v3547, 0.0
    %v3564 = vmax.f32 %v3548, 0.0
    %v3565 = vmax.f32 %v3549, 0.0
    %v3566 = vmax.f32 %v3550, 0.0
    %v3567 = vmax.f32 %v3551, 0.0
    %v3568 = vmax.f32 %v3552, 0.0
    %v3569 = vadd.f32 %v2832, %v3553
    %v3570 = vadd.f32 %v2833, %v3554
    %v3571 = vadd.f32 %v2834, %v3555
    %v3572 = vadd.f32 %v2835, %v3556
    %v3573 = vadd.f32 %v2836, %v3557
    %v3574 = vadd.f32 %v2837, %v3558
    %v3575 = vadd.f32 %v2838, %v3559
    %v3576 = vadd.f32 %v2839, %v3560
    %v3577 = vadd.f32 %v2840, %v3561
    %v3578 = vadd.f32 %v2841, %v3562
    %v3579 = vadd.f32 %v2842, %v3563
    %v3580 = vadd.f32 %v2843, %v3564
    %v3581 = vadd.f32 %v2844, %v3565
    %v3582 = vadd.f32 %v2845, %v3566
    %v3583 = vadd.f32 %v2846, %v3567
    %v3584 = vadd.f32 %v2847, %v3568
    %s3585 = scalar_lea.vmem [#allocation9], 192
    %v3586 = vld [vmem:[%s3585] sm:$0xff]
    %v3587 = vld [vmem:[%s3585 + $0x8] sm:$0xff]
    %v3588 = vld [vmem:[%s3585 + $0x10] sm:$0xff]
    %v3589 = vld [vmem:[%s3585 + $0x18] sm:$0xff]
    %v3590 = vld [vmem:[%s3585 + $0x20] sm:$0xff]
    %v3591 = vld [vmem:[%s3585 + $0x28] sm:$0xff]
    %v3592 = vld [vmem:[%s3585 + $0x30] sm:$0xff]
    %v3593 = vld [vmem:[%s3585 + $0x38] sm:$0xff]
    %s3594 = scalar_lea.vmem %s10, 3
    %v3595 = vld [vmem:[%s3594] sm:$0x1]
    %v3597 = vperm.slane %v3595, 0
    %v3600 = vsel %vm641, %v3553, 0
    %v3603 = vsel %vm641, %v3554, 0
    %v3606 = vsel %vm641, %v3555, 0
    %v3609 = vsel %vm641, %v3556, 0
    %v3612 = vsel %vm641, %v3557, 0
    %v3615 = vsel %vm641, %v3558, 0
    %v3618 = vsel %vm641, %v3559, 0
    %v3621 = vsel %vm641, %v3560, 0
    %v3624 = vsel %vm641, %v3561, 0
    %v3627 = vsel %vm641, %v3562, 0
    %v3630 = vsel %vm641, %v3563, 0
    %v3633 = vsel %vm641, %v3564, 0
    %v3636 = vsel %vm641, %v3565, 0
    %v3639 = vsel %vm641, %v3566, 0
    %v3642 = vsel %vm641, %v3567, 0
    %v3645 = vsel %vm641, %v3568, 0
    %3647 = vmatpush.msra.mxu0 0.0
    %3648 = vmatpush.msra.mxu0 0.0
    %3649 = vmatpush.msra.mxu0 0.0
    %3650 = vmatpush.msra.mxu0 0.0
    %3651 = vmatpush.msra.mxu0 0.0
    %3652 = vmatpush.msra.mxu0 0.0
    %3653 = vmatpush.msra.mxu0 0.0
    %3654 = vmatpush.msra.mxu0 0.0
    %3655 = vmatpush.msra.mxu0 %v3593
    %3656 = vmatpush.msra.mxu0 %v3592
    %3657 = vmatpush.msra.mxu0 %v3591
    %3658 = vmatpush.msra.mxu0 %v3590
    %3659 = vmatpush.msra.mxu0 %v3589
    %3660 = vmatpush.msra.mxu0 %v3588
    %3661 = vmatpush.msra.mxu0 %v3587
    %3662 = vmatpush.msra.mxu0 %v3586
    %3663 = vmatmul.f32.gmra.mxu0 %v3600
    %v3664 = vpop.f32.mrf.mxu0
    %v3665 = vadd.f32 %v3597, %v3664
    %3666 = vmatmul.f32.gmra.mxu0 %v3603
    %v3667 = vpop.f32.mrf.mxu0
    %v3668 = vadd.f32 %v3597, %v3667
    %3669 = vmatmul.f32.gmra.mxu0 %v3606
    %v3670 = vpop.f32.mrf.mxu0
    %v3671 = vadd.f32 %v3597, %v3670
    %3672 = vmatmul.f32.gmra.mxu0 %v3609
    %v3673 = vpop.f32.mrf.mxu0
    %v3674 = vadd.f32 %v3597, %v3673
    %3675 = vmatmul.f32.gmra.mxu0 %v3612
    %v3676 = vpop.f32.mrf.mxu0
    %v3677 = vadd.f32 %v3597, %v3676
    %3678 = vmatmul.f32.gmra.mxu0 %v3615
    %v3679 = vpop.f32.mrf.mxu0
    %v3680 = vadd.f32 %v3597, %v3679
    %3681 = vmatmul.f32.gmra.mxu0 %v3618
    %v3682 = vpop.f32.mrf.mxu0
    %v3683 = vadd.f32 %v3597, %v3682
    %3684 = vmatmul.f32.gmra.mxu0 %v3621
    %v3685 = vpop.f32.mrf.mxu0
    %v3686 = vadd.f32 %v3597, %v3685
    %3687 = vmatmul.f32.gmra.mxu0 %v3624
    %v3688 = vpop.f32.mrf.mxu0
    %v3689 = vadd.f32 %v3597, %v3688
    %3690 = vmatmul.f32.gmra.mxu0 %v3627
    %v3691 = vpop.f32.mrf.mxu0
    %v3692 = vadd.f32 %v3597, %v3691
    %3693 = vmatmul.f32.gmra.mxu0 %v3630
    %v3694 = vpop.f32.mrf.mxu0
    %v3695 = vadd.f32 %v3597, %v3694
    %3696 = vmatmul.f32.gmra.mxu0 %v3633
    %v3697 = vpop.f32.mrf.mxu0
    %v3698 = vadd.f32 %v3597, %v3697
    %3699 = vmatmul.f32.gmra.mxu0 %v3636
    %v3700 = vpop.f32.mrf.mxu0
    %v3701 = vadd.f32 %v3597, %v3700
    %3702 = vmatmul.f32.gmra.mxu0 %v3639
    %v3703 = vpop.f32.mrf.mxu0
    %v3704 = vadd.f32 %v3597, %v3703
    %3705 = vmatmul.f32.gmra.mxu0 %v3642
    %v3706 = vpop.f32.mrf.mxu0
    %v3707 = vadd.f32 %v3597, %v3706
    %3708 = vmatmul.f32.gmra.mxu0 %v3645
    %v3709 = vpop.f32.mrf.mxu0
    %v3710 = vadd.f32 %v3597, %v3709
    %3711 = vdwg.mxu0
    %v3712 = vmul.f32 %v3707, %v512
    %v3713 = vmul.f32 %v3710, %v513
    %v3714 = vmul.f32 %v3665, %v514
    %v3715 = vmul.f32 %v3668, %v515
    %v3716 = vmul.f32 %v3671, %v516
    %v3717 = vmul.f32 %v3674, %v517
    %v3718 = vmul.f32 %v3677, %v518
    %v3719 = vmul.f32 %v3680, %v519
    %v3720 = vmul.f32 %v3683, %v520
    %v3721 = vmul.f32 %v3686, %v521
    %v3722 = vmul.f32 %v3689, %v522
    %v3723 = vmul.f32 %v3692, %v523
    %v3724 = vmul.f32 %v3695, %v524
    %v3725 = vmul.f32 %v3698, %v525
    %v3726 = vmul.f32 %v3701, %v526
    %v3727 = vmul.f32 %v3704, %v527
    %s3728 = scalar_lea.vmem [#allocation2], 256
    %v3729 = vld [vmem:[%s3728] sm:$0xff]
    %v3730 = vld [vmem:[%s3728 + $0x8] sm:$0xff]
    %v3731 = vld [vmem:[%s3728 + $0x10] sm:$0xff]
    %v3732 = vld [vmem:[%s3728 + $0x18] sm:$0xff]
    %v3733 = vld [vmem:[%s3728 + $0x20] sm:$0xff]
    %v3734 = vld [vmem:[%s3728 + $0x28] sm:$0xff]
    %v3735 = vld [vmem:[%s3728 + $0x30] sm:$0xff]
    %v3736 = vld [vmem:[%s3728 + $0x38] sm:$0xff]
    %s3737 = scalar_lea.vmem [#allocation4], 256
    %v3738 = vld [vmem:[%s3737] sm:$0xff]
    %v3739 = vld [vmem:[%s3737 + $0x8] sm:$0xff]
    %v3740 = vld [vmem:[%s3737 + $0x10] sm:$0xff]
    %v3741 = vld [vmem:[%s3737 + $0x18] sm:$0xff]
    %v3742 = vld [vmem:[%s3737 + $0x20] sm:$0xff]
    %v3743 = vld [vmem:[%s3737 + $0x28] sm:$0xff]
    %v3744 = vld [vmem:[%s3737 + $0x30] sm:$0xff]
    %v3745 = vld [vmem:[%s3737 + $0x38] sm:$0xff]
    %v3747 = vsel %vm641, %v3665, 0
    %v3750 = vsel %vm641, %v3668, 0
    %v3753 = vsel %vm641, %v3671, 0
    %v3756 = vsel %vm641, %v3674, 0
    %v3759 = vsel %vm641, %v3677, 0
    %v3762 = vsel %vm641, %v3680, 0
    %v3765 = vsel %vm641, %v3683, 0
    %v3768 = vsel %vm641, %v3686, 0
    %v3771 = vsel %vm641, %v3689, 0
    %v3774 = vsel %vm641, %v3692, 0
    %v3777 = vsel %vm641, %v3695, 0
    %v3780 = vsel %vm641, %v3698, 0
    %v3783 = vsel %vm641, %v3701, 0
    %v3786 = vsel %vm641, %v3704, 0
    %v3789 = vsel %vm641, %v3707, 0
    %v3792 = vsel %vm641, %v3710, 0
    %3794 = vmatpush.msra.mxu0 0.0
    %3795 = vmatpush.msra.mxu0 0.0
    %3796 = vmatpush.msra.mxu0 0.0
    %3797 = vmatpush.msra.mxu0 0.0
    %3798 = vmatpush.msra.mxu0 0.0
    %3799 = vmatpush.msra.mxu0 0.0
    %3800 = vmatpush.msra.mxu0 0.0
    %3801 = vmatpush.msra.mxu0 0.0
    %3802 = vmatpush.msra.mxu0 %v3745
    %3803 = vmatpush.msra.mxu0 %v3744
    %3804 = vmatpush.msra.mxu0 %v3743
    %3805 = vmatpush.msra.mxu0 %v3742
    %3806 = vmatpush.msra.mxu0 %v3741
    %3807 = vmatpush.msra.mxu0 %v3740
    %3808 = vmatpush.msra.mxu0 %v3739
    %3809 = vmatpush.msra.mxu0 %v3738
    %3810 = vmatmul.f32.gmra.mxu0 %v3747
    %v3811 = vpop.f32.mrf.mxu0
    %v3812 = vadd.f32 0.0, %v3811
    %3813 = vmatmul.f32.gmra.mxu0 %v3750
    %v3814 = vpop.f32.mrf.mxu0
    %v3815 = vadd.f32 0.0, %v3814
    %3816 = vmatmul.f32.gmra.mxu0 %v3753
    %v3817 = vpop.f32.mrf.mxu0
    %v3818 = vadd.f32 0.0, %v3817
    %3819 = vmatmul.f32.gmra.mxu0 %v3756
    %v3820 = vpop.f32.mrf.mxu0
    %v3821 = vadd.f32 0.0, %v3820
    %3822 = vmatmul.f32.gmra.mxu0 %v3759
    %v3823 = vpop.f32.mrf.mxu0
    %v3824 = vadd.f32 0.0, %v3823
    %3825 = vmatmul.f32.gmra.mxu0 %v3762
    %v3826 = vpop.f32.mrf.mxu0
    %v3827 = vadd.f32 0.0, %v3826
    %3828 = vmatmul.f32.gmra.mxu0 %v3765
    %v3829 = vpop.f32.mrf.mxu0
    %v3830 = vadd.f32 0.0, %v3829
    %3831 = vmatmul.f32.gmra.mxu0 %v3768
    %v3832 = vpop.f32.mrf.mxu0
    %v3833 = vadd.f32 0.0, %v3832
    %3834 = vmatmul.f32.gmra.mxu0 %v3771
    %v3835 = vpop.f32.mrf.mxu0
    %v3836 = vadd.f32 0.0, %v3835
    %3837 = vmatmul.f32.gmra.mxu0 %v3774
    %v3838 = vpop.f32.mrf.mxu0
    %v3839 = vadd.f32 0.0, %v3838
    %3840 = vmatmul.f32.gmra.mxu0 %v3777
    %v3841 = vpop.f32.mrf.mxu0
    %v3842 = vadd.f32 0.0, %v3841
    %3843 = vmatmul.f32.gmra.mxu0 %v3780
    %v3844 = vpop.f32.mrf.mxu0
    %v3845 = vadd.f32 0.0, %v3844
    %3846 = vmatmul.f32.gmra.mxu0 %v3783
    %v3847 = vpop.f32.mrf.mxu0
    %v3848 = vadd.f32 0.0, %v3847
    %3849 = vmatmul.f32.gmra.mxu0 %v3786
    %v3850 = vpop.f32.mrf.mxu0
    %v3851 = vadd.f32 0.0, %v3850
    %3852 = vmatmul.f32.gmra.mxu0 %v3789
    %v3853 = vpop.f32.mrf.mxu0
    %v3854 = vadd.f32 0.0, %v3853
    %3855 = vmatmul.f32.gmra.mxu0 %v3792
    %v3856 = vpop.f32.mrf.mxu0
    %v3857 = vadd.f32 0.0, %v3856
    %3858 = vdwg.mxu0
    %v3860 = vsel %vm641, %v3712, 0
    %v3863 = vsel %vm641, %v3713, 0
    %v3866 = vsel %vm641, %v3714, 0
    %v3869 = vsel %vm641, %v3715, 0
    %v3872 = vsel %vm641, %v3716, 0
    %v3875 = vsel %vm641, %v3717, 0
    %v3878 = vsel %vm641, %v3718, 0
    %v3881 = vsel %vm641, %v3719, 0
    %v3884 = vsel %vm641, %v3720, 0
    %v3887 = vsel %vm641, %v3721, 0
    %v3890 = vsel %vm641, %v3722, 0
    %v3893 = vsel %vm641, %v3723, 0
    %v3896 = vsel %vm641, %v3724, 0
    %v3899 = vsel %vm641, %v3725, 0
    %v3902 = vsel %vm641, %v3726, 0
    %v3905 = vsel %vm641, %v3727, 0
    %3907 = vmatpush.msra.mxu0 0.0
    %3908 = vmatpush.msra.mxu0 0.0
    %3909 = vmatpush.msra.mxu0 0.0
    %3910 = vmatpush.msra.mxu0 0.0
    %3911 = vmatpush.msra.mxu0 0.0
    %3912 = vmatpush.msra.mxu0 0.0
    %3913 = vmatpush.msra.mxu0 0.0
    %3914 = vmatpush.msra.mxu0 0.0
    %3915 = vmatpush.msra.mxu0 %v3736
    %3916 = vmatpush.msra.mxu0 %v3735
    %3917 = vmatpush.msra.mxu0 %v3734
    %3918 = vmatpush.msra.mxu0 %v3733
    %3919 = vmatpush.msra.mxu0 %v3732
    %3920 = vmatpush.msra.mxu0 %v3731
    %3921 = vmatpush.msra.mxu0 %v3730
    %3922 = vmatpush.msra.mxu0 %v3729
    %3923 = vmatmul.f32.gmra.mxu0 %v3860
    %v3924 = vpop.f32.mrf.mxu0
    %v3925 = vadd.f32 %v3812, %v3924
    %3926 = vmatmul.f32.gmra.mxu0 %v3863
    %v3927 = vpop.f32.mrf.mxu0
    %v3928 = vadd.f32 %v3815, %v3927
    %3929 = vmatmul.f32.gmra.mxu0 %v3866
    %v3930 = vpop.f32.mrf.mxu0
    %v3931 = vadd.f32 %v3818, %v3930
    %3932 = vmatmul.f32.gmra.mxu0 %v3869
    %v3933 = vpop.f32.mrf.mxu0
    %v3934 = vadd.f32 %v3821, %v3933
    %3935 = vmatmul.f32.gmra.mxu0 %v3872
    %v3936 = vpop.f32.mrf.mxu0
    %v3937 = vadd.f32 %v3824, %v3936
    %3938 = vmatmul.f32.gmra.mxu0 %v3875
    %v3939 = vpop.f32.mrf.mxu0
    %v3940 = vadd.f32 %v3827, %v3939
    %3941 = vmatmul.f32.gmra.mxu0 %v3878
    %v3942 = vpop.f32.mrf.mxu0
    %v3943 = vadd.f32 %v3830, %v3942
    %3944 = vmatmul.f32.gmra.mxu0 %v3881
    %v3945 = vpop.f32.mrf.mxu0
    %v3946 = vadd.f32 %v3833, %v3945
    %3947 = vmatmul.f32.gmra.mxu0 %v3884
    %v3948 = vpop.f32.mrf.mxu0
    %v3949 = vadd.f32 %v3836, %v3948
    %3950 = vmatmul.f32.gmra.mxu0 %v3887
    %v3951 = vpop.f32.mrf.mxu0
    %v3952 = vadd.f32 %v3839, %v3951
    %3953 = vmatmul.f32.gmra.mxu0 %v3890
    %v3954 = vpop.f32.mrf.mxu0
    %v3955 = vadd.f32 %v3842, %v3954
    %3956 = vmatmul.f32.gmra.mxu0 %v3893
    %v3957 = vpop.f32.mrf.mxu0
    %v3958 = vadd.f32 %v3845, %v3957
    %3959 = vmatmul.f32.gmra.mxu0 %v3896
    %v3960 = vpop.f32.mrf.mxu0
    %v3961 = vadd.f32 %v3848, %v3960
    %3962 = vmatmul.f32.gmra.mxu0 %v3899
    %v3963 = vpop.f32.mrf.mxu0
    %v3964 = vadd.f32 %v3851, %v3963
    %3965 = vmatmul.f32.gmra.mxu0 %v3902
    %v3966 = vpop.f32.mrf.mxu0
    %v3967 = vadd.f32 %v3854, %v3966
    %3968 = vmatmul.f32.gmra.mxu0 %v3905
    %v3969 = vpop.f32.mrf.mxu0
    %v3970 = vadd.f32 %v3857, %v3969
    %3971 = vdwg.mxu0
    %s3972 = scalar_lea.vmem %s5, 4
    %v3973 = vld [vmem:[%s3972] sm:$0x1]
    %v3975 = vperm.slane %v3973, 0
    %v3977 = vadd.f32 %v3925, %v3975
    %v3978 = vadd.f32 %v3928, %v3975
    %v3979 = vadd.f32 %v3931, %v3975
    %v3980 = vadd.f32 %v3934, %v3975
    %v3981 = vadd.f32 %v3937, %v3975
    %v3982 = vadd.f32 %v3940, %v3975
    %v3983 = vadd.f32 %v3943, %v3975
    %v3984 = vadd.f32 %v3946, %v3975
    %v3985 = vadd.f32 %v3949, %v3975
    %v3986 = vadd.f32 %v3952, %v3975
    %v3987 = vadd.f32 %v3955, %v3975
    %v3988 = vadd.f32 %v3958, %v3975
    %v3989 = vadd.f32 %v3961, %v3975
    %v3990 = vadd.f32 %v3964, %v3975
    %v3991 = vadd.f32 %v3967, %v3975
    %v3992 = vadd.f32 %v3970, %v3975
    %v3993 = vmax.f32 %v3977, 0.0
    %v3994 = vmax.f32 %v3978, 0.0
    %v3995 = vmax.f32 %v3979, 0.0
    %v3996 = vmax.f32 %v3980, 0.0
    %v3997 = vmax.f32 %v3981, 0.0
    %v3998 = vmax.f32 %v3982, 0.0
    %v3999 = vmax.f32 %v3983, 0.0
    %v4000 = vmax.f32 %v3984, 0.0
    %v4001 = vmax.f32 %v3985, 0.0
    %v4002 = vmax.f32 %v3986, 0.0
    %v4003 = vmax.f32 %v3987, 0.0
    %v4004 = vmax.f32 %v3988, 0.0
    %v4005 = vmax.f32 %v3989, 0.0
    %v4006 = vmax.f32 %v3990, 0.0
    %v4007 = vmax.f32 %v3991, 0.0
    %v4008 = vmax.f32 %v3992, 0.0
    %v4009 = vmul.f32 %v4007, %v512
    %v4010 = vmul.f32 %v4008, %v513
    %v4011 = vmul.f32 %v3993, %v514
    %v4012 = vmul.f32 %v3994, %v515
    %v4013 = vmul.f32 %v3995, %v516
    %v4014 = vmul.f32 %v3996, %v517
    %v4015 = vmul.f32 %v3997, %v518
    %v4016 = vmul.f32 %v3998, %v519
    %v4017 = vmul.f32 %v3999, %v520
    %v4018 = vmul.f32 %v4000, %v521
    %v4019 = vmul.f32 %v4001, %v522
    %v4020 = vmul.f32 %v4002, %v523
    %v4021 = vmul.f32 %v4003, %v524
    %v4022 = vmul.f32 %v4004, %v525
    %v4023 = vmul.f32 %v4005, %v526
    %v4024 = vmul.f32 %v4006, %v527
    %s4025 = scalar_lea.vmem [#allocation6], 256
    %v4026 = vld [vmem:[%s4025] sm:$0xff]
    %v4027 = vld [vmem:[%s4025 + $0x8] sm:$0xff]
    %v4028 = vld [vmem:[%s4025 + $0x10] sm:$0xff]
    %v4029 = vld [vmem:[%s4025 + $0x18] sm:$0xff]
    %v4030 = vld [vmem:[%s4025 + $0x20] sm:$0xff]
    %v4031 = vld [vmem:[%s4025 + $0x28] sm:$0xff]
    %v4032 = vld [vmem:[%s4025 + $0x30] sm:$0xff]
    %v4033 = vld [vmem:[%s4025 + $0x38] sm:$0xff]
    %s4034 = scalar_lea.vmem [#allocation7], 256
    %v4035 = vld [vmem:[%s4034] sm:$0xff]
    %v4036 = vld [vmem:[%s4034 + $0x8] sm:$0xff]
    %v4037 = vld [vmem:[%s4034 + $0x10] sm:$0xff]
    %v4038 = vld [vmem:[%s4034 + $0x18] sm:$0xff]
    %v4039 = vld [vmem:[%s4034 + $0x20] sm:$0xff]
    %v4040 = vld [vmem:[%s4034 + $0x28] sm:$0xff]
    %v4041 = vld [vmem:[%s4034 + $0x30] sm:$0xff]
    %v4042 = vld [vmem:[%s4034 + $0x38] sm:$0xff]
    %v4044 = vsel %vm641, %v3993, 0
    %v4047 = vsel %vm641, %v3994, 0
    %v4050 = vsel %vm641, %v3995, 0
    %v4053 = vsel %vm641, %v3996, 0
    %v4056 = vsel %vm641, %v3997, 0
    %v4059 = vsel %vm641, %v3998, 0
    %v4062 = vsel %vm641, %v3999, 0
    %v4065 = vsel %vm641, %v4000, 0
    %v4068 = vsel %vm641, %v4001, 0
    %v4071 = vsel %vm641, %v4002, 0
    %v4074 = vsel %vm641, %v4003, 0
    %v4077 = vsel %vm641, %v4004, 0
    %v4080 = vsel %vm641, %v4005, 0
    %v4083 = vsel %vm641, %v4006, 0
    %v4086 = vsel %vm641, %v4007, 0
    %v4089 = vsel %vm641, %v4008, 0
    %4091 = vmatpush.msra.mxu0 0.0
    %4092 = vmatpush.msra.mxu0 0.0
    %4093 = vmatpush.msra.mxu0 0.0
    %4094 = vmatpush.msra.mxu0 0.0
    %4095 = vmatpush.msra.mxu0 0.0
    %4096 = vmatpush.msra.mxu0 0.0
    %4097 = vmatpush.msra.mxu0 0.0
    %4098 = vmatpush.msra.mxu0 0.0
    %4099 = vmatpush.msra.mxu0 %v4042
    %4100 = vmatpush.msra.mxu0 %v4041
    %4101 = vmatpush.msra.mxu0 %v4040
    %4102 = vmatpush.msra.mxu0 %v4039
    %4103 = vmatpush.msra.mxu0 %v4038
    %4104 = vmatpush.msra.mxu0 %v4037
    %4105 = vmatpush.msra.mxu0 %v4036
    %4106 = vmatpush.msra.mxu0 %v4035
    %4107 = vmatmul.f32.gmra.mxu0 %v4044
    %v4108 = vpop.f32.mrf.mxu0
    %v4109 = vadd.f32 0.0, %v4108
    %4110 = vmatmul.f32.gmra.mxu0 %v4047
    %v4111 = vpop.f32.mrf.mxu0
    %v4112 = vadd.f32 0.0, %v4111
    %4113 = vmatmul.f32.gmra.mxu0 %v4050
    %v4114 = vpop.f32.mrf.mxu0
    %v4115 = vadd.f32 0.0, %v4114
    %4116 = vmatmul.f32.gmra.mxu0 %v4053
    %v4117 = vpop.f32.mrf.mxu0
    %v4118 = vadd.f32 0.0, %v4117
    %4119 = vmatmul.f32.gmra.mxu0 %v4056
    %v4120 = vpop.f32.mrf.mxu0
    %v4121 = vadd.f32 0.0, %v4120
    %4122 = vmatmul.f32.gmra.mxu0 %v4059
    %v4123 = vpop.f32.mrf.mxu0
    %v4124 = vadd.f32 0.0, %v4123
    %4125 = vmatmul.f32.gmra.mxu0 %v4062
    %v4126 = vpop.f32.mrf.mxu0
    %v4127 = vadd.f32 0.0, %v4126
    %4128 = vmatmul.f32.gmra.mxu0 %v4065
    %v4129 = vpop.f32.mrf.mxu0
    %v4130 = vadd.f32 0.0, %v4129
    %4131 = vmatmul.f32.gmra.mxu0 %v4068
    %v4132 = vpop.f32.mrf.mxu0
    %v4133 = vadd.f32 0.0, %v4132
    %4134 = vmatmul.f32.gmra.mxu0 %v4071
    %v4135 = vpop.f32.mrf.mxu0
    %v4136 = vadd.f32 0.0, %v4135
    %4137 = vmatmul.f32.gmra.mxu0 %v4074
    %v4138 = vpop.f32.mrf.mxu0
    %v4139 = vadd.f32 0.0, %v4138
    %4140 = vmatmul.f32.gmra.mxu0 %v4077
    %v4141 = vpop.f32.mrf.mxu0
    %v4142 = vadd.f32 0.0, %v4141
    %4143 = vmatmul.f32.gmra.mxu0 %v4080
    %v4144 = vpop.f32.mrf.mxu0
    %v4145 = vadd.f32 0.0, %v4144
    %4146 = vmatmul.f32.gmra.mxu0 %v4083
    %v4147 = vpop.f32.mrf.mxu0
    %v4148 = vadd.f32 0.0, %v4147
    %4149 = vmatmul.f32.gmra.mxu0 %v4086
    %v4150 = vpop.f32.mrf.mxu0
    %v4151 = vadd.f32 0.0, %v4150
    %4152 = vmatmul.f32.gmra.mxu0 %v4089
    %v4153 = vpop.f32.mrf.mxu0
    %v4154 = vadd.f32 0.0, %v4153
    %4155 = vdwg.mxu0
    %v4157 = vsel %vm641, %v4009, 0
    %v4160 = vsel %vm641, %v4010, 0
    %v4163 = vsel %vm641, %v4011, 0
    %v4166 = vsel %vm641, %v4012, 0
    %v4169 = vsel %vm641, %v4013, 0
    %v4172 = vsel %vm641, %v4014, 0
    %v4175 = vsel %vm641, %v4015, 0
    %v4178 = vsel %vm641, %v4016, 0
    %v4181 = vsel %vm641, %v4017, 0
    %v4184 = vsel %vm641, %v4018, 0
    %v4187 = vsel %vm641, %v4019, 0
    %v4190 = vsel %vm641, %v4020, 0
    %v4193 = vsel %vm641, %v4021, 0
    %v4196 = vsel %vm641, %v4022, 0
    %v4199 = vsel %vm641, %v4023, 0
    %v4202 = vsel %vm641, %v4024, 0
    %4204 = vmatpush.msra.mxu0 0.0
    %4205 = vmatpush.msra.mxu0 0.0
    %4206 = vmatpush.msra.mxu0 0.0
    %4207 = vmatpush.msra.mxu0 0.0
    %4208 = vmatpush.msra.mxu0 0.0
    %4209 = vmatpush.msra.mxu0 0.0
    %4210 = vmatpush.msra.mxu0 0.0
    %4211 = vmatpush.msra.mxu0 0.0
    %4212 = vmatpush.msra.mxu0 %v4033
    %4213 = vmatpush.msra.mxu0 %v4032
    %4214 = vmatpush.msra.mxu0 %v4031
    %4215 = vmatpush.msra.mxu0 %v4030
    %4216 = vmatpush.msra.mxu0 %v4029
    %4217 = vmatpush.msra.mxu0 %v4028
    %4218 = vmatpush.msra.mxu0 %v4027
    %4219 = vmatpush.msra.mxu0 %v4026
    %4220 = vmatmul.f32.gmra.mxu0 %v4157
    %v4221 = vpop.f32.mrf.mxu0
    %v4222 = vadd.f32 %v4109, %v4221
    %4223 = vmatmul.f32.gmra.mxu0 %v4160
    %v4224 = vpop.f32.mrf.mxu0
    %v4225 = vadd.f32 %v4112, %v4224
    %4226 = vmatmul.f32.gmra.mxu0 %v4163
    %v4227 = vpop.f32.mrf.mxu0
    %v4228 = vadd.f32 %v4115, %v4227
    %4229 = vmatmul.f32.gmra.mxu0 %v4166
    %v4230 = vpop.f32.mrf.mxu0
    %v4231 = vadd.f32 %v4118, %v4230
    %4232 = vmatmul.f32.gmra.mxu0 %v4169
    %v4233 = vpop.f32.mrf.mxu0
    %v4234 = vadd.f32 %v4121, %v4233
    %4235 = vmatmul.f32.gmra.mxu0 %v4172
    %v4236 = vpop.f32.mrf.mxu0
    %v4237 = vadd.f32 %v4124, %v4236
    %4238 = vmatmul.f32.gmra.mxu0 %v4175
    %v4239 = vpop.f32.mrf.mxu0
    %v4240 = vadd.f32 %v4127, %v4239
    %4241 = vmatmul.f32.gmra.mxu0 %v4178
    %v4242 = vpop.f32.mrf.mxu0
    %v4243 = vadd.f32 %v4130, %v4242
    %4244 = vmatmul.f32.gmra.mxu0 %v4181
    %v4245 = vpop.f32.mrf.mxu0
    %v4246 = vadd.f32 %v4133, %v4245
    %4247 = vmatmul.f32.gmra.mxu0 %v4184
    %v4248 = vpop.f32.mrf.mxu0
    %v4249 = vadd.f32 %v4136, %v4248
    %4250 = vmatmul.f32.gmra.mxu0 %v4187
    %v4251 = vpop.f32.mrf.mxu0
    %v4252 = vadd.f32 %v4139, %v4251
    %4253 = vmatmul.f32.gmra.mxu0 %v4190
    %v4254 = vpop.f32.mrf.mxu0
    %v4255 = vadd.f32 %v4142, %v4254
    %4256 = vmatmul.f32.gmra.mxu0 %v4193
    %v4257 = vpop.f32.mrf.mxu0
    %v4258 = vadd.f32 %v4145, %v4257
    %4259 = vmatmul.f32.gmra.mxu0 %v4196
    %v4260 = vpop.f32.mrf.mxu0
    %v4261 = vadd.f32 %v4148, %v4260
    %4262 = vmatmul.f32.gmra.mxu0 %v4199
    %v4263 = vpop.f32.mrf.mxu0
    %v4264 = vadd.f32 %v4151, %v4263
    %4265 = vmatmul.f32.gmra.mxu0 %v4202
    %v4266 = vpop.f32.mrf.mxu0
    %v4267 = vadd.f32 %v4154, %v4266
    %4268 = vdwg.mxu0
    %s4269 = scalar_lea.vmem %s8, 4
    %v4270 = vld [vmem:[%s4269] sm:$0x1]
    %v4272 = vperm.slane %v4270, 0
    %v4274 = vadd.f32 %v4222, %v4272
    %v4275 = vadd.f32 %v4225, %v4272
    %v4276 = vadd.f32 %v4228, %v4272
    %v4277 = vadd.f32 %v4231, %v4272
    %v4278 = vadd.f32 %v4234, %v4272
    %v4279 = vadd.f32 %v4237, %v4272
    %v4280 = vadd.f32 %v4240, %v4272
    %v4281 = vadd.f32 %v4243, %v4272
    %v4282 = vadd.f32 %v4246, %v4272
    %v4283 = vadd.f32 %v4249, %v4272
    %v4284 = vadd.f32 %v4252, %v4272
    %v4285 = vadd.f32 %v4255, %v4272
    %v4286 = vadd.f32 %v4258, %v4272
    %v4287 = vadd.f32 %v4261, %v4272
    %v4288 = vadd.f32 %v4264, %v4272
    %v4289 = vadd.f32 %v4267, %v4272
    %v4290 = vmax.f32 %v4274, 0.0
    %v4291 = vmax.f32 %v4275, 0.0
    %v4292 = vmax.f32 %v4276, 0.0
    %v4293 = vmax.f32 %v4277, 0.0
    %v4294 = vmax.f32 %v4278, 0.0
    %v4295 = vmax.f32 %v4279, 0.0
    %v4296 = vmax.f32 %v4280, 0.0
    %v4297 = vmax.f32 %v4281, 0.0
    %v4298 = vmax.f32 %v4282, 0.0
    %v4299 = vmax.f32 %v4283, 0.0
    %v4300 = vmax.f32 %v4284, 0.0
    %v4301 = vmax.f32 %v4285, 0.0
    %v4302 = vmax.f32 %v4286, 0.0
    %v4303 = vmax.f32 %v4287, 0.0
    %v4304 = vmax.f32 %v4288, 0.0
    %v4305 = vmax.f32 %v4289, 0.0
    %v4306 = vadd.f32 %v3569, %v4290
    %v4307 = vadd.f32 %v3570, %v4291
    %v4308 = vadd.f32 %v3571, %v4292
    %v4309 = vadd.f32 %v3572, %v4293
    %v4310 = vadd.f32 %v3573, %v4294
    %v4311 = vadd.f32 %v3574, %v4295
    %v4312 = vadd.f32 %v3575, %v4296
    %v4313 = vadd.f32 %v3576, %v4297
    %v4314 = vadd.f32 %v3577, %v4298
    %v4315 = vadd.f32 %v3578, %v4299
    %v4316 = vadd.f32 %v3579, %v4300
    %v4317 = vadd.f32 %v3580, %v4301
    %v4318 = vadd.f32 %v3581, %v4302
    %v4319 = vadd.f32 %v3582, %v4303
    %v4320 = vadd.f32 %v3583, %v4304
    %v4321 = vadd.f32 %v3584, %v4305
    %s4322 = scalar_lea.vmem [#allocation9], 256
    %v4323 = vld [vmem:[%s4322] sm:$0xff]
    %v4324 = vld [vmem:[%s4322 + $0x8] sm:$0xff]
    %v4325 = vld [vmem:[%s4322 + $0x10] sm:$0xff]
    %v4326 = vld [vmem:[%s4322 + $0x18] sm:$0xff]
    %v4327 = vld [vmem:[%s4322 + $0x20] sm:$0xff]
    %v4328 = vld [vmem:[%s4322 + $0x28] sm:$0xff]
    %v4329 = vld [vmem:[%s4322 + $0x30] sm:$0xff]
    %v4330 = vld [vmem:[%s4322 + $0x38] sm:$0xff]
    %s4331 = scalar_lea.vmem %s10, 4
    %v4332 = vld [vmem:[%s4331] sm:$0x1]
    %v4334 = vperm.slane %v4332, 0
    %v4337 = vsel %vm641, %v4290, 0
    %v4340 = vsel %vm641, %v4291, 0
    %v4343 = vsel %vm641, %v4292, 0
    %v4346 = vsel %vm641, %v4293, 0
    %v4349 = vsel %vm641, %v4294, 0
    %v4352 = vsel %vm641, %v4295, 0
    %v4355 = vsel %vm641, %v4296, 0
    %v4358 = vsel %vm641, %v4297, 0
    %v4361 = vsel %vm641, %v4298, 0
    %v4364 = vsel %vm641, %v4299, 0
    %v4367 = vsel %vm641, %v4300, 0
    %v4370 = vsel %vm641, %v4301, 0
    %v4373 = vsel %vm641, %v4302, 0
    %v4376 = vsel %vm641, %v4303, 0
    %v4379 = vsel %vm641, %v4304, 0
    %v4382 = vsel %vm641, %v4305, 0
    %4384 = vmatpush.msra.mxu0 0.0
    %4385 = vmatpush.msra.mxu0 0.0
    %4386 = vmatpush.msra.mxu0 0.0
    %4387 = vmatpush.msra.mxu0 0.0
    %4388 = vmatpush.msra.mxu0 0.0
    %4389 = vmatpush.msra.mxu0 0.0
    %4390 = vmatpush.msra.mxu0 0.0
    %4391 = vmatpush.msra.mxu0 0.0
    %4392 = vmatpush.msra.mxu0 %v4330
    %4393 = vmatpush.msra.mxu0 %v4329
    %4394 = vmatpush.msra.mxu0 %v4328
    %4395 = vmatpush.msra.mxu0 %v4327
    %4396 = vmatpush.msra.mxu0 %v4326
    %4397 = vmatpush.msra.mxu0 %v4325
    %4398 = vmatpush.msra.mxu0 %v4324
    %4399 = vmatpush.msra.mxu0 %v4323
    %4400 = vmatmul.f32.gmra.mxu0 %v4337
    %v4401 = vpop.f32.mrf.mxu0
    %v4402 = vadd.f32 %v4334, %v4401
    %4403 = vmatmul.f32.gmra.mxu0 %v4340
    %v4404 = vpop.f32.mrf.mxu0
    %v4405 = vadd.f32 %v4334, %v4404
    %4406 = vmatmul.f32.gmra.mxu0 %v4343
    %v4407 = vpop.f32.mrf.mxu0
    %v4408 = vadd.f32 %v4334, %v4407
    %4409 = vmatmul.f32.gmra.mxu0 %v4346
    %v4410 = vpop.f32.mrf.mxu0
    %v4411 = vadd.f32 %v4334, %v4410
    %4412 = vmatmul.f32.gmra.mxu0 %v4349
    %v4413 = vpop.f32.mrf.mxu0
    %v4414 = vadd.f32 %v4334, %v4413
    %4415 = vmatmul.f32.gmra.mxu0 %v4352
    %v4416 = vpop.f32.mrf.mxu0
    %v4417 = vadd.f32 %v4334, %v4416
    %4418 = vmatmul.f32.gmra.mxu0 %v4355
    %v4419 = vpop.f32.mrf.mxu0
    %v4420 = vadd.f32 %v4334, %v4419
    %4421 = vmatmul.f32.gmra.mxu0 %v4358
    %v4422 = vpop.f32.mrf.mxu0
    %v4423 = vadd.f32 %v4334, %v4422
    %4424 = vmatmul.f32.gmra.mxu0 %v4361
    %v4425 = vpop.f32.mrf.mxu0
    %v4426 = vadd.f32 %v4334, %v4425
    %4427 = vmatmul.f32.gmra.mxu0 %v4364
    %v4428 = vpop.f32.mrf.mxu0
    %v4429 = vadd.f32 %v4334, %v4428
    %4430 = vmatmul.f32.gmra.mxu0 %v4367
    %v4431 = vpop.f32.mrf.mxu0
    %v4432 = vadd.f32 %v4334, %v4431
    %4433 = vmatmul.f32.gmra.mxu0 %v4370
    %v4434 = vpop.f32.mrf.mxu0
    %v4435 = vadd.f32 %v4334, %v4434
    %4436 = vmatmul.f32.gmra.mxu0 %v4373
    %v4437 = vpop.f32.mrf.mxu0
    %v4438 = vadd.f32 %v4334, %v4437
    %4439 = vmatmul.f32.gmra.mxu0 %v4376
    %v4440 = vpop.f32.mrf.mxu0
    %v4441 = vadd.f32 %v4334, %v4440
    %4442 = vmatmul.f32.gmra.mxu0 %v4379
    %v4443 = vpop.f32.mrf.mxu0
    %v4444 = vadd.f32 %v4334, %v4443
    %4445 = vmatmul.f32.gmra.mxu0 %v4382
    %v4446 = vpop.f32.mrf.mxu0
    %v4447 = vadd.f32 %v4334, %v4446
    %4448 = vdwg.mxu0
    %v4449 = vmul.f32 %v4438, %v560
    %v4450 = vmul.f32 %v4441, %v561
    %v4451 = vmul.f32 %v4444, %v562
    %v4452 = vmul.f32 %v4447, %v563
    %v4453 = vmul.f32 %v4402, %v564
    %v4454 = vmul.f32 %v4405, %v565
    %v4455 = vmul.f32 %v4408, %v566
    %v4456 = vmul.f32 %v4411, %v567
    %v4457 = vmul.f32 %v4414, %v568
    %v4458 = vmul.f32 %v4417, %v569
    %v4459 = vmul.f32 %v4420, %v570
    %v4460 = vmul.f32 %v4423, %v571
    %v4461 = vmul.f32 %v4426, %v572
    %v4462 = vmul.f32 %v4429, %v573
    %v4463 = vmul.f32 %v4432, %v574
    %v4464 = vmul.f32 %v4435, %v575
    %s4465 = scalar_lea.vmem [#allocation2], 320
    %v4466 = vld [vmem:[%s4465] sm:$0xff]
    %v4467 = vld [vmem:[%s4465 + $0x8] sm:$0xff]
    %v4468 = vld [vmem:[%s4465 + $0x10] sm:$0xff]
    %v4469 = vld [vmem:[%s4465 + $0x18] sm:$0xff]
    %v4470 = vld [vmem:[%s4465 + $0x20] sm:$0xff]
    %v4471 = vld [vmem:[%s4465 + $0x28] sm:$0xff]
    %v4472 = vld [vmem:[%s4465 + $0x30] sm:$0xff]
    %v4473 = vld [vmem:[%s4465 + $0x38] sm:$0xff]
    %s4474 = scalar_lea.vmem [#allocation4], 320
    %v4475 = vld [vmem:[%s4474] sm:$0xff]
    %v4476 = vld [vmem:[%s4474 + $0x8] sm:$0xff]
    %v4477 = vld [vmem:[%s4474 + $0x10] sm:$0xff]
    %v4478 = vld [vmem:[%s4474 + $0x18] sm:$0xff]
    %v4479 = vld [vmem:[%s4474 + $0x20] sm:$0xff]
    %v4480 = vld [vmem:[%s4474 + $0x28] sm:$0xff]
    %v4481 = vld [vmem:[%s4474 + $0x30] sm:$0xff]
    %v4482 = vld [vmem:[%s4474 + $0x38] sm:$0xff]
    %v4484 = vsel %vm641, %v4402, 0
    %v4487 = vsel %vm641, %v4405, 0
    %v4490 = vsel %vm641, %v4408, 0
    %v4493 = vsel %vm641, %v4411, 0
    %v4496 = vsel %vm641, %v4414, 0
    %v4499 = vsel %vm641, %v4417, 0
    %v4502 = vsel %vm641, %v4420, 0
    %v4505 = vsel %vm641, %v4423, 0
    %v4508 = vsel %vm641, %v4426, 0
    %v4511 = vsel %vm641, %v4429, 0
    %v4514 = vsel %vm641, %v4432, 0
    %v4517 = vsel %vm641, %v4435, 0
    %v4520 = vsel %vm641, %v4438, 0
    %v4523 = vsel %vm641, %v4441, 0
    %v4526 = vsel %vm641, %v4444, 0
    %v4529 = vsel %vm641, %v4447, 0
    %4531 = vmatpush.msra.mxu0 0.0
    %4532 = vmatpush.msra.mxu0 0.0
    %4533 = vmatpush.msra.mxu0 0.0
    %4534 = vmatpush.msra.mxu0 0.0
    %4535 = vmatpush.msra.mxu0 0.0
    %4536 = vmatpush.msra.mxu0 0.0
    %4537 = vmatpush.msra.mxu0 0.0
    %4538 = vmatpush.msra.mxu0 0.0
    %4539 = vmatpush.msra.mxu0 %v4482
    %4540 = vmatpush.msra.mxu0 %v4481
    %4541 = vmatpush.msra.mxu0 %v4480
    %4542 = vmatpush.msra.mxu0 %v4479
    %4543 = vmatpush.msra.mxu0 %v4478
    %4544 = vmatpush.msra.mxu0 %v4477
    %4545 = vmatpush.msra.mxu0 %v4476
    %4546 = vmatpush.msra.mxu0 %v4475
    %4547 = vmatmul.f32.gmra.mxu0 %v4484
    %v4548 = vpop.f32.mrf.mxu0
    %v4549 = vadd.f32 0.0, %v4548
    %4550 = vmatmul.f32.gmra.mxu0 %v4487
    %v4551 = vpop.f32.mrf.mxu0
    %v4552 = vadd.f32 0.0, %v4551
    %4553 = vmatmul.f32.gmra.mxu0 %v4490
    %v4554 = vpop.f32.mrf.mxu0
    %v4555 = vadd.f32 0.0, %v4554
    %4556 = vmatmul.f32.gmra.mxu0 %v4493
    %v4557 = vpop.f32.mrf.mxu0
    %v4558 = vadd.f32 0.0, %v4557
    %4559 = vmatmul.f32.gmra.mxu0 %v4496
    %v4560 = vpop.f32.mrf.mxu0
    %v4561 = vadd.f32 0.0, %v4560
    %4562 = vmatmul.f32.gmra.mxu0 %v4499
    %v4563 = vpop.f32.mrf.mxu0
    %v4564 = vadd.f32 0.0, %v4563
    %4565 = vmatmul.f32.gmra.mxu0 %v4502
    %v4566 = vpop.f32.mrf.mxu0
    %v4567 = vadd.f32 0.0, %v4566
    %4568 = vmatmul.f32.gmra.mxu0 %v4505
    %v4569 = vpop.f32.mrf.mxu0
    %v4570 = vadd.f32 0.0, %v4569
    %4571 = vmatmul.f32.gmra.mxu0 %v4508
    %v4572 = vpop.f32.mrf.mxu0
    %v4573 = vadd.f32 0.0, %v4572
    %4574 = vmatmul.f32.gmra.mxu0 %v4511
    %v4575 = vpop.f32.mrf.mxu0
    %v4576 = vadd.f32 0.0, %v4575
    %4577 = vmatmul.f32.gmra.mxu0 %v4514
    %v4578 = vpop.f32.mrf.mxu0
    %v4579 = vadd.f32 0.0, %v4578
    %4580 = vmatmul.f32.gmra.mxu0 %v4517
    %v4581 = vpop.f32.mrf.mxu0
    %v4582 = vadd.f32 0.0, %v4581
    %4583 = vmatmul.f32.gmra.mxu0 %v4520
    %v4584 = vpop.f32.mrf.mxu0
    %v4585 = vadd.f32 0.0, %v4584
    %4586 = vmatmul.f32.gmra.mxu0 %v4523
    %v4587 = vpop.f32.mrf.mxu0
    %v4588 = vadd.f32 0.0, %v4587
    %4589 = vmatmul.f32.gmra.mxu0 %v4526
    %v4590 = vpop.f32.mrf.mxu0
    %v4591 = vadd.f32 0.0, %v4590
    %4592 = vmatmul.f32.gmra.mxu0 %v4529
    %v4593 = vpop.f32.mrf.mxu0
    %v4594 = vadd.f32 0.0, %v4593
    %4595 = vdwg.mxu0
    %v4597 = vsel %vm641, %v4449, 0
    %v4600 = vsel %vm641, %v4450, 0
    %v4603 = vsel %vm641, %v4451, 0
    %v4606 = vsel %vm641, %v4452, 0
    %v4609 = vsel %vm641, %v4453, 0
    %v4612 = vsel %vm641, %v4454, 0
    %v4615 = vsel %vm641, %v4455, 0
    %v4618 = vsel %vm641, %v4456, 0
    %v4621 = vsel %vm641, %v4457, 0
    %v4624 = vsel %vm641, %v4458, 0
    %v4627 = vsel %vm641, %v4459, 0
    %v4630 = vsel %vm641, %v4460, 0
    %v4633 = vsel %vm641, %v4461, 0
    %v4636 = vsel %vm641, %v4462, 0
    %v4639 = vsel %vm641, %v4463, 0
    %v4642 = vsel %vm641, %v4464, 0
    %4644 = vmatpush.msra.mxu0 0.0
    %4645 = vmatpush.msra.mxu0 0.0
    %4646 = vmatpush.msra.mxu0 0.0
    %4647 = vmatpush.msra.mxu0 0.0
    %4648 = vmatpush.msra.mxu0 0.0
    %4649 = vmatpush.msra.mxu0 0.0
    %4650 = vmatpush.msra.mxu0 0.0
    %4651 = vmatpush.msra.mxu0 0.0
    %4652 = vmatpush.msra.mxu0 %v4473
    %4653 = vmatpush.msra.mxu0 %v4472
    %4654 = vmatpush.msra.mxu0 %v4471
    %4655 = vmatpush.msra.mxu0 %v4470
    %4656 = vmatpush.msra.mxu0 %v4469
    %4657 = vmatpush.msra.mxu0 %v4468
    %4658 = vmatpush.msra.mxu0 %v4467
    %4659 = vmatpush.msra.mxu0 %v4466
    %4660 = vmatmul.f32.gmra.mxu0 %v4597
    %v4661 = vpop.f32.mrf.mxu0
    %v4662 = vadd.f32 %v4549, %v4661
    %4663 = vmatmul.f32.gmra.mxu0 %v4600
    %v4664 = vpop.f32.mrf.mxu0
    %v4665 = vadd.f32 %v4552, %v4664
    %4666 = vmatmul.f32.gmra.mxu0 %v4603
    %v4667 = vpop.f32.mrf.mxu0
    %v4668 = vadd.f32 %v4555, %v4667
    %4669 = vmatmul.f32.gmra.mxu0 %v4606
    %v4670 = vpop.f32.mrf.mxu0
    %v4671 = vadd.f32 %v4558, %v4670
    %4672 = vmatmul.f32.gmra.mxu0 %v4609
    %v4673 = vpop.f32.mrf.mxu0
    %v4674 = vadd.f32 %v4561, %v4673
    %4675 = vmatmul.f32.gmra.mxu0 %v4612
    %v4676 = vpop.f32.mrf.mxu0
    %v4677 = vadd.f32 %v4564, %v4676
    %4678 = vmatmul.f32.gmra.mxu0 %v4615
    %v4679 = vpop.f32.mrf.mxu0
    %v4680 = vadd.f32 %v4567, %v4679
    %4681 = vmatmul.f32.gmra.mxu0 %v4618
    %v4682 = vpop.f32.mrf.mxu0
    %v4683 = vadd.f32 %v4570, %v4682
    %4684 = vmatmul.f32.gmra.mxu0 %v4621
    %v4685 = vpop.f32.mrf.mxu0
    %v4686 = vadd.f32 %v4573, %v4685
    %4687 = vmatmul.f32.gmra.mxu0 %v4624
    %v4688 = vpop.f32.mrf.mxu0
    %v4689 = vadd.f32 %v4576, %v4688
    %4690 = vmatmul.f32.gmra.mxu0 %v4627
    %v4691 = vpop.f32.mrf.mxu0
    %v4692 = vadd.f32 %v4579, %v4691
    %4693 = vmatmul.f32.gmra.mxu0 %v4630
    %v4694 = vpop.f32.mrf.mxu0
    %v4695 = vadd.f32 %v4582, %v4694
    %4696 = vmatmul.f32.gmra.mxu0 %v4633
    %v4697 = vpop.f32.mrf.mxu0
    %v4698 = vadd.f32 %v4585, %v4697
    %4699 = vmatmul.f32.gmra.mxu0 %v4636
    %v4700 = vpop.f32.mrf.mxu0
    %v4701 = vadd.f32 %v4588, %v4700
    %4702 = vmatmul.f32.gmra.mxu0 %v4639
    %v4703 = vpop.f32.mrf.mxu0
    %v4704 = vadd.f32 %v4591, %v4703
    %4705 = vmatmul.f32.gmra.mxu0 %v4642
    %v4706 = vpop.f32.mrf.mxu0
    %v4707 = vadd.f32 %v4594, %v4706
    %4708 = vdwg.mxu0
    %s4709 = scalar_lea.vmem %s5, 5
    %v4710 = vld [vmem:[%s4709] sm:$0x1]
    %v4712 = vperm.slane %v4710, 0
    %v4714 = vadd.f32 %v4662, %v4712
    %v4715 = vadd.f32 %v4665, %v4712
    %v4716 = vadd.f32 %v4668, %v4712
    %v4717 = vadd.f32 %v4671, %v4712
    %v4718 = vadd.f32 %v4674, %v4712
    %v4719 = vadd.f32 %v4677, %v4712
    %v4720 = vadd.f32 %v4680, %v4712
    %v4721 = vadd.f32 %v4683, %v4712
    %v4722 = vadd.f32 %v4686, %v4712
    %v4723 = vadd.f32 %v4689, %v4712
    %v4724 = vadd.f32 %v4692, %v4712
    %v4725 = vadd.f32 %v4695, %v4712
    %v4726 = vadd.f32 %v4698, %v4712
    %v4727 = vadd.f32 %v4701, %v4712
    %v4728 = vadd.f32 %v4704, %v4712
    %v4729 = vadd.f32 %v4707, %v4712
    %v4730 = vmax.f32 %v4714, 0.0
    %v4731 = vmax.f32 %v4715, 0.0
    %v4732 = vmax.f32 %v4716, 0.0
    %v4733 = vmax.f32 %v4717, 0.0
    %v4734 = vmax.f32 %v4718, 0.0
    %v4735 = vmax.f32 %v4719, 0.0
    %v4736 = vmax.f32 %v4720, 0.0
    %v4737 = vmax.f32 %v4721, 0.0
    %v4738 = vmax.f32 %v4722, 0.0
    %v4739 = vmax.f32 %v4723, 0.0
    %v4740 = vmax.f32 %v4724, 0.0
    %v4741 = vmax.f32 %v4725, 0.0
    %v4742 = vmax.f32 %v4726, 0.0
    %v4743 = vmax.f32 %v4727, 0.0
    %v4744 = vmax.f32 %v4728, 0.0
    %v4745 = vmax.f32 %v4729, 0.0
    %v4746 = vmul.f32 %v4742, %v560
    %v4747 = vmul.f32 %v4743, %v561
    %v4748 = vmul.f32 %v4744, %v562
    %v4749 = vmul.f32 %v4745, %v563
    %v4750 = vmul.f32 %v4730, %v564
    %v4751 = vmul.f32 %v4731, %v565
    %v4752 = vmul.f32 %v4732, %v566
    %v4753 = vmul.f32 %v4733, %v567
    %v4754 = vmul.f32 %v4734, %v568
    %v4755 = vmul.f32 %v4735, %v569
    %v4756 = vmul.f32 %v4736, %v570
    %v4757 = vmul.f32 %v4737, %v571
    %v4758 = vmul.f32 %v4738, %v572
    %v4759 = vmul.f32 %v4739, %v573
    %v4760 = vmul.f32 %v4740, %v574
    %v4761 = vmul.f32 %v4741, %v575
    %s4762 = scalar_lea.vmem [#allocation6], 320
    %v4763 = vld [vmem:[%s4762] sm:$0xff]
    %v4764 = vld [vmem:[%s4762 + $0x8] sm:$0xff]
    %v4765 = vld [vmem:[%s4762 + $0x10] sm:$0xff]
    %v4766 = vld [vmem:[%s4762 + $0x18] sm:$0xff]
    %v4767 = vld [vmem:[%s4762 + $0x20] sm:$0xff]
    %v4768 = vld [vmem:[%s4762 + $0x28] sm:$0xff]
    %v4769 = vld [vmem:[%s4762 + $0x30] sm:$0xff]
    %v4770 = vld [vmem:[%s4762 + $0x38] sm:$0xff]
    %s4771 = scalar_lea.vmem [#allocation7], 320
    %v4772 = vld [vmem:[%s4771] sm:$0xff]
    %v4773 = vld [vmem:[%s4771 + $0x8] sm:$0xff]
    %v4774 = vld [vmem:[%s4771 + $0x10] sm:$0xff]
    %v4775 = vld [vmem:[%s4771 + $0x18] sm:$0xff]
    %v4776 = vld [vmem:[%s4771 + $0x20] sm:$0xff]
    %v4777 = vld [vmem:[%s4771 + $0x28] sm:$0xff]
    %v4778 = vld [vmem:[%s4771 + $0x30] sm:$0xff]
    %v4779 = vld [vmem:[%s4771 + $0x38] sm:$0xff]
    %v4781 = vsel %vm641, %v4730, 0
    %v4784 = vsel %vm641, %v4731, 0
    %v4787 = vsel %vm641, %v4732, 0
    %v4790 = vsel %vm641, %v4733, 0
    %v4793 = vsel %vm641, %v4734, 0
    %v4796 = vsel %vm641, %v4735, 0
    %v4799 = vsel %vm641, %v4736, 0
    %v4802 = vsel %vm641, %v4737, 0
    %v4805 = vsel %vm641, %v4738, 0
    %v4808 = vsel %vm641, %v4739, 0
    %v4811 = vsel %vm641, %v4740, 0
    %v4814 = vsel %vm641, %v4741, 0
    %v4817 = vsel %vm641, %v4742, 0
    %v4820 = vsel %vm641, %v4743, 0
    %v4823 = vsel %vm641, %v4744, 0
    %v4826 = vsel %vm641, %v4745, 0
    %4828 = vmatpush.msra.mxu0 0.0
    %4829 = vmatpush.msra.mxu0 0.0
    %4830 = vmatpush.msra.mxu0 0.0
    %4831 = vmatpush.msra.mxu0 0.0
    %4832 = vmatpush.msra.mxu0 0.0
    %4833 = vmatpush.msra.mxu0 0.0
    %4834 = vmatpush.msra.mxu0 0.0
    %4835 = vmatpush.msra.mxu0 0.0
    %4836 = vmatpush.msra.mxu0 %v4779
    %4837 = vmatpush.msra.mxu0 %v4778
    %4838 = vmatpush.msra.mxu0 %v4777
    %4839 = vmatpush.msra.mxu0 %v4776
    %4840 = vmatpush.msra.mxu0 %v4775
    %4841 = vmatpush.msra.mxu0 %v4774
    %4842 = vmatpush.msra.mxu0 %v4773
    %4843 = vmatpush.msra.mxu0 %v4772
    %4844 = vmatmul.f32.gmra.mxu0 %v4781
    %v4845 = vpop.f32.mrf.mxu0
    %v4846 = vadd.f32 0.0, %v4845
    %4847 = vmatmul.f32.gmra.mxu0 %v4784
    %v4848 = vpop.f32.mrf.mxu0
    %v4849 = vadd.f32 0.0, %v4848
    %4850 = vmatmul.f32.gmra.mxu0 %v4787
    %v4851 = vpop.f32.mrf.mxu0
    %v4852 = vadd.f32 0.0, %v4851
    %4853 = vmatmul.f32.gmra.mxu0 %v4790
    %v4854 = vpop.f32.mrf.mxu0
    %v4855 = vadd.f32 0.0, %v4854
    %4856 = vmatmul.f32.gmra.mxu0 %v4793
    %v4857 = vpop.f32.mrf.mxu0
    %v4858 = vadd.f32 0.0, %v4857
    %4859 = vmatmul.f32.gmra.mxu0 %v4796
    %v4860 = vpop.f32.mrf.mxu0
    %v4861 = vadd.f32 0.0, %v4860
    %4862 = vmatmul.f32.gmra.mxu0 %v4799
    %v4863 = vpop.f32.mrf.mxu0
    %v4864 = vadd.f32 0.0, %v4863
    %4865 = vmatmul.f32.gmra.mxu0 %v4802
    %v4866 = vpop.f32.mrf.mxu0
    %v4867 = vadd.f32 0.0, %v4866
    %4868 = vmatmul.f32.gmra.mxu0 %v4805
    %v4869 = vpop.f32.mrf.mxu0
    %v4870 = vadd.f32 0.0, %v4869
    %4871 = vmatmul.f32.gmra.mxu0 %v4808
    %v4872 = vpop.f32.mrf.mxu0
    %v4873 = vadd.f32 0.0, %v4872
    %4874 = vmatmul.f32.gmra.mxu0 %v4811
    %v4875 = vpop.f32.mrf.mxu0
    %v4876 = vadd.f32 0.0, %v4875
    %4877 = vmatmul.f32.gmra.mxu0 %v4814
    %v4878 = vpop.f32.mrf.mxu0
    %v4879 = vadd.f32 0.0, %v4878
    %4880 = vmatmul.f32.gmra.mxu0 %v4817
    %v4881 = vpop.f32.mrf.mxu0
    %v4882 = vadd.f32 0.0, %v4881
    %4883 = vmatmul.f32.gmra.mxu0 %v4820
    %v4884 = vpop.f32.mrf.mxu0
    %v4885 = vadd.f32 0.0, %v4884
    %4886 = vmatmul.f32.gmra.mxu0 %v4823
    %v4887 = vpop.f32.mrf.mxu0
    %v4888 = vadd.f32 0.0, %v4887
    %4889 = vmatmul.f32.gmra.mxu0 %v4826
    %v4890 = vpop.f32.mrf.mxu0
    %v4891 = vadd.f32 0.0, %v4890
    %4892 = vdwg.mxu0
    %v4894 = vsel %vm641, %v4746, 0
    %v4897 = vsel %vm641, %v4747, 0
    %v4900 = vsel %vm641, %v4748, 0
    %v4903 = vsel %vm641, %v4749, 0
    %v4906 = vsel %vm641, %v4750, 0
    %v4909 = vsel %vm641, %v4751, 0
    %v4912 = vsel %vm641, %v4752, 0
    %v4915 = vsel %vm641, %v4753, 0
    %v4918 = vsel %vm641, %v4754, 0
    %v4921 = vsel %vm641, %v4755, 0
    %v4924 = vsel %vm641, %v4756, 0
    %v4927 = vsel %vm641, %v4757, 0
    %v4930 = vsel %vm641, %v4758, 0
    %v4933 = vsel %vm641, %v4759, 0
    %v4936 = vsel %vm641, %v4760, 0
    %v4939 = vsel %vm641, %v4761, 0
    %4941 = vmatpush.msra.mxu0 0.0
    %4942 = vmatpush.msra.mxu0 0.0
    %4943 = vmatpush.msra.mxu0 0.0
    %4944 = vmatpush.msra.mxu0 0.0
    %4945 = vmatpush.msra.mxu0 0.0
    %4946 = vmatpush.msra.mxu0 0.0
    %4947 = vmatpush.msra.mxu0 0.0
    %4948 = vmatpush.msra.mxu0 0.0
    %4949 = vmatpush.msra.mxu0 %v4770
    %4950 = vmatpush.msra.mxu0 %v4769
    %4951 = vmatpush.msra.mxu0 %v4768
    %4952 = vmatpush.msra.mxu0 %v4767
    %4953 = vmatpush.msra.mxu0 %v4766
    %4954 = vmatpush.msra.mxu0 %v4765
    %4955 = vmatpush.msra.mxu0 %v4764
    %4956 = vmatpush.msra.mxu0 %v4763
    %4957 = vmatmul.f32.gmra.mxu0 %v4894
    %v4958 = vpop.f32.mrf.mxu0
    %v4959 = vadd.f32 %v4846, %v4958
    %4960 = vmatmul.f32.gmra.mxu0 %v4897
    %v4961 = vpop.f32.mrf.mxu0
    %v4962 = vadd.f32 %v4849, %v4961
    %4963 = vmatmul.f32.gmra.mxu0 %v4900
    %v4964 = vpop.f32.mrf.mxu0
    %v4965 = vadd.f32 %v4852, %v4964
    %4966 = vmatmul.f32.gmra.mxu0 %v4903
    %v4967 = vpop.f32.mrf.mxu0
    %v4968 = vadd.f32 %v4855, %v4967
    %4969 = vmatmul.f32.gmra.mxu0 %v4906
    %v4970 = vpop.f32.mrf.mxu0
    %v4971 = vadd.f32 %v4858, %v4970
    %4972 = vmatmul.f32.gmra.mxu0 %v4909
    %v4973 = vpop.f32.mrf.mxu0
    %v4974 = vadd.f32 %v4861, %v4973
    %4975 = vmatmul.f32.gmra.mxu0 %v4912
    %v4976 = vpop.f32.mrf.mxu0
    %v4977 = vadd.f32 %v4864, %v4976
    %4978 = vmatmul.f32.gmra.mxu0 %v4915
    %v4979 = vpop.f32.mrf.mxu0
    %v4980 = vadd.f32 %v4867, %v4979
    %4981 = vmatmul.f32.gmra.mxu0 %v4918
    %v4982 = vpop.f32.mrf.mxu0
    %v4983 = vadd.f32 %v4870, %v4982
    %4984 = vmatmul.f32.gmra.mxu0 %v4921
    %v4985 = vpop.f32.mrf.mxu0
    %v4986 = vadd.f32 %v4873, %v4985
    %4987 = vmatmul.f32.gmra.mxu0 %v4924
    %v4988 = vpop.f32.mrf.mxu0
    %v4989 = vadd.f32 %v4876, %v4988
    %4990 = vmatmul.f32.gmra.mxu0 %v4927
    %v4991 = vpop.f32.mrf.mxu0
    %v4992 = vadd.f32 %v4879, %v4991
    %4993 = vmatmul.f32.gmra.mxu0 %v4930
    %v4994 = vpop.f32.mrf.mxu0
    %v4995 = vadd.f32 %v4882, %v4994
    %4996 = vmatmul.f32.gmra.mxu0 %v4933
    %v4997 = vpop.f32.mrf.mxu0
    %v4998 = vadd.f32 %v4885, %v4997
    %4999 = vmatmul.f32.gmra.mxu0 %v4936
    %v5000 = vpop.f32.mrf.mxu0
    %v5001 = vadd.f32 %v4888, %v5000
    %5002 = vmatmul.f32.gmra.mxu0 %v4939
    %v5003 = vpop.f32.mrf.mxu0
    %v5004 = vadd.f32 %v4891, %v5003
    %5005 = vdwg.mxu0
    %s5006 = scalar_lea.vmem %s8, 5
    %v5007 = vld [vmem:[%s5006] sm:$0x1]
    %v5009 = vperm.slane %v5007, 0
    %v5011 = vadd.f32 %v4959, %v5009
    %v5012 = vadd.f32 %v4962, %v5009
    %v5013 = vadd.f32 %v4965, %v5009
    %v5014 = vadd.f32 %v4968, %v5009
    %v5015 = vadd.f32 %v4971, %v5009
    %v5016 = vadd.f32 %v4974, %v5009
    %v5017 = vadd.f32 %v4977, %v5009
    %v5018 = vadd.f32 %v4980, %v5009
    %v5019 = vadd.f32 %v4983, %v5009
    %v5020 = vadd.f32 %v4986, %v5009
    %v5021 = vadd.f32 %v4989, %v5009
    %v5022 = vadd.f32 %v4992, %v5009
    %v5023 = vadd.f32 %v4995, %v5009
    %v5024 = vadd.f32 %v4998, %v5009
    %v5025 = vadd.f32 %v5001, %v5009
    %v5026 = vadd.f32 %v5004, %v5009
    %v5027 = vmax.f32 %v5011, 0.0
    %v5028 = vmax.f32 %v5012, 0.0
    %v5029 = vmax.f32 %v5013, 0.0
    %v5030 = vmax.f32 %v5014, 0.0
    %v5031 = vmax.f32 %v5015, 0.0
    %v5032 = vmax.f32 %v5016, 0.0
    %v5033 = vmax.f32 %v5017, 0.0
    %v5034 = vmax.f32 %v5018, 0.0
    %v5035 = vmax.f32 %v5019, 0.0
    %v5036 = vmax.f32 %v5020, 0.0
    %v5037 = vmax.f32 %v5021, 0.0
    %v5038 = vmax.f32 %v5022, 0.0
    %v5039 = vmax.f32 %v5023, 0.0
    %v5040 = vmax.f32 %v5024, 0.0
    %v5041 = vmax.f32 %v5025, 0.0
    %v5042 = vmax.f32 %v5026, 0.0
    %v5043 = vadd.f32 %v4306, %v5027
    %v5044 = vadd.f32 %v4307, %v5028
    %v5045 = vadd.f32 %v4308, %v5029
    %v5046 = vadd.f32 %v4309, %v5030
    %v5047 = vadd.f32 %v4310, %v5031
    %v5048 = vadd.f32 %v4311, %v5032
    %v5049 = vadd.f32 %v4312, %v5033
    %v5050 = vadd.f32 %v4313, %v5034
    %v5051 = vadd.f32 %v4314, %v5035
    %v5052 = vadd.f32 %v4315, %v5036
    %v5053 = vadd.f32 %v4316, %v5037
    %v5054 = vadd.f32 %v4317, %v5038
    %v5055 = vadd.f32 %v4318, %v5039
    %v5056 = vadd.f32 %v4319, %v5040
    %v5057 = vadd.f32 %v4320, %v5041
    %v5058 = vadd.f32 %v4321, %v5042
    %5059 = vst.msk [vmem:[%s11] sm:$0xff] %vm641, %v5043
    %5060 = vst.msk [vmem:[%s11 + $0x8] sm:$0xff] %vm641, %v5044
    %5061 = vst.msk [vmem:[%s11 + $0x10] sm:$0xff] %vm641, %v5045
    %5062 = vst.msk [vmem:[%s11 + $0x18] sm:$0xff] %vm641, %v5046
    %5063 = vst.msk [vmem:[%s11 + $0x20] sm:$0xff] %vm641, %v5047
    %5064 = vst.msk [vmem:[%s11 + $0x28] sm:$0xff] %vm641, %v5048
    %5065 = vst.msk [vmem:[%s11 + $0x30] sm:$0xff] %vm641, %v5049
    %5066 = vst.msk [vmem:[%s11 + $0x38] sm:$0xff] %vm641, %v5050
    %5067 = vst.msk [vmem:[%s11 + $0x40] sm:$0xff] %vm641, %v5051
    %5068 = vst.msk [vmem:[%s11 + $0x48] sm:$0xff] %vm641, %v5052
    %5069 = vst.msk [vmem:[%s11 + $0x50] sm:$0xff] %vm641, %v5053
    %5070 = vst.msk [vmem:[%s11 + $0x58] sm:$0xff] %vm641, %v5054
    %5071 = vst.msk [vmem:[%s11 + $0x60] sm:$0xff] %vm641, %v5055
    %5072 = vst.msk [vmem:[%s11 + $0x68] sm:$0xff] %vm641, %v5056
    %5073 = vst.msk [vmem:[%s11 + $0x70] sm:$0xff] %vm641, %v5057
    %5074 = vst.msk [vmem:[%s11 + $0x78] sm:$0xff] %vm641, %v5058
    // Predicated region
    $region66: #{tpu_custom_call.1} parent=1 // pred_check
      _
    $region67: #{tpu_custom_call.1} parent=1 // pred_check_branch
      %5076 = sbr.rel (0) target = $region69
    $region68: #{tpu_custom_call.1} parent=1 // pred_region
      _
    $region69: #{tpu_custom_call.1} parent=1 // pred_fallthru
      _
    // Predicated region
    $region70: #{tpu_custom_call.1} parent=1 // pred_check
      _
    $region71: #{tpu_custom_call.1} parent=1 // pred_check_branch
      %5078 = sbr.rel (0) target = $region73
    $region72: #{tpu_custom_call.1} parent=1 // pred_region
      _
    $region73: #{tpu_custom_call.1} parent=1 // pred_fallthru
      _
    %5079 = vsyncpa [#allocation3], 1
    %5080 = vsyncpa [#allocation5], 1
    %5081 = vsyncpa [#allocation8], 1

</llo_original>
